<compile_context>
chip_gen: v7x
topology: tpu7x:2x2x1
jax: 0.10.0
libtpu: 0.0.40
codegen_flags: <defaults>
</compile_context>

<pallas_src>
import jax
import jax.numpy as jnp
import numpy as np
from jax import lax
from jax.experimental import pallas as pl
from jax.experimental.pallas import tpu as pltpu


# ----------------------------- constant builders -----------------------------


def _conv_band(w_oihw, w_in, w_out, n_rows):
    """Per-dh Toeplitz band matrices for a VALID stride-1 conv.

    band[dh, (wo+dw)*C_in + ci, wo*C_out + o] = w_oihw[o, ci, dh, dw]
    so that conv(x)[ho, wo*C_out + o] = sum_dh x_rows[ho+dh, :] @ band[dh].
    """
    c_out, c_in, k, _ = w_oihw.shape
    n_cols = w_out * c_out
    dh, dw, ci, o, wo = np.meshgrid(
        np.arange(k), np.arange(k), np.arange(c_in), np.arange(c_out),
        np.arange(w_out), indexing="ij")
    rows = (wo + dw) * c_in + ci
    cols = wo * c_out + o
    vals = jnp.broadcast_to(
        jnp.transpose(w_oihw.astype(jnp.float32), (2, 3, 1, 0))[..., None],
        (k, k, c_in, c_out, w_out))
    band = jnp.zeros((k, n_rows, n_cols), jnp.float32)
    return band.at[dh, rows, cols].set(vals)


def _pool_col_select(w, c, n_out):
    """0/1 matrices Te/To so the 2x2-pool column-pair max of X[*, w*c] is
    max(X @ Te, X @ To), output columns wp*c + ch, zero-padded to n_out."""
    w2 = w // 2
    te = np.zeros((w * c, n_out), np.float32)
    to = np.zeros((w * c, n_out), np.float32)
    cols = np.arange(w2 * c)
    te[2 * c * (cols // c) + cols % c, cols] = 1.0
    to[2 * c * (cols // c) + c + cols % c, cols] = 1.0
    return jnp.asarray(te), jnp.asarray(to)


def prepare_constants(params):
    """Build the VMEM-resident constant slabs ONCE (outside the per-call jit)."""
    f32 = jnp.float32
    # conv1: 32x32x3 -> 28x28x6.  Input rows are [W*C=96 | ones-lane | zeros]=128;
    # the bias lives in band1[0] at row 96 (the ones lane), added exactly once.
    band1 = _conv_band(params["conv1_w"].astype(f32), 32, 28, n_rows=128)    # [5,128,168]
    band1 = band1.at[0, 96, :].set(jnp.tile(params["conv1_b"].astype(f32), 28))
    # pool1 column selection: 28x6 -> 14x6 (84 valid cols, padded to 128 lanes).
    te1, to1 = _pool_col_select(28, 6, 128)                                  # [168,128] x2
    # conv2: 14x14x6 -> 10x10x16 (input rows 84..127 are zero padding).
    band2 = _conv_band(params["conv2_w"].astype(f32), 14, 10, n_rows=128)    # [5,128,160]
    b2 = jnp.tile(params["conv2_b"].astype(f32), 10)[None, :]                # [1,160]
    # pool2 column selection: 10x16 -> 5x16 (80 valid cols, padded to 128).
    te2, to2 = _pool_col_select(10, 16, 128)                                 # [160,128] x2
    # fc1 with PyTorch's (C,H,W) flatten folded into the weight permutation:
    # wfc1[ho, wo*16 + c, j] = fc1_w[j, c*25 + ho*5 + wo]; K 80->128, N 120->128.
    wfc1 = (params["fc1_w"].astype(f32).reshape(120, 16, 5, 5)
            .transpose(2, 3, 1, 0).reshape(5, 80, 120))
    wfc1 = jnp.pad(wfc1, ((0, 0), (0, 48), (0, 8)))                          # [5,128,128]
    bfc1 = jnp.pad(params["fc1_b"].astype(f32), (0, 8))[None, :]             # [1,128]
    wfc2 = jnp.zeros((128, 128), f32).at[:120, :84].set(
        params["fc2_w"].astype(f32).T)                                       # [128,128]
    bfc2 = jnp.pad(params["fc2_b"].astype(f32), (0, 44))[None, :]            # [1,128]
    wfc3 = jnp.zeros((128, 128), f32).at[:84, :10].set(
        params["fc3_w"].astype(f32).T)                                       # [128,128]
    bfc3 = jnp.pad(params["fc3_b"].astype(f32), (0, 118))[None, :]           # [1,128]
    return (band1, te1, to1, band2, b2, te2, to2,
            wfc1, bfc1, wfc2, bfc2, wfc3, bfc3)


# -------------------------------- fused kernel --------------------------------


def _lenet_fused_kernel(x_ref, band1_ref, te1_ref, to1_ref, band2_ref, b2_ref,
                        te2_ref, to2_ref, wfc1_ref, bfc1_ref, wfc2_ref,
                        bfc2_ref, wfc3_ref, bfc3_ref, out_ref):
    f32 = jnp.float32
    tb = x_ref.shape[1]                       # batch tile (multiple of 8)

    def dot(a, b):
        return jnp.dot(a, b, preferred_element_type=f32)

    # conv1 + bias (ones lane) + relu: 5 band matmuls with M = 28*tb.
    acc = dot(x_ref[0:28].reshape(28 * tb, 128), band1_ref[0])
    for dh in range(1, 5):
        acc = acc + dot(x_ref[dh:dh + 28].reshape(28 * tb, 128), band1_ref[dh])
    c1 = jnp.maximum(acc, 0.0)                                     # [28*tb, 168]

    # pool1: row-pair max on the VPU; column-pair max via 0/1-select matmuls
    # (which also re-pad the lane dim to 128 for conv2).
    c1 = c1.reshape(14, 2, tb, 168)
    r1 = jnp.maximum(c1[:, 0], c1[:, 1]).reshape(14 * tb, 168)
    p1 = jnp.maximum(dot(r1, te1_ref[...]), dot(r1, to1_ref[...]))  # [14*tb,128]
    p1 = p1.reshape(14, tb, 128)

    # conv2 + bias + relu: M = 10*tb.
    acc2 = dot(p1[0:10].reshape(10 * tb, 128), band2_ref[0])
    for dh in range(1, 5):
        acc2 = acc2 + dot(p1[dh:dh + 10].reshape(10 * tb, 128), band2_ref[dh])
    c2 = jnp.maximum(acc2 + b2_ref[...], 0.0)                      # [10*tb, 160]

    # pool2.
    c2 = c2.reshape(5, 2, tb, 160)
    r2 = jnp.maximum(c2[:, 0], c2[:, 1]).reshape(5 * tb, 160)
    p2 = jnp.maximum(dot(r2, te2_ref[...]), dot(r2, to2_ref[...]))  # [5*tb,128]
    p2 = p2.reshape(5, tb, 128)

    # fc1 (flatten permutation folded into wfc1), fc2, fc3 -- M = tb.
    y = dot(p2[0], wfc1_ref[0])
    for ho in range(1, 5):
        y = y + dot(p2[ho], wfc1_ref[ho])
    y = jnp.maximum(y + bfc1_ref[...], 0.0)                        # [tb, 128]
    y = jnp.maximum(dot(y, wfc2_ref[...]) + bfc2_ref[...], 0.0)
    y = dot(y, wfc3_ref[...]) + bfc3_ref[...]
    out_ref[...] = y                                               # [tb, 128]


# --------------------------------- wrapper -----------------------------------


def _resident_spec(arr):
    """Full-array block pinned at block index 0 for every grid step."""
    n = arr.ndim

    def idx(b):
        return (0,) * n

    return pl.BlockSpec(arr.shape, idx)


def _round_up(n, m):
    return ((n + m - 1) // m) * m


@jax.jit
def net_forward(consts, x_nchw):
    """Fused LeNet forward.  `consts` must come from prepare_constants()."""
    B = x_nchw.shape[0]
    # NCHW -> [H, B, W*C], zero-pad lanes to 128 and set lane 96 = 1.0 (the
    # conv1 bias lane).  Kept in the wrapper: an in-kernel pltpu.einshape
    # rearrange would save one small HBM round-trip but complicates layout.
    x = jnp.transpose(x_nchw.astype(jnp.float32), (2, 0, 3, 1)).reshape(32, B, 96)
    x = jnp.pad(x, ((0, 0), (0, 0), (0, 32)))
    x = x.at[:, :, 96].set(1.0)

    # Batch tile: multiple of 8 (sublane), capped at 128 (one MXU row tile on
    # v5e; 256 would also fit VMEM and fills the larger v6e/v7x MXU).
    tile_b = 128 if B >= 128 else _round_up(B, 8)
    bp = _round_up(B, tile_b)
    if bp != B:
        x = jnp.pad(x, ((0, 0), (0, bp - B), (0, 0)))

    in_specs = [pl.BlockSpec((32, tile_b, 128), lambda b: (0, b, 0))]
    in_specs += [_resident_spec(c) for c in consts]

    out = pl.pallas_call(
        _lenet_fused_kernel,
        out_shape=jax.ShapeDtypeStruct((bp, 128), jnp.float32),
        grid=(bp // tile_b,),
        in_specs=in_specs,
        out_specs=pl.BlockSpec((tile_b, 128), lambda b: (b, 0)),
        compiler_params=pltpu.CompilerParams(
            dimension_semantics=("parallel",),
            vmem_limit_bytes=48 * 1024 * 1024),
    )(x, *consts)
    return out[:B, :10]


# --------------------------------- the model ----------------------------------


def init_params(key):
    """Deterministic PyTorch-default-style uniform init (fan-in based bounds)."""
    ks = jax.random.split(key, 10)

    def u(k, shape, fan_in):
        bound = 1.0 / jnp.sqrt(jnp.float32(fan_in))
        return jax.random.uniform(k, shape, jnp.float32, -bound, bound)

    return {
        "conv1_w": u(ks[0], (6, 3, 5, 5), 3 * 5 * 5),
        "conv1_b": u(ks[1], (6,), 3 * 5 * 5),
        "conv2_w": u(ks[2], (16, 6, 5, 5), 6 * 5 * 5),
        "conv2_b": u(ks[3], (16,), 6 * 5 * 5),
        "fc1_w": u(ks[4], (120, 16 * 5 * 5), 16 * 5 * 5),
        "fc1_b": u(ks[5], (120,), 16 * 5 * 5),
        "fc2_w": u(ks[6], (84, 120), 120),
        "fc2_b": u(ks[7], (84,), 120),
        "fc3_w": u(ks[8], (10, 84), 84),
        "fc3_b": u(ks[9], (10,), 84),
    }


def net_reference(params, x):
    """Pure-JAX (f32, highest precision) reference of the PyTorch forward."""
    dn = ("NCHW", "OIHW", "NCHW")
    prec = lax.Precision.HIGHEST
    y = lax.conv_general_dilated(x, params["conv1_w"], (1, 1), "VALID",
                                 dimension_numbers=dn, precision=prec)
    y = jax.nn.relu(y + params["conv1_b"][None, :, None, None])
    y = lax.reduce_window(y, -jnp.inf, lax.max, (1, 1, 2, 2), (1, 1, 2, 2), "VALID")
    y = lax.conv_general_dilated(y, params["conv2_w"], (1, 1), "VALID",
                                 dimension_numbers=dn, precision=prec)
    y = jax.nn.relu(y + params["conv2_b"][None, :, None, None])
    y = lax.reduce_window(y, -jnp.inf, lax.max, (1, 1, 2, 2), (1, 1, 2, 2), "VALID")
    y = y.reshape(y.shape[0], -1)
    y = jax.nn.relu(jnp.dot(y, params["fc1_w"].T, precision=prec) + params["fc1_b"])
    y = jax.nn.relu(jnp.dot(y, params["fc2_w"].T, precision=prec) + params["fc2_b"])
    y = jnp.dot(y, params["fc3_w"].T, precision=prec) + params["fc3_b"]
    return y


if __name__ == "__main__":
    key = jax.random.PRNGKey(0)
    pkey, xkey = jax.random.split(key)
    params = init_params(pkey)
    consts = prepare_constants(params)   # built once, reused for every call

    # CIFAR-10 sized input: fc1 = 16*5*5 implies 32x32 spatial, 3 channels.
    x = jax.random.normal(xkey, (2, 3, 32, 32), jnp.float32)

    out = jax.block_until_ready(net_forward(consts, x))
    assert out.shape == (2, 10), out.shape

    ref = net_reference(params, x)
    err = float(jnp.max(jnp.abs(out - ref)))
    assert jnp.allclose(out, ref, rtol=1e-3, atol=1e-3), err

    print("KERNEL_OK")
</pallas_src>

<mosaic_0001>
module attributes {stable_mosaic.version = 11 : i64} {
  func.func @_lenet_fused_kernel(%arg0: i32, %arg1: memref<32x8x128xf32, #tpu.memory_space<vmem>>, %arg2: memref<5x128x168xf32, #tpu.memory_space<vmem>>, %arg3: memref<168x128xf32, #tpu.memory_space<vmem>>, %arg4: memref<168x128xf32, #tpu.memory_space<vmem>>, %arg5: memref<5x128x160xf32, #tpu.memory_space<vmem>>, %arg6: memref<1x160xf32, #tpu.memory_space<vmem>>, %arg7: memref<160x128xf32, #tpu.memory_space<vmem>>, %arg8: memref<160x128xf32, #tpu.memory_space<vmem>>, %arg9: memref<5x128x128xf32, #tpu.memory_space<vmem>>, %arg10: memref<1x128xf32, #tpu.memory_space<vmem>>, %arg11: memref<128x128xf32, #tpu.memory_space<vmem>>, %arg12: memref<1x128xf32, #tpu.memory_space<vmem>>, %arg13: memref<128x128xf32, #tpu.memory_space<vmem>>, %arg14: memref<1x128xf32, #tpu.memory_space<vmem>>, %arg15: memref<8x128xf32, #tpu.memory_space<vmem>>) attributes {dimension_semantics = [#tpu.dimension_semantics<parallel>], iteration_bounds = array<i64: 1>, scalar_prefetch = 0 : i64, scratch_operands = 0 : i64, tpu.core_type = #tpu.core_type<tc>, window_params = [{transform_indices = @transform_0, window_bounds = array<i64: 32, 8, 128>}, {pipeline_mode = #tpu.pipeline_mode<synchronous>, transform_indices = @transform_1, window_bounds = array<i64: 5, 128, 168>}, {pipeline_mode = #tpu.pipeline_mode<synchronous>, transform_indices = @transform_2, window_bounds = array<i64: 168, 128>}, {pipeline_mode = #tpu.pipeline_mode<synchronous>, transform_indices = @transform_3, window_bounds = array<i64: 168, 128>}, {pipeline_mode = #tpu.pipeline_mode<synchronous>, transform_indices = @transform_4, window_bounds = array<i64: 5, 128, 160>}, {pipeline_mode = #tpu.pipeline_mode<synchronous>, transform_indices = @transform_5, window_bounds = array<i64: 1, 160>}, {pipeline_mode = #tpu.pipeline_mode<synchronous>, transform_indices = @transform_6, window_bounds = array<i64: 160, 128>}, {pipeline_mode = #tpu.pipeline_mode<synchronous>, transform_indices = @transform_7, window_bounds = array<i64: 160, 128>}, {pipeline_mode = #tpu.pipeline_mode<synchronous>, transform_indices = @transform_8, window_bounds = array<i64: 5, 128, 128>}, {pipeline_mode = #tpu.pipeline_mode<synchronous>, transform_indices = @transform_9, window_bounds = array<i64: 1, 128>}, {pipeline_mode = #tpu.pipeline_mode<synchronous>, transform_indices = @transform_10, window_bounds = array<i64: 128, 128>}, {pipeline_mode = #tpu.pipeline_mode<synchronous>, transform_indices = @transform_11, window_bounds = array<i64: 1, 128>}, {pipeline_mode = #tpu.pipeline_mode<synchronous>, transform_indices = @transform_12, window_bounds = array<i64: 128, 128>}, {pipeline_mode = #tpu.pipeline_mode<synchronous>, transform_indices = @transform_13, window_bounds = array<i64: 1, 128>}, {transform_indices = @transform_14, window_bounds = array<i64: 8, 128>}]} {
    %c0 = arith.constant 0 : index
    %c0_0 = arith.constant 0 : index
    %c0_1 = arith.constant 0 : index
    %0 = vector.load %arg1[%c0, %c0_0, %c0_1] : memref<32x8x128xf32, #tpu.memory_space<vmem>>, vector<28x8x128xf32>
    %1 = vector.shape_cast %0 : vector<28x8x128xf32> to vector<224x128xf32>
    %c0_2 = arith.constant 0 : index
    %c0_3 = arith.constant 0 : index
    %c0_4 = arith.constant 0 : index
    %2 = vector.load %arg2[%c0_2, %c0_3, %c0_4] : memref<5x128x168xf32, #tpu.memory_space<vmem>>, vector<1x128x168xf32>
    %3 = vector.shape_cast %2 : vector<1x128x168xf32> to vector<128x168xf32>
    %cst = arith.constant dense<0.000000e+00> : vector<224x168xf32>
    %4 = tpu.matmul %1, %3, %cst {dimension_numbers = #tpu.dot_dimension_numbers<[1], [0], [0], [1], [0, 0, 1, 1], [], []>} : vector<224x128xf32>, vector<128x168xf32>, vector<224x168xf32> -> vector<224x168xf32>
    %c1 = arith.constant 1 : index
    %c0_5 = arith.constant 0 : index
    %c0_6 = arith.constant 0 : index
    %5 = vector.load %arg1[%c1, %c0_5, %c0_6] : memref<32x8x128xf32, #tpu.memory_space<vmem>>, vector<28x8x128xf32>
    %6 = vector.shape_cast %5 : vector<28x8x128xf32> to vector<224x128xf32>
    %c1_7 = arith.constant 1 : index
    %c0_8 = arith.constant 0 : index
    %c0_9 = arith.constant 0 : index
    %7 = vector.load %arg2[%c1_7, %c0_8, %c0_9] : memref<5x128x168xf32, #tpu.memory_space<vmem>>, vector<1x128x168xf32>
    %8 = vector.shape_cast %7 : vector<1x128x168xf32> to vector<128x168xf32>
    %cst_10 = arith.constant dense<0.000000e+00> : vector<224x168xf32>
    %9 = tpu.matmul %6, %8, %cst_10 {dimension_numbers = #tpu.dot_dimension_numbers<[1], [0], [0], [1], [0, 0, 1, 1], [], []>} : vector<224x128xf32>, vector<128x168xf32>, vector<224x168xf32> -> vector<224x168xf32>
    %10 = arith.addf %4, %9 : vector<224x168xf32>
    %c2 = arith.constant 2 : index
    %c0_11 = arith.constant 0 : index
    %c0_12 = arith.constant 0 : index
    %11 = vector.load %arg1[%c2, %c0_11, %c0_12] : memref<32x8x128xf32, #tpu.memory_space<vmem>>, vector<28x8x128xf32>
    %12 = vector.shape_cast %11 : vector<28x8x128xf32> to vector<224x128xf32>
    %c2_13 = arith.constant 2 : index
    %c0_14 = arith.constant 0 : index
    %c0_15 = arith.constant 0 : index
    %13 = vector.load %arg2[%c2_13, %c0_14, %c0_15] : memref<5x128x168xf32, #tpu.memory_space<vmem>>, vector<1x128x168xf32>
    %14 = vector.shape_cast %13 : vector<1x128x168xf32> to vector<128x168xf32>
    %cst_16 = arith.constant dense<0.000000e+00> : vector<224x168xf32>
    %15 = tpu.matmul %12, %14, %cst_16 {dimension_numbers = #tpu.dot_dimension_numbers<[1], [0], [0], [1], [0, 0, 1, 1], [], []>} : vector<224x128xf32>, vector<128x168xf32>, vector<224x168xf32> -> vector<224x168xf32>
    %16 = arith.addf %10, %15 : vector<224x168xf32>
    %c3 = arith.constant 3 : index
    %c0_17 = arith.constant 0 : index
    %c0_18 = arith.constant 0 : index
    %17 = vector.load %arg1[%c3, %c0_17, %c0_18] : memref<32x8x128xf32, #tpu.memory_space<vmem>>, vector<28x8x128xf32>
    %18 = vector.shape_cast %17 : vector<28x8x128xf32> to vector<224x128xf32>
    %c3_19 = arith.constant 3 : index
    %c0_20 = arith.constant 0 : index
    %c0_21 = arith.constant 0 : index
    %19 = vector.load %arg2[%c3_19, %c0_20, %c0_21] : memref<5x128x168xf32, #tpu.memory_space<vmem>>, vector<1x128x168xf32>
    %20 = vector.shape_cast %19 : vector<1x128x168xf32> to vector<128x168xf32>
    %cst_22 = arith.constant dense<0.000000e+00> : vector<224x168xf32>
    %21 = tpu.matmul %18, %20, %cst_22 {dimension_numbers = #tpu.dot_dimension_numbers<[1], [0], [0], [1], [0, 0, 1, 1], [], []>} : vector<224x128xf32>, vector<128x168xf32>, vector<224x168xf32> -> vector<224x168xf32>
    %22 = arith.addf %16, %21 : vector<224x168xf32>
    %c4 = arith.constant 4 : index
    %c0_23 = arith.constant 0 : index
    %c0_24 = arith.constant 0 : index
    %23 = vector.load %arg1[%c4, %c0_23, %c0_24] : memref<32x8x128xf32, #tpu.memory_space<vmem>>, vector<28x8x128xf32>
    %24 = vector.shape_cast %23 : vector<28x8x128xf32> to vector<224x128xf32>
    %c4_25 = arith.constant 4 : index
    %c0_26 = arith.constant 0 : index
    %c0_27 = arith.constant 0 : index
    %25 = vector.load %arg2[%c4_25, %c0_26, %c0_27] : memref<5x128x168xf32, #tpu.memory_space<vmem>>, vector<1x128x168xf32>
    %26 = vector.shape_cast %25 : vector<1x128x168xf32> to vector<128x168xf32>
    %cst_28 = arith.constant dense<0.000000e+00> : vector<224x168xf32>
    %27 = tpu.matmul %24, %26, %cst_28 {dimension_numbers = #tpu.dot_dimension_numbers<[1], [0], [0], [1], [0, 0, 1, 1], [], []>} : vector<224x128xf32>, vector<128x168xf32>, vector<224x168xf32> -> vector<224x168xf32>
    %28 = arith.addf %22, %27 : vector<224x168xf32>
    %cst_29 = arith.constant 0.000000e+00 : f32
    %29 = vector.broadcast %cst_29 : f32 to vector<224x168xf32>
    %30 = arith.maximumf %28, %29 : vector<224x168xf32>
    %31 = vector.shape_cast %30 : vector<224x168xf32> to vector<14x2x8x168xf32>
    %32 = vector.extract_strided_slice %31 {offsets = [0, 0, 0, 0], sizes = [14, 1, 8, 168], strides = [1, 1, 1, 1]} : vector<14x2x8x168xf32> to vector<14x1x8x168xf32>
    %33 = vector.shape_cast %32 : vector<14x1x8x168xf32> to vector<14x8x168xf32>
    %34 = vector.extract_strided_slice %31 {offsets = [0, 1, 0, 0], sizes = [14, 1, 8, 168], strides = [1, 1, 1, 1]} : vector<14x2x8x168xf32> to vector<14x1x8x168xf32>
    %35 = vector.shape_cast %34 : vector<14x1x8x168xf32> to vector<14x8x168xf32>
    %36 = arith.maximumf %33, %35 : vector<14x8x168xf32>
    %37 = vector.shape_cast %36 : vector<14x8x168xf32> to vector<112x168xf32>
    %c0_30 = arith.constant 0 : index
    %c0_31 = arith.constant 0 : index
    %38 = vector.load %arg3[%c0_30, %c0_31] : memref<168x128xf32, #tpu.memory_space<vmem>>, vector<168x128xf32>
    %cst_32 = arith.constant dense<0.000000e+00> : vector<112x128xf32>
    %39 = tpu.matmul %37, %38, %cst_32 {dimension_numbers = #tpu.dot_dimension_numbers<[1], [0], [0], [1], [0, 0, 1, 1], [], []>} : vector<112x168xf32>, vector<168x128xf32>, vector<112x128xf32> -> vector<112x128xf32>
    %c0_33 = arith.constant 0 : index
    %c0_34 = arith.constant 0 : index
    %40 = vector.load %arg4[%c0_33, %c0_34] : memref<168x128xf32, #tpu.memory_space<vmem>>, vector<168x128xf32>
    %cst_35 = arith.constant dense<0.000000e+00> : vector<112x128xf32>
    %41 = tpu.matmul %37, %40, %cst_35 {dimension_numbers = #tpu.dot_dimension_numbers<[1], [0], [0], [1], [0, 0, 1, 1], [], []>} : vector<112x168xf32>, vector<168x128xf32>, vector<112x128xf32> -> vector<112x128xf32>
    %42 = arith.maximumf %39, %41 : vector<112x128xf32>
    %43 = vector.shape_cast %42 : vector<112x128xf32> to vector<14x8x128xf32>
    %44 = vector.extract_strided_slice %43 {offsets = [0, 0, 0], sizes = [10, 8, 128], strides = [1, 1, 1]} : vector<14x8x128xf32> to vector<10x8x128xf32>
    %45 = vector.shape_cast %44 : vector<10x8x128xf32> to vector<80x128xf32>
    %c0_36 = arith.constant 0 : index
    %c0_37 = arith.constant 0 : index
    %c0_38 = arith.constant 0 : index
    %46 = vector.load %arg5[%c0_36, %c0_37, %c0_38] : memref<5x128x160xf32, #tpu.memory_space<vmem>>, vector<1x128x160xf32>
    %47 = vector.shape_cast %46 : vector<1x128x160xf32> to vector<128x160xf32>
    %cst_39 = arith.constant dense<0.000000e+00> : vector<80x160xf32>
    %48 = tpu.matmul %45, %47, %cst_39 {dimension_numbers = #tpu.dot_dimension_numbers<[1], [0], [0], [1], [0, 0, 1, 1], [], []>} : vector<80x128xf32>, vector<128x160xf32>, vector<80x160xf32> -> vector<80x160xf32>
    %49 = vector.extract_strided_slice %43 {offsets = [1, 0, 0], sizes = [10, 8, 128], strides = [1, 1, 1]} : vector<14x8x128xf32> to vector<10x8x128xf32>
    %50 = vector.shape_cast %49 : vector<10x8x128xf32> to vector<80x128xf32>
    %c1_40 = arith.constant 1 : index
    %c0_41 = arith.constant 0 : index
    %c0_42 = arith.constant 0 : index
    %51 = vector.load %arg5[%c1_40, %c0_41, %c0_42] : memref<5x128x160xf32, #tpu.memory_space<vmem>>, vector<1x128x160xf32>
    %52 = vector.shape_cast %51 : vector<1x128x160xf32> to vector<128x160xf32>
    %cst_43 = arith.constant dense<0.000000e+00> : vector<80x160xf32>
    %53 = tpu.matmul %50, %52, %cst_43 {dimension_numbers = #tpu.dot_dimension_numbers<[1], [0], [0], [1], [0, 0, 1, 1], [], []>} : vector<80x128xf32>, vector<128x160xf32>, vector<80x160xf32> -> vector<80x160xf32>
    %54 = arith.addf %48, %53 : vector<80x160xf32>
    %55 = vector.extract_strided_slice %43 {offsets = [2, 0, 0], sizes = [10, 8, 128], strides = [1, 1, 1]} : vector<14x8x128xf32> to vector<10x8x128xf32>
    %56 = vector.shape_cast %55 : vector<10x8x128xf32> to vector<80x128xf32>
    %c2_44 = arith.constant 2 : index
    %c0_45 = arith.constant 0 : index
    %c0_46 = arith.constant 0 : index
    %57 = vector.load %arg5[%c2_44, %c0_45, %c0_46] : memref<5x128x160xf32, #tpu.memory_space<vmem>>, vector<1x128x160xf32>
    %58 = vector.shape_cast %57 : vector<1x128x160xf32> to vector<128x160xf32>
    %cst_47 = arith.constant dense<0.000000e+00> : vector<80x160xf32>
    %59 = tpu.matmul %56, %58, %cst_47 {dimension_numbers = #tpu.dot_dimension_numbers<[1], [0], [0], [1], [0, 0, 1, 1], [], []>} : vector<80x128xf32>, vector<128x160xf32>, vector<80x160xf32> -> vector<80x160xf32>
    %60 = arith.addf %54, %59 : vector<80x160xf32>
    %61 = vector.extract_strided_slice %43 {offsets = [3, 0, 0], sizes = [10, 8, 128], strides = [1, 1, 1]} : vector<14x8x128xf32> to vector<10x8x128xf32>
    %62 = vector.shape_cast %61 : vector<10x8x128xf32> to vector<80x128xf32>
    %c3_48 = arith.constant 3 : index
    %c0_49 = arith.constant 0 : index
    %c0_50 = arith.constant 0 : index
    %63 = vector.load %arg5[%c3_48, %c0_49, %c0_50] : memref<5x128x160xf32, #tpu.memory_space<vmem>>, vector<1x128x160xf32>
    %64 = vector.shape_cast %63 : vector<1x128x160xf32> to vector<128x160xf32>
    %cst_51 = arith.constant dense<0.000000e+00> : vector<80x160xf32>
    %65 = tpu.matmul %62, %64, %cst_51 {dimension_numbers = #tpu.dot_dimension_numbers<[1], [0], [0], [1], [0, 0, 1, 1], [], []>} : vector<80x128xf32>, vector<128x160xf32>, vector<80x160xf32> -> vector<80x160xf32>
    %66 = arith.addf %60, %65 : vector<80x160xf32>
    %67 = vector.extract_strided_slice %43 {offsets = [4, 0, 0], sizes = [10, 8, 128], strides = [1, 1, 1]} : vector<14x8x128xf32> to vector<10x8x128xf32>
    %68 = vector.shape_cast %67 : vector<10x8x128xf32> to vector<80x128xf32>
    %c4_52 = arith.constant 4 : index
    %c0_53 = arith.constant 0 : index
    %c0_54 = arith.constant 0 : index
    %69 = vector.load %arg5[%c4_52, %c0_53, %c0_54] : memref<5x128x160xf32, #tpu.memory_space<vmem>>, vector<1x128x160xf32>
    %70 = vector.shape_cast %69 : vector<1x128x160xf32> to vector<128x160xf32>
    %cst_55 = arith.constant dense<0.000000e+00> : vector<80x160xf32>
    %71 = tpu.matmul %68, %70, %cst_55 {dimension_numbers = #tpu.dot_dimension_numbers<[1], [0], [0], [1], [0, 0, 1, 1], [], []>} : vector<80x128xf32>, vector<128x160xf32>, vector<80x160xf32> -> vector<80x160xf32>
    %72 = arith.addf %66, %71 : vector<80x160xf32>
    %c0_56 = arith.constant 0 : index
    %c0_57 = arith.constant 0 : index
    %73 = vector.load %arg6[%c0_56, %c0_57] : memref<1x160xf32, #tpu.memory_space<vmem>>, vector<1x160xf32>
    %74 = vector.broadcast %73 : vector<1x160xf32> to vector<80x160xf32>
    %75 = arith.addf %72, %74 : vector<80x160xf32>
    %cst_58 = arith.constant 0.000000e+00 : f32
    %76 = vector.broadcast %cst_58 : f32 to vector<80x160xf32>
    %77 = arith.maximumf %75, %76 : vector<80x160xf32>
    %78 = vector.shape_cast %77 : vector<80x160xf32> to vector<5x2x8x160xf32>
    %79 = vector.extract_strided_slice %78 {offsets = [0, 0, 0, 0], sizes = [5, 1, 8, 160], strides = [1, 1, 1, 1]} : vector<5x2x8x160xf32> to vector<5x1x8x160xf32>
    %80 = vector.shape_cast %79 : vector<5x1x8x160xf32> to vector<5x8x160xf32>
    %81 = vector.extract_strided_slice %78 {offsets = [0, 1, 0, 0], sizes = [5, 1, 8, 160], strides = [1, 1, 1, 1]} : vector<5x2x8x160xf32> to vector<5x1x8x160xf32>
    %82 = vector.shape_cast %81 : vector<5x1x8x160xf32> to vector<5x8x160xf32>
    %83 = arith.maximumf %80, %82 : vector<5x8x160xf32>
    %84 = vector.shape_cast %83 : vector<5x8x160xf32> to vector<40x160xf32>
    %c0_59 = arith.constant 0 : index
    %c0_60 = arith.constant 0 : index
    %85 = vector.load %arg7[%c0_59, %c0_60] : memref<160x128xf32, #tpu.memory_space<vmem>>, vector<160x128xf32>
    %cst_61 = arith.constant dense<0.000000e+00> : vector<40x128xf32>
    %86 = tpu.matmul %84, %85, %cst_61 {dimension_numbers = #tpu.dot_dimension_numbers<[1], [0], [0], [1], [0, 0, 1, 1], [], []>} : vector<40x160xf32>, vector<160x128xf32>, vector<40x128xf32> -> vector<40x128xf32>
    %c0_62 = arith.constant 0 : index
    %c0_63 = arith.constant 0 : index
    %87 = vector.load %arg8[%c0_62, %c0_63] : memref<160x128xf32, #tpu.memory_space<vmem>>, vector<160x128xf32>
    %cst_64 = arith.constant dense<0.000000e+00> : vector<40x128xf32>
    %88 = tpu.matmul %84, %87, %cst_64 {dimension_numbers = #tpu.dot_dimension_numbers<[1], [0], [0], [1], [0, 0, 1, 1], [], []>} : vector<40x160xf32>, vector<160x128xf32>, vector<40x128xf32> -> vector<40x128xf32>
    %89 = arith.maximumf %86, %88 : vector<40x128xf32>
    %90 = vector.shape_cast %89 : vector<40x128xf32> to vector<5x8x128xf32>
    %91 = vector.extract_strided_slice %90 {offsets = [0, 0, 0], sizes = [1, 8, 128], strides = [1, 1, 1]} : vector<5x8x128xf32> to vector<1x8x128xf32>
    %92 = vector.shape_cast %91 : vector<1x8x128xf32> to vector<8x128xf32>
    %c0_65 = arith.constant 0 : index
    %c0_66 = arith.constant 0 : index
    %c0_67 = arith.constant 0 : index
    %93 = vector.load %arg9[%c0_65, %c0_66, %c0_67] : memref<5x128x128xf32, #tpu.memory_space<vmem>>, vector<1x128x128xf32>
    %94 = vector.shape_cast %93 : vector<1x128x128xf32> to vector<128x128xf32>
    %cst_68 = arith.constant dense<0.000000e+00> : vector<8x128xf32>
    %95 = tpu.matmul %92, %94, %cst_68 {dimension_numbers = #tpu.dot_dimension_numbers<[1], [0], [0], [1], [0, 0, 1, 1], [], []>} : vector<8x128xf32>, vector<128x128xf32>, vector<8x128xf32> -> vector<8x128xf32>
    %96 = vector.extract_strided_slice %90 {offsets = [1, 0, 0], sizes = [1, 8, 128], strides = [1, 1, 1]} : vector<5x8x128xf32> to vector<1x8x128xf32>
    %97 = vector.shape_cast %96 : vector<1x8x128xf32> to vector<8x128xf32>
    %c1_69 = arith.constant 1 : index
    %c0_70 = arith.constant 0 : index
    %c0_71 = arith.constant 0 : index
    %98 = vector.load %arg9[%c1_69, %c0_70, %c0_71] : memref<5x128x128xf32, #tpu.memory_space<vmem>>, vector<1x128x128xf32>
    %99 = vector.shape_cast %98 : vector<1x128x128xf32> to vector<128x128xf32>
    %cst_72 = arith.constant dense<0.000000e+00> : vector<8x128xf32>
    %100 = tpu.matmul %97, %99, %cst_72 {dimension_numbers = #tpu.dot_dimension_numbers<[1], [0], [0], [1], [0, 0, 1, 1], [], []>} : vector<8x128xf32>, vector<128x128xf32>, vector<8x128xf32> -> vector<8x128xf32>
    %101 = arith.addf %95, %100 : vector<8x128xf32>
    %102 = vector.extract_strided_slice %90 {offsets = [2, 0, 0], sizes = [1, 8, 128], strides = [1, 1, 1]} : vector<5x8x128xf32> to vector<1x8x128xf32>
    %103 = vector.shape_cast %102 : vector<1x8x128xf32> to vector<8x128xf32>
    %c2_73 = arith.constant 2 : index
    %c0_74 = arith.constant 0 : index
    %c0_75 = arith.constant 0 : index
    %104 = vector.load %arg9[%c2_73, %c0_74, %c0_75] : memref<5x128x128xf32, #tpu.memory_space<vmem>>, vector<1x128x128xf32>
    %105 = vector.shape_cast %104 : vector<1x128x128xf32> to vector<128x128xf32>
    %cst_76 = arith.constant dense<0.000000e+00> : vector<8x128xf32>
    %106 = tpu.matmul %103, %105, %cst_76 {dimension_numbers = #tpu.dot_dimension_numbers<[1], [0], [0], [1], [0, 0, 1, 1], [], []>} : vector<8x128xf32>, vector<128x128xf32>, vector<8x128xf32> -> vector<8x128xf32>
    %107 = arith.addf %101, %106 : vector<8x128xf32>
    %108 = vector.extract_strided_slice %90 {offsets = [3, 0, 0], sizes = [1, 8, 128], strides = [1, 1, 1]} : vector<5x8x128xf32> to vector<1x8x128xf32>
    %109 = vector.shape_cast %108 : vector<1x8x128xf32> to vector<8x128xf32>
    %c3_77 = arith.constant 3 : index
    %c0_78 = arith.constant 0 : index
    %c0_79 = arith.constant 0 : index
    %110 = vector.load %arg9[%c3_77, %c0_78, %c0_79] : memref<5x128x128xf32, #tpu.memory_space<vmem>>, vector<1x128x128xf32>
    %111 = vector.shape_cast %110 : vector<1x128x128xf32> to vector<128x128xf32>
    %cst_80 = arith.constant dense<0.000000e+00> : vector<8x128xf32>
    %112 = tpu.matmul %109, %111, %cst_80 {dimension_numbers = #tpu.dot_dimension_numbers<[1], [0], [0], [1], [0, 0, 1, 1], [], []>} : vector<8x128xf32>, vector<128x128xf32>, vector<8x128xf32> -> vector<8x128xf32>
    %113 = arith.addf %107, %112 : vector<8x128xf32>
    %114 = vector.extract_strided_slice %90 {offsets = [4, 0, 0], sizes = [1, 8, 128], strides = [1, 1, 1]} : vector<5x8x128xf32> to vector<1x8x128xf32>
    %115 = vector.shape_cast %114 : vector<1x8x128xf32> to vector<8x128xf32>
    %c4_81 = arith.constant 4 : index
    %c0_82 = arith.constant 0 : index
    %c0_83 = arith.constant 0 : index
    %116 = vector.load %arg9[%c4_81, %c0_82, %c0_83] : memref<5x128x128xf32, #tpu.memory_space<vmem>>, vector<1x128x128xf32>
    %117 = vector.shape_cast %116 : vector<1x128x128xf32> to vector<128x128xf32>
    %cst_84 = arith.constant dense<0.000000e+00> : vector<8x128xf32>
    %118 = tpu.matmul %115, %117, %cst_84 {dimension_numbers = #tpu.dot_dimension_numbers<[1], [0], [0], [1], [0, 0, 1, 1], [], []>} : vector<8x128xf32>, vector<128x128xf32>, vector<8x128xf32> -> vector<8x128xf32>
    %119 = arith.addf %113, %118 : vector<8x128xf32>
    %c0_85 = arith.constant 0 : index
    %c0_86 = arith.constant 0 : index
    %120 = vector.load %arg10[%c0_85, %c0_86] : memref<1x128xf32, #tpu.memory_space<vmem>>, vector<1x128xf32>
    %121 = vector.broadcast %120 : vector<1x128xf32> to vector<8x128xf32>
    %122 = arith.addf %119, %121 : vector<8x128xf32>
    %cst_87 = arith.constant 0.000000e+00 : f32
    %123 = vector.broadcast %cst_87 : f32 to vector<8x128xf32>
    %124 = arith.maximumf %122, %123 : vector<8x128xf32>
    %c0_88 = arith.constant 0 : index
    %c0_89 = arith.constant 0 : index
    %125 = vector.load %arg11[%c0_88, %c0_89] : memref<128x128xf32, #tpu.memory_space<vmem>>, vector<128x128xf32>
    %cst_90 = arith.constant dense<0.000000e+00> : vector<8x128xf32>
    %126 = tpu.matmul %124, %125, %cst_90 {dimension_numbers = #tpu.dot_dimension_numbers<[1], [0], [0], [1], [0, 0, 1, 1], [], []>} : vector<8x128xf32>, vector<128x128xf32>, vector<8x128xf32> -> vector<8x128xf32>
    %c0_91 = arith.constant 0 : index
    %c0_92 = arith.constant 0 : index
    %127 = vector.load %arg12[%c0_91, %c0_92] : memref<1x128xf32, #tpu.memory_space<vmem>>, vector<1x128xf32>
    %128 = vector.broadcast %127 : vector<1x128xf32> to vector<8x128xf32>
    %129 = arith.addf %126, %128 : vector<8x128xf32>
    %cst_93 = arith.constant 0.000000e+00 : f32
    %130 = vector.broadcast %cst_93 : f32 to vector<8x128xf32>
    %131 = arith.maximumf %129, %130 : vector<8x128xf32>
    %c0_94 = arith.constant 0 : index
    %c0_95 = arith.constant 0 : index
    %132 = vector.load %arg13[%c0_94, %c0_95] : memref<128x128xf32, #tpu.memory_space<vmem>>, vector<128x128xf32>
    %cst_96 = arith.constant dense<0.000000e+00> : vector<8x128xf32>
    %133 = tpu.matmul %131, %132, %cst_96 {dimension_numbers = #tpu.dot_dimension_numbers<[1], [0], [0], [1], [0, 0, 1, 1], [], []>} : vector<8x128xf32>, vector<128x128xf32>, vector<8x128xf32> -> vector<8x128xf32>
    %c0_97 = arith.constant 0 : index
    %c0_98 = arith.constant 0 : index
    %134 = vector.load %arg14[%c0_97, %c0_98] : memref<1x128xf32, #tpu.memory_space<vmem>>, vector<1x128xf32>
    %135 = vector.broadcast %134 : vector<1x128xf32> to vector<8x128xf32>
    %136 = arith.addf %133, %135 : vector<8x128xf32>
    %c0_99 = arith.constant 0 : index
    %c0_100 = arith.constant 0 : index
    %137 = vector.load %arg15[%c0_99, %c0_100] : memref<8x128xf32, #tpu.memory_space<vmem>>, vector<8x128xf32>
    tpu.vector_store %arg15[%c0_99, %c0_100], %136 {strides = array<i32>} : memref<8x128xf32, #tpu.memory_space<vmem>>, vector<8x128xf32>,
    return
  }
  func.func @transform_0(%arg0: i32) -> (i32, i32, i32) {
    %c0_i32 = arith.constant 0 : i32
    %c0_i32_0 = arith.constant 0 : i32
    %c0_i32_1 = arith.constant 0 : i32
    return %c0_i32, %arg0, %c0_i32_0 : i32, i32, i32
  }
  func.func @transform_1(%arg0: i32) -> (i32, i32, i32) {
    %c0_i32 = arith.constant 0 : i32
    %c0_i32_0 = arith.constant 0 : i32
    %c0_i32_1 = arith.constant 0 : i32
    %c0_i32_2 = arith.constant 0 : i32
    return %c0_i32, %c0_i32_0, %c0_i32_1 : i32, i32, i32
  }
  func.func @transform_2(%arg0: i32) -> (i32, i32) {
    %c0_i32 = arith.constant 0 : i32
    %c0_i32_0 = arith.constant 0 : i32
    %c0_i32_1 = arith.constant 0 : i32
    return %c0_i32, %c0_i32_0 : i32, i32
  }
  func.func @transform_3(%arg0: i32) -> (i32, i32) {
    %c0_i32 = arith.constant 0 : i32
    %c0_i32_0 = arith.constant 0 : i32
    %c0_i32_1 = arith.constant 0 : i32
    return %c0_i32, %c0_i32_0 : i32, i32
  }
  func.func @transform_4(%arg0: i32) -> (i32, i32, i32) {
    %c0_i32 = arith.constant 0 : i32
    %c0_i32_0 = arith.constant 0 : i32
    %c0_i32_1 = arith.constant 0 : i32
    %c0_i32_2 = arith.constant 0 : i32
    return %c0_i32, %c0_i32_0, %c0_i32_1 : i32, i32, i32
  }
  func.func @transform_5(%arg0: i32) -> (i32, i32) {
    %c0_i32 = arith.constant 0 : i32
    %c0_i32_0 = arith.constant 0 : i32
    %c0_i32_1 = arith.constant 0 : i32
    return %c0_i32, %c0_i32_0 : i32, i32
  }
  func.func @transform_6(%arg0: i32) -> (i32, i32) {
    %c0_i32 = arith.constant 0 : i32
    %c0_i32_0 = arith.constant 0 : i32
    %c0_i32_1 = arith.constant 0 : i32
    return %c0_i32, %c0_i32_0 : i32, i32
  }
  func.func @transform_7(%arg0: i32) -> (i32, i32) {
    %c0_i32 = arith.constant 0 : i32
    %c0_i32_0 = arith.constant 0 : i32
    %c0_i32_1 = arith.constant 0 : i32
    return %c0_i32, %c0_i32_0 : i32, i32
  }
  func.func @transform_8(%arg0: i32) -> (i32, i32, i32) {
    %c0_i32 = arith.constant 0 : i32
    %c0_i32_0 = arith.constant 0 : i32
    %c0_i32_1 = arith.constant 0 : i32
    %c0_i32_2 = arith.constant 0 : i32
    return %c0_i32, %c0_i32_0, %c0_i32_1 : i32, i32, i32
  }
  func.func @transform_9(%arg0: i32) -> (i32, i32) {
    %c0_i32 = arith.constant 0 : i32
    %c0_i32_0 = arith.constant 0 : i32
    %c0_i32_1 = arith.constant 0 : i32
    return %c0_i32, %c0_i32_0 : i32, i32
  }
  func.func @transform_10(%arg0: i32) -> (i32, i32) {
    %c0_i32 = arith.constant 0 : i32
    %c0_i32_0 = arith.constant 0 : i32
    %c0_i32_1 = arith.constant 0 : i32
    return %c0_i32, %c0_i32_0 : i32, i32
  }
  func.func @transform_11(%arg0: i32) -> (i32, i32) {
    %c0_i32 = arith.constant 0 : i32
    %c0_i32_0 = arith.constant 0 : i32
    %c0_i32_1 = arith.constant 0 : i32
    return %c0_i32, %c0_i32_0 : i32, i32
  }
  func.func @transform_12(%arg0: i32) -> (i32, i32) {
    %c0_i32 = arith.constant 0 : i32
    %c0_i32_0 = arith.constant 0 : i32
    %c0_i32_1 = arith.constant 0 : i32
    return %c0_i32, %c0_i32_0 : i32, i32
  }
  func.func @transform_13(%arg0: i32) -> (i32, i32) {
    %c0_i32 = arith.constant 0 : i32
    %c0_i32_0 = arith.constant 0 : i32
    %c0_i32_1 = arith.constant 0 : i32
    return %c0_i32, %c0_i32_0 : i32, i32
  }
  func.func @transform_14(%arg0: i32) -> (i32, i32) {
    %c0_i32 = arith.constant 0 : i32
    %c0_i32_0 = arith.constant 0 : i32
    return %arg0, %c0_i32 : i32, i32
  }
}

</mosaic_0001>

<llo_original>
// kernel: net_forward.1
$region0: #{net_forward.1}
  #allocation0 [shape = 'u32[]', space=smem, size = 0x4, offset = 0x4, fixed_abs, tag = 'smem constant byte address 0x4 - core index']
  #allocation1 [shape = 'u32[144,128]{1,0:T(1,128)}', space=vmem, size = 0x12000, scoped, tag = 'internal scratch']
  %s0 = inlined_call_operand.vmem [shape: f32[32,8,128], index: 0, kind: input, shape index: {}]
  %s1 = inlined_call_operand.vmem [shape: f32[5,128,168], index: 1, kind: input, shape index: {}]
  %s2 = inlined_call_operand.vmem [shape: f32[168,128], index: 2, kind: input, shape index: {}]
  %s3 = inlined_call_operand.vmem [shape: f32[168,128], index: 3, kind: input, shape index: {}]
  %s4 = inlined_call_operand.vmem [shape: f32[5,128,160], index: 4, kind: input, shape index: {}]
  %s5 = inlined_call_operand.vmem [shape: f32[1,160], index: 5, kind: input, shape index: {}]
  %s6 = inlined_call_operand.vmem [shape: f32[160,128], index: 6, kind: input, shape index: {}]
  %s7 = inlined_call_operand.vmem [shape: f32[160,128], index: 7, kind: input, shape index: {}]
  %s8 = inlined_call_operand.vmem [shape: f32[5,128,128], index: 8, kind: input, shape index: {}]
  %s9 = inlined_call_operand.vmem [shape: f32[1,128], index: 9, kind: input, shape index: {}]
  %s10 = inlined_call_operand.vmem [shape: f32[128,128], index: 10, kind: input, shape index: {}]
  %s11 = inlined_call_operand.vmem [shape: f32[1,128], index: 11, kind: input, shape index: {}]
  %s12 = inlined_call_operand.vmem [shape: f32[128,128], index: 12, kind: input, shape index: {}]
  %s13 = inlined_call_operand.vmem [shape: f32[1,128], index: 13, kind: input, shape index: {}]
  %s14 = inlined_call_operand.vmem [shape: f32[8,128], index: 14, kind: output, shape index: {}]
  %s15 = sld [smem:[#allocation0]]
  $region66: #{net_forward.1} parent=0
    _
  %s17 = ssub.s32 1, %s15
  %s18 = scalar_select 0, %s17, %s15
  // Predicated region
  $region2: #{net_forward.1} parent=0 // pred_check
    _
  $region3: #{net_forward.1} parent=0 // pred_check_branch
    %20 = sbr.rel (0) target = $region5
  $region4: #{net_forward.1} parent=0 // pred_region
    _
  $region5: #{net_forward.1} parent=0 // pred_fallthru
    _
  // Predicated region
  $region6: #{net_forward.1} parent=0 // pred_check
    _
  $region7: #{net_forward.1} parent=0 // pred_check_branch
    %22 = sbr.rel (0) target = $region9
  $region8: #{net_forward.1} parent=0 // pred_region
    _
  $region9: #{net_forward.1} parent=0 // pred_fallthru
    _
  // Predicated region
  $region10: #{net_forward.1} parent=0 // pred_check
    _
  $region11: #{net_forward.1} parent=0 // pred_check_branch
    %24 = sbr.rel (0) target = $region13
  $region12: #{net_forward.1} parent=0 // pred_region
    _
  $region13: #{net_forward.1} parent=0 // pred_fallthru
    _
  // Predicated region
  $region14: #{net_forward.1} parent=0 // pred_check
    _
  $region15: #{net_forward.1} parent=0 // pred_check_branch
    %26 = sbr.rel (0) target = $region17
  $region16: #{net_forward.1} parent=0 // pred_region
    _
  $region17: #{net_forward.1} parent=0 // pred_fallthru
    _
  // Predicated region
  $region18: #{net_forward.1} parent=0 // pred_check
    _
  $region19: #{net_forward.1} parent=0 // pred_check_branch
    %28 = sbr.rel (0) target = $region21
  $region20: #{net_forward.1} parent=0 // pred_region
    _
  $region21: #{net_forward.1} parent=0 // pred_fallthru
    _
  // Predicated region
  $region22: #{net_forward.1} parent=0 // pred_check
    _
  $region23: #{net_forward.1} parent=0 // pred_check_branch
    %30 = sbr.rel (0) target = $region25
  $region24: #{net_forward.1} parent=0 // pred_region
    _
  $region25: #{net_forward.1} parent=0 // pred_fallthru
    _
  // Predicated region
  $region26: #{net_forward.1} parent=0 // pred_check
    _
  $region27: #{net_forward.1} parent=0 // pred_check_branch
    %32 = sbr.rel (0) target = $region29
  $region28: #{net_forward.1} parent=0 // pred_region
    _
  $region29: #{net_forward.1} parent=0 // pred_fallthru
    _
  // Predicated region
  $region30: #{net_forward.1} parent=0 // pred_check
    _
  $region31: #{net_forward.1} parent=0 // pred_check_branch
    %34 = sbr.rel (0) target = $region33
  $region32: #{net_forward.1} parent=0 // pred_region
    _
  $region33: #{net_forward.1} parent=0 // pred_fallthru
    _
  // Predicated region
  $region34: #{net_forward.1} parent=0 // pred_check
    _
  $region35: #{net_forward.1} parent=0 // pred_check_branch
    %36 = sbr.rel (0) target = $region37
  $region36: #{net_forward.1} parent=0 // pred_region
    _
  $region37: #{net_forward.1} parent=0 // pred_fallthru
    _
  // Predicated region
  $region38: #{net_forward.1} parent=0 // pred_check
    _
  $region39: #{net_forward.1} parent=0 // pred_check_branch
    %38 = sbr.rel (0) target = $region41
  $region40: #{net_forward.1} parent=0 // pred_region
    _
  $region41: #{net_forward.1} parent=0 // pred_fallthru
    _
  // Predicated region
  $region42: #{net_forward.1} parent=0 // pred_check
    _
  $region43: #{net_forward.1} parent=0 // pred_check_branch
    %40 = sbr.rel (0) target = $region45
  $region44: #{net_forward.1} parent=0 // pred_region
    _
  $region45: #{net_forward.1} parent=0 // pred_fallthru
    _
  // Predicated region
  $region46: #{net_forward.1} parent=0 // pred_check
    _
  $region47: #{net_forward.1} parent=0 // pred_check_branch
    %42 = sbr.rel (0) target = $region49
  $region48: #{net_forward.1} parent=0 // pred_region
    _
  $region49: #{net_forward.1} parent=0 // pred_fallthru
    _
  // Predicated region
  $region50: #{net_forward.1} parent=0 // pred_check
    _
  $region51: #{net_forward.1} parent=0 // pred_check_branch
    %44 = sbr.rel (0) target = $region53
  $region52: #{net_forward.1} parent=0 // pred_region
    _
  $region53: #{net_forward.1} parent=0 // pred_fallthru
    _
  // Predicated region
  $region54: #{net_forward.1} parent=0 // pred_check
    _
  $region55: #{net_forward.1} parent=0 // pred_check_branch
    %46 = sbr.rel (0) target = $region57
  $region56: #{net_forward.1} parent=0 // pred_region
    _
  $region57: #{net_forward.1} parent=0 // pred_fallthru
    _
  %v47 = vld [vmem:[%s0] sm:$0xff]
  %v48 = vld [vmem:[%s0 + $0x8] sm:$0xff]
  %v49 = vld [vmem:[%s0 + $0x10] sm:$0xff]
  %v50 = vld [vmem:[%s0 + $0x18] sm:$0xff]
  %v51 = vld [vmem:[%s0 + $0x20] sm:$0xff]
  %v52 = vld [vmem:[%s0 + $0x28] sm:$0xff]
  %v53 = vld [vmem:[%s0 + $0x30] sm:$0xff]
  %v54 = vld [vmem:[%s0 + $0x38] sm:$0xff]
  %v55 = vld [vmem:[%s0 + $0x40] sm:$0xff]
  %v56 = vld [vmem:[%s0 + $0x48] sm:$0xff]
  %v57 = vld [vmem:[%s0 + $0x50] sm:$0xff]
  %v58 = vld [vmem:[%s0 + $0x58] sm:$0xff]
  %v59 = vld [vmem:[%s0 + $0x60] sm:$0xff]
  %v60 = vld [vmem:[%s0 + $0x68] sm:$0xff]
  %v61 = vld [vmem:[%s0 + $0x70] sm:$0xff]
  %v62 = vld [vmem:[%s0 + $0x78] sm:$0xff]
  %v63 = vld [vmem:[%s0 + $0x80] sm:$0xff]
  %v64 = vld [vmem:[%s0 + $0x88] sm:$0xff]
  %v65 = vld [vmem:[%s0 + $0x90] sm:$0xff]
  %v66 = vld [vmem:[%s0 + $0x98] sm:$0xff]
  %v67 = vld [vmem:[%s0 + $0xa0] sm:$0xff]
  %v68 = vld [vmem:[%s0 + $0xa8] sm:$0xff]
  %v69 = vld [vmem:[%s0 + $0xb0] sm:$0xff]
  %v70 = vld [vmem:[%s0 + $0xb8] sm:$0xff]
  %v71 = vld [vmem:[%s0 + $0xc0] sm:$0xff]
  %v72 = vld [vmem:[%s0 + $0xc8] sm:$0xff]
  %v73 = vld [vmem:[%s0 + $0xd0] sm:$0xff]
  %v74 = vld [vmem:[%s0 + $0xd8] sm:$0xff]
  %v75 = vld [vmem:[%s1] sm:$0xff]
  %v76 = vld [vmem:[%s1 + $0x8] sm:$0xff]
  %v77 = vld [vmem:[%s1 + $0x10] sm:$0xff]
  %v78 = vld [vmem:[%s1 + $0x18] sm:$0xff]
  %v79 = vld [vmem:[%s1 + $0x20] sm:$0xff]
  %v80 = vld [vmem:[%s1 + $0x28] sm:$0xff]
  %v81 = vld [vmem:[%s1 + $0x30] sm:$0xff]
  %v82 = vld [vmem:[%s1 + $0x38] sm:$0xff]
  %v83 = vld [vmem:[%s1 + $0x40] sm:$0xff]
  %v84 = vld [vmem:[%s1 + $0x48] sm:$0xff]
  %v85 = vld [vmem:[%s1 + $0x50] sm:$0xff]
  %v86 = vld [vmem:[%s1 + $0x58] sm:$0xff]
  %v87 = vld [vmem:[%s1 + $0x60] sm:$0xff]
  %v88 = vld [vmem:[%s1 + $0x68] sm:$0xff]
  %v89 = vld [vmem:[%s1 + $0x70] sm:$0xff]
  %v90 = vld [vmem:[%s1 + $0x78] sm:$0xff]
  %v91 = vld [vmem:[%s1 + $0x80] sm:$0xff]
  %v92 = vld [vmem:[%s1 + $0x88] sm:$0xff]
  %v93 = vld [vmem:[%s1 + $0x90] sm:$0xff]
  %v94 = vld [vmem:[%s1 + $0x98] sm:$0xff]
  %v95 = vld [vmem:[%s1 + $0xa0] sm:$0xff]
  %v96 = vld [vmem:[%s1 + $0xa8] sm:$0xff]
  %v97 = vld [vmem:[%s1 + $0xb0] sm:$0xff]
  %v98 = vld [vmem:[%s1 + $0xb8] sm:$0xff]
  %v99 = vld [vmem:[%s1 + $0xc0] sm:$0xff]
  %v100 = vld [vmem:[%s1 + $0xc8] sm:$0xff]
  %v101 = vld [vmem:[%s1 + $0xd0] sm:$0xff]
  %v102 = vld [vmem:[%s1 + $0xd8] sm:$0xff]
  %v103 = vld [vmem:[%s1 + $0xe0] sm:$0xff]
  %v104 = vld [vmem:[%s1 + $0xe8] sm:$0xff]
  %v105 = vld [vmem:[%s1 + $0xf0] sm:$0xff]
  %v106 = vld [vmem:[%s1 + $0xf8] sm:$0xff]
  %s107 = scalar_lea.vmem %s0, 8
  %v108 = vld [vmem:[%s107] sm:$0xff]
  %v109 = vld [vmem:[%s107 + $0x8] sm:$0xff]
  %v110 = vld [vmem:[%s107 + $0x10] sm:$0xff]
  %v111 = vld [vmem:[%s107 + $0x18] sm:$0xff]
  %v112 = vld [vmem:[%s107 + $0x20] sm:$0xff]
  %v113 = vld [vmem:[%s107 + $0x28] sm:$0xff]
  %v114 = vld [vmem:[%s107 + $0x30] sm:$0xff]
  %v115 = vld [vmem:[%s107 + $0x38] sm:$0xff]
  %v116 = vld [vmem:[%s107 + $0x40] sm:$0xff]
  %v117 = vld [vmem:[%s107 + $0x48] sm:$0xff]
  %v118 = vld [vmem:[%s107 + $0x50] sm:$0xff]
  %v119 = vld [vmem:[%s107 + $0x58] sm:$0xff]
  %v120 = vld [vmem:[%s107 + $0x60] sm:$0xff]
  %v121 = vld [vmem:[%s107 + $0x68] sm:$0xff]
  %v122 = vld [vmem:[%s107 + $0x70] sm:$0xff]
  %v123 = vld [vmem:[%s107 + $0x78] sm:$0xff]
  %v124 = vld [vmem:[%s107 + $0x80] sm:$0xff]
  %v125 = vld [vmem:[%s107 + $0x88] sm:$0xff]
  %v126 = vld [vmem:[%s107 + $0x90] sm:$0xff]
  %v127 = vld [vmem:[%s107 + $0x98] sm:$0xff]
  %v128 = vld [vmem:[%s107 + $0xa0] sm:$0xff]
  %v129 = vld [vmem:[%s107 + $0xa8] sm:$0xff]
  %v130 = vld [vmem:[%s107 + $0xb0] sm:$0xff]
  %v131 = vld [vmem:[%s107 + $0xb8] sm:$0xff]
  %v132 = vld [vmem:[%s107 + $0xc0] sm:$0xff]
  %v133 = vld [vmem:[%s107 + $0xc8] sm:$0xff]
  %v134 = vld [vmem:[%s107 + $0xd0] sm:$0xff]
  %v135 = vld [vmem:[%s107 + $0xd8] sm:$0xff]
  %s136 = scalar_lea.vmem %s1, 256
  %v137 = vld [vmem:[%s136] sm:$0xff]
  %v138 = vld [vmem:[%s136 + $0x8] sm:$0xff]
  %v139 = vld [vmem:[%s136 + $0x10] sm:$0xff]
  %v140 = vld [vmem:[%s136 + $0x18] sm:$0xff]
  %v141 = vld [vmem:[%s136 + $0x20] sm:$0xff]
  %v142 = vld [vmem:[%s136 + $0x28] sm:$0xff]
  %v143 = vld [vmem:[%s136 + $0x30] sm:$0xff]
  %v144 = vld [vmem:[%s136 + $0x38] sm:$0xff]
  %v145 = vld [vmem:[%s136 + $0x40] sm:$0xff]
  %v146 = vld [vmem:[%s136 + $0x48] sm:$0xff]
  %v147 = vld [vmem:[%s136 + $0x50] sm:$0xff]
  %v148 = vld [vmem:[%s136 + $0x58] sm:$0xff]
  %v149 = vld [vmem:[%s136 + $0x60] sm:$0xff]
  %v150 = vld [vmem:[%s136 + $0x68] sm:$0xff]
  %v151 = vld [vmem:[%s136 + $0x70] sm:$0xff]
  %v152 = vld [vmem:[%s136 + $0x78] sm:$0xff]
  %v153 = vld [vmem:[%s136 + $0x80] sm:$0xff]
  %v154 = vld [vmem:[%s136 + $0x88] sm:$0xff]
  %v155 = vld [vmem:[%s136 + $0x90] sm:$0xff]
  %v156 = vld [vmem:[%s136 + $0x98] sm:$0xff]
  %v157 = vld [vmem:[%s136 + $0xa0] sm:$0xff]
  %v158 = vld [vmem:[%s136 + $0xa8] sm:$0xff]
  %v159 = vld [vmem:[%s136 + $0xb0] sm:$0xff]
  %v160 = vld [vmem:[%s136 + $0xb8] sm:$0xff]
  %v161 = vld [vmem:[%s136 + $0xc0] sm:$0xff]
  %v162 = vld [vmem:[%s136 + $0xc8] sm:$0xff]
  %v163 = vld [vmem:[%s136 + $0xd0] sm:$0xff]
  %v164 = vld [vmem:[%s136 + $0xd8] sm:$0xff]
  %v165 = vld [vmem:[%s136 + $0xe0] sm:$0xff]
  %v166 = vld [vmem:[%s136 + $0xe8] sm:$0xff]
  %v167 = vld [vmem:[%s136 + $0xf0] sm:$0xff]
  %v168 = vld [vmem:[%s136 + $0xf8] sm:$0xff]
  %169 = vmatprep.subr.mxu0 %v138
  %170 = vmatpush1.msra.mxu0 %v137
  %171 = vmatprep.subr.mxu0 %v140
  %172 = vmatpush1.msra.mxu0 %v139
  %173 = vmatprep.subr.mxu0 %v142
  %174 = vmatpush1.msra.mxu0 %v141
  %175 = vmatprep.subr.mxu0 %v144
  %176 = vmatpush1.msra.mxu0 %v143
  %177 = vmatprep.subr.mxu0 %v146
  %178 = vmatpush1.msra.mxu0 %v145
  %179 = vmatprep.subr.mxu0 %v148
  %180 = vmatpush1.msra.mxu0 %v147
  %181 = vmatprep.subr.mxu0 %v150
  %182 = vmatpush1.msra.mxu0 %v149
  %183 = vmatprep.subr.mxu0 %v152
  %184 = vmatpush1.msra.mxu0 %v151
  %185 = vmatprep.subr.mxu0 %v154
  %186 = vmatpush1.msra.mxu0 %v153
  %187 = vmatprep.subr.mxu0 %v156
  %188 = vmatpush1.msra.mxu0 %v155
  %189 = vmatprep.subr.mxu0 %v158
  %190 = vmatpush1.msra.mxu0 %v157
  %191 = vmatprep.subr.mxu0 %v160
  %192 = vmatpush1.msra.mxu0 %v159
  %193 = vmatprep.subr.mxu0 %v162
  %194 = vmatpush1.msra.mxu0 %v161
  %195 = vmatprep.subr.mxu0 %v164
  %196 = vmatpush1.msra.mxu0 %v163
  %197 = vmatprep.subr.mxu0 %v166
  %198 = vmatpush1.msra.mxu0 %v165
  %199 = vmatprep.subr.mxu0 %v168
  %200 = vmatpush1.msra.mxu0 %v167
  %201 = vmatprep.subr.mxu0 0.0
  %202 = vmatpush1.msra.mxu0 0.0
  %203 = vmatprep.subr.mxu0 0.0
  %204 = vmatpush1.msra.mxu0 0.0
  %205 = vmatprep.subr.mxu0 0.0
  %206 = vmatpush1.msra.mxu0 0.0
  %207 = vmatprep.subr.mxu0 0.0
  %208 = vmatpush1.msra.mxu0 0.0
  %209 = vmatprep.subr.mxu0 0.0
  %210 = vmatpush1.msra.mxu0 0.0
  %211 = vmatprep.subr.mxu0 0.0
  %212 = vmatpush1.msra.mxu0 0.0
  %213 = vmatprep.subr.mxu0 0.0
  %214 = vmatpush1.msra.mxu0 0.0
  %215 = vmatprep.subr.mxu0 0.0
  %216 = vmatpush1.msra.mxu0 0.0
  %217 = vmatprep.subr.mxu0 0.0
  %218 = vmatpush1.msra.mxu0 0.0
  %219 = vmatprep.subr.mxu0 0.0
  %220 = vmatpush1.msra.mxu0 0.0
  %221 = vmatprep.subr.mxu0 0.0
  %222 = vmatpush1.msra.mxu0 0.0
  %223 = vmatprep.subr.mxu0 0.0
  %224 = vmatpush1.msra.mxu0 0.0
  %225 = vmatprep.subr.mxu0 0.0
  %226 = vmatpush1.msra.mxu0 0.0
  %227 = vmatprep.subr.mxu0 0.0
  %228 = vmatpush1.msra.mxu0 0.0
  %229 = vmatprep.subr.mxu0 0.0
  %230 = vmatpush1.msra.mxu0 0.0
  %231 = vmatprep.subr.mxu0 0.0
  %232 = vmatpush1.msra.mxu0 0.0
  %233 = vmatprep.mubr.f32.mxu0 0.0
  %234 = vmatmul.mubr.f32.gmra.mrb[0].mxu0 %v108
  %v235 = vpop.f32.mrb[0].mxu0
  %v236 = vadd.f32 0.0, %v235
  %v237 = vpop.f32.mrb[0].mxu0
  %v238 = vadd.f32 0.0, %v237
  %239 = vmatprep.mubr.f32.mxu0 0.0
  %240 = vmatmul.mubr.f32.gmra.mrb[0].mxu0 %v109
  %v241 = vpop.f32.mrb[0].mxu0
  %v242 = vadd.f32 0.0, %v241
  %v243 = vpop.f32.mrb[0].mxu0
  %v244 = vadd.f32 0.0, %v243
  %245 = vmatprep.mubr.f32.mxu0 0.0
  %246 = vmatmul.mubr.f32.gmra.mrb[0].mxu0 %v110
  %v247 = vpop.f32.mrb[0].mxu0
  %v248 = vadd.f32 0.0, %v247
  %v249 = vpop.f32.mrb[0].mxu0
  %v250 = vadd.f32 0.0, %v249
  %251 = vmatprep.mubr.f32.mxu0 0.0
  %252 = vmatmul.mubr.f32.gmra.mrb[0].mxu0 %v111
  %v253 = vpop.f32.mrb[0].mxu0
  %v254 = vadd.f32 0.0, %v253
  %v255 = vpop.f32.mrb[0].mxu0
  %v256 = vadd.f32 0.0, %v255
  %257 = vmatprep.mubr.f32.mxu0 0.0
  %258 = vmatmul.mubr.f32.gmra.mrb[0].mxu0 %v112
  %v259 = vpop.f32.mrb[0].mxu0
  %v260 = vadd.f32 0.0, %v259
  %v261 = vpop.f32.mrb[0].mxu0
  %v262 = vadd.f32 0.0, %v261
  %263 = vmatprep.mubr.f32.mxu0 0.0
  %264 = vmatmul.mubr.f32.gmra.mrb[0].mxu0 %v113
  %v265 = vpop.f32.mrb[0].mxu0
  %v266 = vadd.f32 0.0, %v265
  %v267 = vpop.f32.mrb[0].mxu0
  %v268 = vadd.f32 0.0, %v267
  %269 = vmatprep.mubr.f32.mxu0 0.0
  %270 = vmatmul.mubr.f32.gmra.mrb[0].mxu0 %v114
  %v271 = vpop.f32.mrb[0].mxu0
  %v272 = vadd.f32 0.0, %v271
  %v273 = vpop.f32.mrb[0].mxu0
  %v274 = vadd.f32 0.0, %v273
  %275 = vmatprep.mubr.f32.mxu0 0.0
  %276 = vmatmul.mubr.f32.gmra.mrb[0].mxu0 %v115
  %v277 = vpop.f32.mrb[0].mxu0
  %v278 = vadd.f32 0.0, %v277
  %v279 = vpop.f32.mrb[0].mxu0
  %v280 = vadd.f32 0.0, %v279
  %281 = vmatprep.mubr.f32.mxu0 0.0
  %282 = vmatmul.mubr.f32.gmra.mrb[0].mxu0 %v116
  %v283 = vpop.f32.mrb[0].mxu0
  %v284 = vadd.f32 0.0, %v283
  %v285 = vpop.f32.mrb[0].mxu0
  %v286 = vadd.f32 0.0, %v285
  %287 = vmatprep.mubr.f32.mxu0 0.0
  %288 = vmatmul.mubr.f32.gmra.mrb[0].mxu0 %v117
  %v289 = vpop.f32.mrb[0].mxu0
  %v290 = vadd.f32 0.0, %v289
  %v291 = vpop.f32.mrb[0].mxu0
  %v292 = vadd.f32 0.0, %v291
  %293 = vmatprep.mubr.f32.mxu0 0.0
  %294 = vmatmul.mubr.f32.gmra.mrb[0].mxu0 %v118
  %v295 = vpop.f32.mrb[0].mxu0
  %v296 = vadd.f32 0.0, %v295
  %v297 = vpop.f32.mrb[0].mxu0
  %v298 = vadd.f32 0.0, %v297
  %299 = vmatprep.mubr.f32.mxu0 0.0
  %300 = vmatmul.mubr.f32.gmra.mrb[0].mxu0 %v119
  %v301 = vpop.f32.mrb[0].mxu0
  %v302 = vadd.f32 0.0, %v301
  %v303 = vpop.f32.mrb[0].mxu0
  %v304 = vadd.f32 0.0, %v303
  %305 = vmatprep.mubr.f32.mxu0 0.0
  %306 = vmatmul.mubr.f32.gmra.mrb[0].mxu0 %v120
  %v307 = vpop.f32.mrb[0].mxu0
  %v308 = vadd.f32 0.0, %v307
  %v309 = vpop.f32.mrb[0].mxu0
  %v310 = vadd.f32 0.0, %v309
  %311 = vmatprep.mubr.f32.mxu0 0.0
  %312 = vmatmul.mubr.f32.gmra.mrb[0].mxu0 %v121
  %v313 = vpop.f32.mrb[0].mxu0
  %v314 = vadd.f32 0.0, %v313
  %v315 = vpop.f32.mrb[0].mxu0
  %v316 = vadd.f32 0.0, %v315
  %317 = vmatprep.mubr.f32.mxu0 0.0
  %318 = vmatmul.mubr.f32.gmra.mrb[0].mxu0 %v122
  %v319 = vpop.f32.mrb[0].mxu0
  %v320 = vadd.f32 0.0, %v319
  %v321 = vpop.f32.mrb[0].mxu0
  %v322 = vadd.f32 0.0, %v321
  %323 = vmatprep.mubr.f32.mxu0 0.0
  %324 = vmatmul.mubr.f32.gmra.mrb[0].mxu0 %v123
  %v325 = vpop.f32.mrb[0].mxu0
  %v326 = vadd.f32 0.0, %v325
  %v327 = vpop.f32.mrb[0].mxu0
  %v328 = vadd.f32 0.0, %v327
  %329 = vmatprep.mubr.f32.mxu0 0.0
  %330 = vmatmul.mubr.f32.gmra.mrb[0].mxu0 %v124
  %v331 = vpop.f32.mrb[0].mxu0
  %v332 = vadd.f32 0.0, %v331
  %v333 = vpop.f32.mrb[0].mxu0
  %v334 = vadd.f32 0.0, %v333
  %335 = vmatprep.mubr.f32.mxu0 0.0
  %336 = vmatmul.mubr.f32.gmra.mrb[0].mxu0 %v125
  %v337 = vpop.f32.mrb[0].mxu0
  %v338 = vadd.f32 0.0, %v337
  %v339 = vpop.f32.mrb[0].mxu0
  %v340 = vadd.f32 0.0, %v339
  %341 = vmatprep.mubr.f32.mxu0 0.0
  %342 = vmatmul.mubr.f32.gmra.mrb[0].mxu0 %v126
  %v343 = vpop.f32.mrb[0].mxu0
  %v344 = vadd.f32 0.0, %v343
  %v345 = vpop.f32.mrb[0].mxu0
  %v346 = vadd.f32 0.0, %v345
  %347 = vmatprep.mubr.f32.mxu0 0.0
  %348 = vmatmul.mubr.f32.gmra.mrb[0].mxu0 %v127
  %v349 = vpop.f32.mrb[0].mxu0
  %v350 = vadd.f32 0.0, %v349
  %v351 = vpop.f32.mrb[0].mxu0
  %v352 = vadd.f32 0.0, %v351
  %353 = vmatprep.mubr.f32.mxu0 0.0
  %354 = vmatmul.mubr.f32.gmra.mrb[0].mxu0 %v128
  %v355 = vpop.f32.mrb[0].mxu0
  %v356 = vadd.f32 0.0, %v355
  %v357 = vpop.f32.mrb[0].mxu0
  %v358 = vadd.f32 0.0, %v357
  %359 = vmatprep.mubr.f32.mxu0 0.0
  %360 = vmatmul.mubr.f32.gmra.mrb[0].mxu0 %v129
  %v361 = vpop.f32.mrb[0].mxu0
  %v362 = vadd.f32 0.0, %v361
  %v363 = vpop.f32.mrb[0].mxu0
  %v364 = vadd.f32 0.0, %v363
  %365 = vmatprep.mubr.f32.mxu0 0.0
  %366 = vmatmul.mubr.f32.gmra.mrb[0].mxu0 %v130
  %v367 = vpop.f32.mrb[0].mxu0
  %v368 = vadd.f32 0.0, %v367
  %v369 = vpop.f32.mrb[0].mxu0
  %v370 = vadd.f32 0.0, %v369
  %371 = vmatprep.mubr.f32.mxu0 0.0
  %372 = vmatmul.mubr.f32.gmra.mrb[0].mxu0 %v131
  %v373 = vpop.f32.mrb[0].mxu0
  %v374 = vadd.f32 0.0, %v373
  %v375 = vpop.f32.mrb[0].mxu0
  %v376 = vadd.f32 0.0, %v375
  %377 = vmatprep.mubr.f32.mxu0 0.0
  %378 = vmatmul.mubr.f32.gmra.mrb[0].mxu0 %v132
  %v379 = vpop.f32.mrb[0].mxu0
  %v380 = vadd.f32 0.0, %v379
  %v381 = vpop.f32.mrb[0].mxu0
  %v382 = vadd.f32 0.0, %v381
  %383 = vmatprep.mubr.f32.mxu0 0.0
  %384 = vmatmul.mubr.f32.gmra.mrb[0].mxu0 %v133
  %v385 = vpop.f32.mrb[0].mxu0
  %v386 = vadd.f32 0.0, %v385
  %v387 = vpop.f32.mrb[0].mxu0
  %v388 = vadd.f32 0.0, %v387
  %389 = vmatprep.mubr.f32.mxu0 0.0
  %390 = vmatmul.mubr.f32.gmra.mrb[0].mxu0 %v134
  %v391 = vpop.f32.mrb[0].mxu0
  %v392 = vadd.f32 0.0, %v391
  %v393 = vpop.f32.mrb[0].mxu0
  %v394 = vadd.f32 0.0, %v393
  %395 = vmatprep.mubr.f32.mxu0 0.0
  %396 = vmatmul.mubr.f32.gmra.mrb[0].mxu0 %v135
  %v397 = vpop.f32.mrb[0].mxu0
  %v398 = vadd.f32 0.0, %v397
  %v399 = vpop.f32.mrb[0].mxu0
  %v400 = vadd.f32 0.0, %v399
  %401 = vdwg.mxu0
  %402 = vmatprep.subr.mxu0 %v76
  %403 = vmatpush1.msra.mxu0 %v75
  %404 = vmatprep.subr.mxu0 %v78
  %405 = vmatpush1.msra.mxu0 %v77
  %406 = vmatprep.subr.mxu0 %v80
  %407 = vmatpush1.msra.mxu0 %v79
  %408 = vmatprep.subr.mxu0 %v82
  %409 = vmatpush1.msra.mxu0 %v81
  %410 = vmatprep.subr.mxu0 %v84
  %411 = vmatpush1.msra.mxu0 %v83
  %412 = vmatprep.subr.mxu0 %v86
  %413 = vmatpush1.msra.mxu0 %v85
  %414 = vmatprep.subr.mxu0 %v88
  %415 = vmatpush1.msra.mxu0 %v87
  %416 = vmatprep.subr.mxu0 %v90
  %417 = vmatpush1.msra.mxu0 %v89
  %418 = vmatprep.subr.mxu0 %v92
  %419 = vmatpush1.msra.mxu0 %v91
  %420 = vmatprep.subr.mxu0 %v94
  %421 = vmatpush1.msra.mxu0 %v93
  %422 = vmatprep.subr.mxu0 %v96
  %423 = vmatpush1.msra.mxu0 %v95
  %424 = vmatprep.subr.mxu0 %v98
  %425 = vmatpush1.msra.mxu0 %v97
  %426 = vmatprep.subr.mxu0 %v100
  %427 = vmatpush1.msra.mxu0 %v99
  %428 = vmatprep.subr.mxu0 %v102
  %429 = vmatpush1.msra.mxu0 %v101
  %430 = vmatprep.subr.mxu0 %v104
  %431 = vmatpush1.msra.mxu0 %v103
  %432 = vmatprep.subr.mxu0 %v106
  %433 = vmatpush1.msra.mxu0 %v105
  %434 = vmatprep.subr.mxu0 0.0
  %435 = vmatpush1.msra.mxu0 0.0
  %436 = vmatprep.subr.mxu0 0.0
  %437 = vmatpush1.msra.mxu0 0.0
  %438 = vmatprep.subr.mxu0 0.0
  %439 = vmatpush1.msra.mxu0 0.0
  %440 = vmatprep.subr.mxu0 0.0
  %441 = vmatpush1.msra.mxu0 0.0
  %442 = vmatprep.subr.mxu0 0.0
  %443 = vmatpush1.msra.mxu0 0.0
  %444 = vmatprep.subr.mxu0 0.0
  %445 = vmatpush1.msra.mxu0 0.0
  %446 = vmatprep.subr.mxu0 0.0
  %447 = vmatpush1.msra.mxu0 0.0
  %448 = vmatprep.subr.mxu0 0.0
  %449 = vmatpush1.msra.mxu0 0.0
  %450 = vmatprep.subr.mxu0 0.0
  %451 = vmatpush1.msra.mxu0 0.0
  %452 = vmatprep.subr.mxu0 0.0
  %453 = vmatpush1.msra.mxu0 0.0
  %454 = vmatprep.subr.mxu0 0.0
  %455 = vmatpush1.msra.mxu0 0.0
  %456 = vmatprep.subr.mxu0 0.0
  %457 = vmatpush1.msra.mxu0 0.0
  %458 = vmatprep.subr.mxu0 0.0
  %459 = vmatpush1.msra.mxu0 0.0
  %460 = vmatprep.subr.mxu0 0.0
  %461 = vmatpush1.msra.mxu0 0.0
  %462 = vmatprep.subr.mxu0 0.0
  %463 = vmatpush1.msra.mxu0 0.0
  %464 = vmatprep.subr.mxu0 0.0
  %465 = vmatpush1.msra.mxu0 0.0
  %466 = vmatprep.mubr.f32.mxu0 0.0
  %467 = vmatmul.mubr.f32.gmra.mrb[0].mxu0 %v47
  %v468 = vpop.f32.mrb[0].mxu0
  %v469 = vadd.f32 %v236, %v468
  %v470 = vpop.f32.mrb[0].mxu0
  %v471 = vadd.f32 %v238, %v470
  %472 = vmatprep.mubr.f32.mxu0 0.0
  %473 = vmatmul.mubr.f32.gmra.mrb[0].mxu0 %v48
  %v474 = vpop.f32.mrb[0].mxu0
  %v475 = vadd.f32 %v242, %v474
  %v476 = vpop.f32.mrb[0].mxu0
  %v477 = vadd.f32 %v244, %v476
  %478 = vmatprep.mubr.f32.mxu0 0.0
  %479 = vmatmul.mubr.f32.gmra.mrb[0].mxu0 %v49
  %v480 = vpop.f32.mrb[0].mxu0
  %v481 = vadd.f32 %v248, %v480
  %v482 = vpop.f32.mrb[0].mxu0
  %v483 = vadd.f32 %v250, %v482
  %484 = vmatprep.mubr.f32.mxu0 0.0
  %485 = vmatmul.mubr.f32.gmra.mrb[0].mxu0 %v50
  %v486 = vpop.f32.mrb[0].mxu0
  %v487 = vadd.f32 %v254, %v486
  %v488 = vpop.f32.mrb[0].mxu0
  %v489 = vadd.f32 %v256, %v488
  %490 = vmatprep.mubr.f32.mxu0 0.0
  %491 = vmatmul.mubr.f32.gmra.mrb[0].mxu0 %v51
  %v492 = vpop.f32.mrb[0].mxu0
  %v493 = vadd.f32 %v260, %v492
  %v494 = vpop.f32.mrb[0].mxu0
  %v495 = vadd.f32 %v262, %v494
  %496 = vmatprep.mubr.f32.mxu0 0.0
  %497 = vmatmul.mubr.f32.gmra.mrb[0].mxu0 %v52
  %v498 = vpop.f32.mrb[0].mxu0
  %v499 = vadd.f32 %v266, %v498
  %v500 = vpop.f32.mrb[0].mxu0
  %v501 = vadd.f32 %v268, %v500
  %502 = vmatprep.mubr.f32.mxu0 0.0
  %503 = vmatmul.mubr.f32.gmra.mrb[0].mxu0 %v53
  %v504 = vpop.f32.mrb[0].mxu0
  %v505 = vadd.f32 %v272, %v504
  %v506 = vpop.f32.mrb[0].mxu0
  %v507 = vadd.f32 %v274, %v506
  %508 = vmatprep.mubr.f32.mxu0 0.0
  %509 = vmatmul.mubr.f32.gmra.mrb[0].mxu0 %v54
  %v510 = vpop.f32.mrb[0].mxu0
  %v511 = vadd.f32 %v278, %v510
  %v512 = vpop.f32.mrb[0].mxu0
  %v513 = vadd.f32 %v280, %v512
  %514 = vmatprep.mubr.f32.mxu0 0.0
  %515 = vmatmul.mubr.f32.gmra.mrb[0].mxu0 %v55
  %v516 = vpop.f32.mrb[0].mxu0
  %v517 = vadd.f32 %v284, %v516
  %v518 = vpop.f32.mrb[0].mxu0
  %v519 = vadd.f32 %v286, %v518
  %520 = vmatprep.mubr.f32.mxu0 0.0
  %521 = vmatmul.mubr.f32.gmra.mrb[0].mxu0 %v56
  %v522 = vpop.f32.mrb[0].mxu0
  %v523 = vadd.f32 %v290, %v522
  %v524 = vpop.f32.mrb[0].mxu0
  %v525 = vadd.f32 %v292, %v524
  %526 = vmatprep.mubr.f32.mxu0 0.0
  %527 = vmatmul.mubr.f32.gmra.mrb[0].mxu0 %v57
  %v528 = vpop.f32.mrb[0].mxu0
  %v529 = vadd.f32 %v296, %v528
  %v530 = vpop.f32.mrb[0].mxu0
  %v531 = vadd.f32 %v298, %v530
  %532 = vmatprep.mubr.f32.mxu0 0.0
  %533 = vmatmul.mubr.f32.gmra.mrb[0].mxu0 %v58
  %v534 = vpop.f32.mrb[0].mxu0
  %v535 = vadd.f32 %v302, %v534
  %v536 = vpop.f32.mrb[0].mxu0
  %v537 = vadd.f32 %v304, %v536
  %538 = vmatprep.mubr.f32.mxu0 0.0
  %539 = vmatmul.mubr.f32.gmra.mrb[0].mxu0 %v59
  %v540 = vpop.f32.mrb[0].mxu0
  %v541 = vadd.f32 %v308, %v540
  %v542 = vpop.f32.mrb[0].mxu0
  %v543 = vadd.f32 %v310, %v542
  %544 = vmatprep.mubr.f32.mxu0 0.0
  %545 = vmatmul.mubr.f32.gmra.mrb[0].mxu0 %v60
  %v546 = vpop.f32.mrb[0].mxu0
  %v547 = vadd.f32 %v314, %v546
  %v548 = vpop.f32.mrb[0].mxu0
  %v549 = vadd.f32 %v316, %v548
  %550 = vmatprep.mubr.f32.mxu0 0.0
  %551 = vmatmul.mubr.f32.gmra.mrb[0].mxu0 %v61
  %v552 = vpop.f32.mrb[0].mxu0
  %v553 = vadd.f32 %v320, %v552
  %v554 = vpop.f32.mrb[0].mxu0
  %v555 = vadd.f32 %v322, %v554
  %556 = vmatprep.mubr.f32.mxu0 0.0
  %557 = vmatmul.mubr.f32.gmra.mrb[0].mxu0 %v62
  %v558 = vpop.f32.mrb[0].mxu0
  %v559 = vadd.f32 %v326, %v558
  %v560 = vpop.f32.mrb[0].mxu0
  %v561 = vadd.f32 %v328, %v560
  %562 = vmatprep.mubr.f32.mxu0 0.0
  %563 = vmatmul.mubr.f32.gmra.mrb[0].mxu0 %v63
  %v564 = vpop.f32.mrb[0].mxu0
  %v565 = vadd.f32 %v332, %v564
  %v566 = vpop.f32.mrb[0].mxu0
  %v567 = vadd.f32 %v334, %v566
  %568 = vmatprep.mubr.f32.mxu0 0.0
  %569 = vmatmul.mubr.f32.gmra.mrb[0].mxu0 %v64
  %v570 = vpop.f32.mrb[0].mxu0
  %v571 = vadd.f32 %v338, %v570
  %v572 = vpop.f32.mrb[0].mxu0
  %v573 = vadd.f32 %v340, %v572
  %574 = vmatprep.mubr.f32.mxu0 0.0
  %575 = vmatmul.mubr.f32.gmra.mrb[0].mxu0 %v65
  %v576 = vpop.f32.mrb[0].mxu0
  %v577 = vadd.f32 %v344, %v576
  %v578 = vpop.f32.mrb[0].mxu0
  %v579 = vadd.f32 %v346, %v578
  %580 = vmatprep.mubr.f32.mxu0 0.0
  %581 = vmatmul.mubr.f32.gmra.mrb[0].mxu0 %v66
  %v582 = vpop.f32.mrb[0].mxu0
  %v583 = vadd.f32 %v350, %v582
  %v584 = vpop.f32.mrb[0].mxu0
  %v585 = vadd.f32 %v352, %v584
  %586 = vmatprep.mubr.f32.mxu0 0.0
  %587 = vmatmul.mubr.f32.gmra.mrb[0].mxu0 %v67
  %v588 = vpop.f32.mrb[0].mxu0
  %v589 = vadd.f32 %v356, %v588
  %v590 = vpop.f32.mrb[0].mxu0
  %v591 = vadd.f32 %v358, %v590
  %592 = vmatprep.mubr.f32.mxu0 0.0
  %593 = vmatmul.mubr.f32.gmra.mrb[0].mxu0 %v68
  %v594 = vpop.f32.mrb[0].mxu0
  %v595 = vadd.f32 %v362, %v594
  %v596 = vpop.f32.mrb[0].mxu0
  %v597 = vadd.f32 %v364, %v596
  %598 = vmatprep.mubr.f32.mxu0 0.0
  %599 = vmatmul.mubr.f32.gmra.mrb[0].mxu0 %v69
  %v600 = vpop.f32.mrb[0].mxu0
  %v601 = vadd.f32 %v368, %v600
  %v602 = vpop.f32.mrb[0].mxu0
  %v603 = vadd.f32 %v370, %v602
  %604 = vmatprep.mubr.f32.mxu0 0.0
  %605 = vmatmul.mubr.f32.gmra.mrb[0].mxu0 %v70
  %v606 = vpop.f32.mrb[0].mxu0
  %v607 = vadd.f32 %v374, %v606
  %v608 = vpop.f32.mrb[0].mxu0
  %v609 = vadd.f32 %v376, %v608
  %610 = vmatprep.mubr.f32.mxu0 0.0
  %611 = vmatmul.mubr.f32.gmra.mrb[0].mxu0 %v71
  %v612 = vpop.f32.mrb[0].mxu0
  %v613 = vadd.f32 %v380, %v612
  %v614 = vpop.f32.mrb[0].mxu0
  %v615 = vadd.f32 %v382, %v614
  %616 = vmatprep.mubr.f32.mxu0 0.0
  %617 = vmatmul.mubr.f32.gmra.mrb[0].mxu0 %v72
  %v618 = vpop.f32.mrb[0].mxu0
  %v619 = vadd.f32 %v386, %v618
  %v620 = vpop.f32.mrb[0].mxu0
  %v621 = vadd.f32 %v388, %v620
  %622 = vmatprep.mubr.f32.mxu0 0.0
  %623 = vmatmul.mubr.f32.gmra.mrb[0].mxu0 %v73
  %v624 = vpop.f32.mrb[0].mxu0
  %v625 = vadd.f32 %v392, %v624
  %v626 = vpop.f32.mrb[0].mxu0
  %v627 = vadd.f32 %v394, %v626
  %628 = vmatprep.mubr.f32.mxu0 0.0
  %629 = vmatmul.mubr.f32.gmra.mrb[0].mxu0 %v74
  %v630 = vpop.f32.mrb[0].mxu0
  %v631 = vadd.f32 %v398, %v630
  %v632 = vpop.f32.mrb[0].mxu0
  %v633 = vadd.f32 %v400, %v632
  %634 = vdwg.mxu0
  %s635 = scalar_lea.vmem %s0, 16
  %v636 = vld [vmem:[%s635] sm:$0xff]
  %v637 = vld [vmem:[%s635 + $0x8] sm:$0xff]
  %v638 = vld [vmem:[%s635 + $0x10] sm:$0xff]
  %v639 = vld [vmem:[%s635 + $0x18] sm:$0xff]
  %v640 = vld [vmem:[%s635 + $0x20] sm:$0xff]
  %v641 = vld [vmem:[%s635 + $0x28] sm:$0xff]
  %v642 = vld [vmem:[%s635 + $0x30] sm:$0xff]
  %v643 = vld [vmem:[%s635 + $0x38] sm:$0xff]
  %v644 = vld [vmem:[%s635 + $0x40] sm:$0xff]
  %v645 = vld [vmem:[%s635 + $0x48] sm:$0xff]
  %v646 = vld [vmem:[%s635 + $0x50] sm:$0xff]
  %v647 = vld [vmem:[%s635 + $0x58] sm:$0xff]
  %v648 = vld [vmem:[%s635 + $0x60] sm:$0xff]
  %v649 = vld [vmem:[%s635 + $0x68] sm:$0xff]
  %v650 = vld [vmem:[%s635 + $0x70] sm:$0xff]
  %v651 = vld [vmem:[%s635 + $0x78] sm:$0xff]
  %v652 = vld [vmem:[%s635 + $0x80] sm:$0xff]
  %v653 = vld [vmem:[%s635 + $0x88] sm:$0xff]
  %v654 = vld [vmem:[%s635 + $0x90] sm:$0xff]
  %v655 = vld [vmem:[%s635 + $0x98] sm:$0xff]
  %v656 = vld [vmem:[%s635 + $0xa0] sm:$0xff]
  %v657 = vld [vmem:[%s635 + $0xa8] sm:$0xff]
  %v658 = vld [vmem:[%s635 + $0xb0] sm:$0xff]
  %v659 = vld [vmem:[%s635 + $0xb8] sm:$0xff]
  %v660 = vld [vmem:[%s635 + $0xc0] sm:$0xff]
  %v661 = vld [vmem:[%s635 + $0xc8] sm:$0xff]
  %v662 = vld [vmem:[%s635 + $0xd0] sm:$0xff]
  %v663 = vld [vmem:[%s635 + $0xd8] sm:$0xff]
  %s664 = scalar_lea.vmem %s1, 512
  %v665 = vld [vmem:[%s664] sm:$0xff]
  %v666 = vld [vmem:[%s664 + $0x8] sm:$0xff]
  %v667 = vld [vmem:[%s664 + $0x10] sm:$0xff]
  %v668 = vld [vmem:[%s664 + $0x18] sm:$0xff]
  %v669 = vld [vmem:[%s664 + $0x20] sm:$0xff]
  %v670 = vld [vmem:[%s664 + $0x28] sm:$0xff]
  %v671 = vld [vmem:[%s664 + $0x30] sm:$0xff]
  %v672 = vld [vmem:[%s664 + $0x38] sm:$0xff]
  %v673 = vld [vmem:[%s664 + $0x40] sm:$0xff]
  %v674 = vld [vmem:[%s664 + $0x48] sm:$0xff]
  %v675 = vld [vmem:[%s664 + $0x50] sm:$0xff]
  %v676 = vld [vmem:[%s664 + $0x58] sm:$0xff]
  %v677 = vld [vmem:[%s664 + $0x60] sm:$0xff]
  %v678 = vld [vmem:[%s664 + $0x68] sm:$0xff]
  %v679 = vld [vmem:[%s664 + $0x70] sm:$0xff]
  %v680 = vld [vmem:[%s664 + $0x78] sm:$0xff]
  %v681 = vld [vmem:[%s664 + $0x80] sm:$0xff]
  %v682 = vld [vmem:[%s664 + $0x88] sm:$0xff]
  %v683 = vld [vmem:[%s664 + $0x90] sm:$0xff]
  %v684 = vld [vmem:[%s664 + $0x98] sm:$0xff]
  %v685 = vld [vmem:[%s664 + $0xa0] sm:$0xff]
  %v686 = vld [vmem:[%s664 + $0xa8] sm:$0xff]
  %v687 = vld [vmem:[%s664 + $0xb0] sm:$0xff]
  %v688 = vld [vmem:[%s664 + $0xb8] sm:$0xff]
  %v689 = vld [vmem:[%s664 + $0xc0] sm:$0xff]
  %v690 = vld [vmem:[%s664 + $0xc8] sm:$0xff]
  %v691 = vld [vmem:[%s664 + $0xd0] sm:$0xff]
  %v692 = vld [vmem:[%s664 + $0xd8] sm:$0xff]
  %v693 = vld [vmem:[%s664 + $0xe0] sm:$0xff]
  %v694 = vld [vmem:[%s664 + $0xe8] sm:$0xff]
  %v695 = vld [vmem:[%s664 + $0xf0] sm:$0xff]
  %v696 = vld [vmem:[%s664 + $0xf8] sm:$0xff]
  %697 = vmatprep.subr.mxu0 %v666
  %698 = vmatpush1.msra.mxu0 %v665
  %699 = vmatprep.subr.mxu0 %v668
  %700 = vmatpush1.msra.mxu0 %v667
  %701 = vmatprep.subr.mxu0 %v670
  %702 = vmatpush1.msra.mxu0 %v669
  %703 = vmatprep.subr.mxu0 %v672
  %704 = vmatpush1.msra.mxu0 %v671
  %705 = vmatprep.subr.mxu0 %v674
  %706 = vmatpush1.msra.mxu0 %v673
  %707 = vmatprep.subr.mxu0 %v676
  %708 = vmatpush1.msra.mxu0 %v675
  %709 = vmatprep.subr.mxu0 %v678
  %710 = vmatpush1.msra.mxu0 %v677
  %711 = vmatprep.subr.mxu0 %v680
  %712 = vmatpush1.msra.mxu0 %v679
  %713 = vmatprep.subr.mxu0 %v682
  %714 = vmatpush1.msra.mxu0 %v681
  %715 = vmatprep.subr.mxu0 %v684
  %716 = vmatpush1.msra.mxu0 %v683
  %717 = vmatprep.subr.mxu0 %v686
  %718 = vmatpush1.msra.mxu0 %v685
  %719 = vmatprep.subr.mxu0 %v688
  %720 = vmatpush1.msra.mxu0 %v687
  %721 = vmatprep.subr.mxu0 %v690
  %722 = vmatpush1.msra.mxu0 %v689
  %723 = vmatprep.subr.mxu0 %v692
  %724 = vmatpush1.msra.mxu0 %v691
  %725 = vmatprep.subr.mxu0 %v694
  %726 = vmatpush1.msra.mxu0 %v693
  %727 = vmatprep.subr.mxu0 %v696
  %728 = vmatpush1.msra.mxu0 %v695
  %729 = vmatprep.subr.mxu0 0.0
  %730 = vmatpush1.msra.mxu0 0.0
  %731 = vmatprep.subr.mxu0 0.0
  %732 = vmatpush1.msra.mxu0 0.0
  %733 = vmatprep.subr.mxu0 0.0
  %734 = vmatpush1.msra.mxu0 0.0
  %735 = vmatprep.subr.mxu0 0.0
  %736 = vmatpush1.msra.mxu0 0.0
  %737 = vmatprep.subr.mxu0 0.0
  %738 = vmatpush1.msra.mxu0 0.0
  %739 = vmatprep.subr.mxu0 0.0
  %740 = vmatpush1.msra.mxu0 0.0
  %741 = vmatprep.subr.mxu0 0.0
  %742 = vmatpush1.msra.mxu0 0.0
  %743 = vmatprep.subr.mxu0 0.0
  %744 = vmatpush1.msra.mxu0 0.0
  %745 = vmatprep.subr.mxu0 0.0
  %746 = vmatpush1.msra.mxu0 0.0
  %747 = vmatprep.subr.mxu0 0.0
  %748 = vmatpush1.msra.mxu0 0.0
  %749 = vmatprep.subr.mxu0 0.0
  %750 = vmatpush1.msra.mxu0 0.0
  %751 = vmatprep.subr.mxu0 0.0
  %752 = vmatpush1.msra.mxu0 0.0
  %753 = vmatprep.subr.mxu0 0.0
  %754 = vmatpush1.msra.mxu0 0.0
  %755 = vmatprep.subr.mxu0 0.0
  %756 = vmatpush1.msra.mxu0 0.0
  %757 = vmatprep.subr.mxu0 0.0
  %758 = vmatpush1.msra.mxu0 0.0
  %759 = vmatprep.subr.mxu0 0.0
  %760 = vmatpush1.msra.mxu0 0.0
  %761 = vmatprep.mubr.f32.mxu0 0.0
  %762 = vmatmul.mubr.f32.gmra.mrb[0].mxu0 %v636
  %v763 = vpop.f32.mrb[0].mxu0
  %v764 = vadd.f32 0.0, %v763
  %v765 = vpop.f32.mrb[0].mxu0
  %v766 = vadd.f32 0.0, %v765
  %767 = vmatprep.mubr.f32.mxu0 0.0
  %768 = vmatmul.mubr.f32.gmra.mrb[0].mxu0 %v637
  %v769 = vpop.f32.mrb[0].mxu0
  %v770 = vadd.f32 0.0, %v769
  %v771 = vpop.f32.mrb[0].mxu0
  %v772 = vadd.f32 0.0, %v771
  %773 = vmatprep.mubr.f32.mxu0 0.0
  %774 = vmatmul.mubr.f32.gmra.mrb[0].mxu0 %v638
  %v775 = vpop.f32.mrb[0].mxu0
  %v776 = vadd.f32 0.0, %v775
  %v777 = vpop.f32.mrb[0].mxu0
  %v778 = vadd.f32 0.0, %v777
  %779 = vmatprep.mubr.f32.mxu0 0.0
  %780 = vmatmul.mubr.f32.gmra.mrb[0].mxu0 %v639
  %v781 = vpop.f32.mrb[0].mxu0
  %v782 = vadd.f32 0.0, %v781
  %v783 = vpop.f32.mrb[0].mxu0
  %v784 = vadd.f32 0.0, %v783
  %785 = vmatprep.mubr.f32.mxu0 0.0
  %786 = vmatmul.mubr.f32.gmra.mrb[0].mxu0 %v640
  %v787 = vpop.f32.mrb[0].mxu0
  %v788 = vadd.f32 0.0, %v787
  %v789 = vpop.f32.mrb[0].mxu0
  %v790 = vadd.f32 0.0, %v789
  %791 = vmatprep.mubr.f32.mxu0 0.0
  %792 = vmatmul.mubr.f32.gmra.mrb[0].mxu0 %v641
  %v793 = vpop.f32.mrb[0].mxu0
  %v794 = vadd.f32 0.0, %v793
  %v795 = vpop.f32.mrb[0].mxu0
  %v796 = vadd.f32 0.0, %v795
  %797 = vmatprep.mubr.f32.mxu0 0.0
  %798 = vmatmul.mubr.f32.gmra.mrb[0].mxu0 %v642
  %v799 = vpop.f32.mrb[0].mxu0
  %v800 = vadd.f32 0.0, %v799
  %v801 = vpop.f32.mrb[0].mxu0
  %v802 = vadd.f32 0.0, %v801
  %803 = vmatprep.mubr.f32.mxu0 0.0
  %804 = vmatmul.mubr.f32.gmra.mrb[0].mxu0 %v643
  %v805 = vpop.f32.mrb[0].mxu0
  %v806 = vadd.f32 0.0, %v805
  %v807 = vpop.f32.mrb[0].mxu0
  %v808 = vadd.f32 0.0, %v807
  %809 = vmatprep.mubr.f32.mxu0 0.0
  %810 = vmatmul.mubr.f32.gmra.mrb[0].mxu0 %v644
  %v811 = vpop.f32.mrb[0].mxu0
  %v812 = vadd.f32 0.0, %v811
  %v813 = vpop.f32.mrb[0].mxu0
  %v814 = vadd.f32 0.0, %v813
  %815 = vmatprep.mubr.f32.mxu0 0.0
  %816 = vmatmul.mubr.f32.gmra.mrb[0].mxu0 %v645
  %v817 = vpop.f32.mrb[0].mxu0
  %v818 = vadd.f32 0.0, %v817
  %v819 = vpop.f32.mrb[0].mxu0
  %v820 = vadd.f32 0.0, %v819
  %821 = vmatprep.mubr.f32.mxu0 0.0
  %822 = vmatmul.mubr.f32.gmra.mrb[0].mxu0 %v646
  %v823 = vpop.f32.mrb[0].mxu0
  %v824 = vadd.f32 0.0, %v823
  %v825 = vpop.f32.mrb[0].mxu0
  %v826 = vadd.f32 0.0, %v825
  %827 = vmatprep.mubr.f32.mxu0 0.0
  %828 = vmatmul.mubr.f32.gmra.mrb[0].mxu0 %v647
  %v829 = vpop.f32.mrb[0].mxu0
  %v830 = vadd.f32 0.0, %v829
  %v831 = vpop.f32.mrb[0].mxu0
  %v832 = vadd.f32 0.0, %v831
  %833 = vmatprep.mubr.f32.mxu0 0.0
  %834 = vmatmul.mubr.f32.gmra.mrb[0].mxu0 %v648
  %v835 = vpop.f32.mrb[0].mxu0
  %v836 = vadd.f32 0.0, %v835
  %v837 = vpop.f32.mrb[0].mxu0
  %v838 = vadd.f32 0.0, %v837
  %839 = vmatprep.mubr.f32.mxu0 0.0
  %840 = vmatmul.mubr.f32.gmra.mrb[0].mxu0 %v649
  %v841 = vpop.f32.mrb[0].mxu0
  %v842 = vadd.f32 0.0, %v841
  %v843 = vpop.f32.mrb[0].mxu0
  %v844 = vadd.f32 0.0, %v843
  %845 = vmatprep.mubr.f32.mxu0 0.0
  %846 = vmatmul.mubr.f32.gmra.mrb[0].mxu0 %v650
  %v847 = vpop.f32.mrb[0].mxu0
  %v848 = vadd.f32 0.0, %v847
  %v849 = vpop.f32.mrb[0].mxu0
  %v850 = vadd.f32 0.0, %v849
  %851 = vmatprep.mubr.f32.mxu0 0.0
  %852 = vmatmul.mubr.f32.gmra.mrb[0].mxu0 %v651
  %v853 = vpop.f32.mrb[0].mxu0
  %v854 = vadd.f32 0.0, %v853
  %v855 = vpop.f32.mrb[0].mxu0
  %v856 = vadd.f32 0.0, %v855
  %857 = vmatprep.mubr.f32.mxu0 0.0
  %858 = vmatmul.mubr.f32.gmra.mrb[0].mxu0 %v652
  %v859 = vpop.f32.mrb[0].mxu0
  %v860 = vadd.f32 0.0, %v859
  %v861 = vpop.f32.mrb[0].mxu0
  %v862 = vadd.f32 0.0, %v861
  %863 = vmatprep.mubr.f32.mxu0 0.0
  %864 = vmatmul.mubr.f32.gmra.mrb[0].mxu0 %v653
  %v865 = vpop.f32.mrb[0].mxu0
  %v866 = vadd.f32 0.0, %v865
  %v867 = vpop.f32.mrb[0].mxu0
  %v868 = vadd.f32 0.0, %v867
  %869 = vmatprep.mubr.f32.mxu0 0.0
  %870 = vmatmul.mubr.f32.gmra.mrb[0].mxu0 %v654
  %v871 = vpop.f32.mrb[0].mxu0
  %v872 = vadd.f32 0.0, %v871
  %v873 = vpop.f32.mrb[0].mxu0
  %v874 = vadd.f32 0.0, %v873
  %875 = vmatprep.mubr.f32.mxu0 0.0
  %876 = vmatmul.mubr.f32.gmra.mrb[0].mxu0 %v655
  %v877 = vpop.f32.mrb[0].mxu0
  %v878 = vadd.f32 0.0, %v877
  %v879 = vpop.f32.mrb[0].mxu0
  %v880 = vadd.f32 0.0, %v879
  %881 = vmatprep.mubr.f32.mxu0 0.0
  %882 = vmatmul.mubr.f32.gmra.mrb[0].mxu0 %v656
  %v883 = vpop.f32.mrb[0].mxu0
  %v884 = vadd.f32 0.0, %v883
  %v885 = vpop.f32.mrb[0].mxu0
  %v886 = vadd.f32 0.0, %v885
  %887 = vmatprep.mubr.f32.mxu0 0.0
  %888 = vmatmul.mubr.f32.gmra.mrb[0].mxu0 %v657
  %v889 = vpop.f32.mrb[0].mxu0
  %v890 = vadd.f32 0.0, %v889
  %v891 = vpop.f32.mrb[0].mxu0
  %v892 = vadd.f32 0.0, %v891
  %893 = vmatprep.mubr.f32.mxu0 0.0
  %894 = vmatmul.mubr.f32.gmra.mrb[0].mxu0 %v658
  %v895 = vpop.f32.mrb[0].mxu0
  %v896 = vadd.f32 0.0, %v895
  %v897 = vpop.f32.mrb[0].mxu0
  %v898 = vadd.f32 0.0, %v897
  %899 = vmatprep.mubr.f32.mxu0 0.0
  %900 = vmatmul.mubr.f32.gmra.mrb[0].mxu0 %v659
  %v901 = vpop.f32.mrb[0].mxu0
  %v902 = vadd.f32 0.0, %v901
  %v903 = vpop.f32.mrb[0].mxu0
  %v904 = vadd.f32 0.0, %v903
  %905 = vmatprep.mubr.f32.mxu0 0.0
  %906 = vmatmul.mubr.f32.gmra.mrb[0].mxu0 %v660
  %v907 = vpop.f32.mrb[0].mxu0
  %v908 = vadd.f32 0.0, %v907
  %v909 = vpop.f32.mrb[0].mxu0
  %v910 = vadd.f32 0.0, %v909
  %911 = vmatprep.mubr.f32.mxu0 0.0
  %912 = vmatmul.mubr.f32.gmra.mrb[0].mxu0 %v661
  %v913 = vpop.f32.mrb[0].mxu0
  %v914 = vadd.f32 0.0, %v913
  %v915 = vpop.f32.mrb[0].mxu0
  %v916 = vadd.f32 0.0, %v915
  %917 = vmatprep.mubr.f32.mxu0 0.0
  %918 = vmatmul.mubr.f32.gmra.mrb[0].mxu0 %v662
  %v919 = vpop.f32.mrb[0].mxu0
  %v920 = vadd.f32 0.0, %v919
  %v921 = vpop.f32.mrb[0].mxu0
  %v922 = vadd.f32 0.0, %v921
  %923 = vmatprep.mubr.f32.mxu0 0.0
  %924 = vmatmul.mubr.f32.gmra.mrb[0].mxu0 %v663
  %v925 = vpop.f32.mrb[0].mxu0
  %v926 = vadd.f32 0.0, %v925
  %v927 = vpop.f32.mrb[0].mxu0
  %v928 = vadd.f32 0.0, %v927
  %929 = vdwg.mxu0
  %v930 = vadd.f32 %v469, %v764
  %v931 = vadd.f32 %v471, %v766
  %v932 = vadd.f32 %v475, %v770
  %v933 = vadd.f32 %v477, %v772
  %v934 = vadd.f32 %v481, %v776
  %v935 = vadd.f32 %v483, %v778
  %v936 = vadd.f32 %v487, %v782
  %v937 = vadd.f32 %v489, %v784
  %v938 = vadd.f32 %v493, %v788
  %v939 = vadd.f32 %v495, %v790
  %v940 = vadd.f32 %v499, %v794
  %v941 = vadd.f32 %v501, %v796
  %v942 = vadd.f32 %v505, %v800
  %v943 = vadd.f32 %v507, %v802
  %v944 = vadd.f32 %v511, %v806
  %v945 = vadd.f32 %v513, %v808
  %v946 = vadd.f32 %v517, %v812
  %v947 = vadd.f32 %v519, %v814
  %v948 = vadd.f32 %v523, %v818
  %v949 = vadd.f32 %v525, %v820
  %v950 = vadd.f32 %v529, %v824
  %v951 = vadd.f32 %v531, %v826
  %v952 = vadd.f32 %v535, %v830
  %v953 = vadd.f32 %v537, %v832
  %v954 = vadd.f32 %v541, %v836
  %v955 = vadd.f32 %v543, %v838
  %v956 = vadd.f32 %v547, %v842
  %v957 = vadd.f32 %v549, %v844
  %v958 = vadd.f32 %v553, %v848
  %v959 = vadd.f32 %v555, %v850
  %v960 = vadd.f32 %v559, %v854
  %v961 = vadd.f32 %v561, %v856
  %v962 = vadd.f32 %v565, %v860
  %v963 = vadd.f32 %v567, %v862
  %v964 = vadd.f32 %v571, %v866
  %v965 = vadd.f32 %v573, %v868
  %v966 = vadd.f32 %v577, %v872
  %v967 = vadd.f32 %v579, %v874
  %v968 = vadd.f32 %v583, %v878
  %v969 = vadd.f32 %v585, %v880
  %v970 = vadd.f32 %v589, %v884
  %v971 = vadd.f32 %v591, %v886
  %v972 = vadd.f32 %v595, %v890
  %v973 = vadd.f32 %v597, %v892
  %v974 = vadd.f32 %v601, %v896
  %v975 = vadd.f32 %v603, %v898
  %v976 = vadd.f32 %v607, %v902
  %v977 = vadd.f32 %v609, %v904
  %v978 = vadd.f32 %v613, %v908
  %v979 = vadd.f32 %v615, %v910
  %v980 = vadd.f32 %v619, %v914
  %v981 = vadd.f32 %v621, %v916
  %v982 = vadd.f32 %v625, %v920
  %v983 = vadd.f32 %v627, %v922
  %v984 = vadd.f32 %v631, %v926
  %v985 = vadd.f32 %v633, %v928
  %s986 = scalar_lea.vmem %s0, 24
  %v987 = vld [vmem:[%s986] sm:$0xff]
  %v988 = vld [vmem:[%s986 + $0x8] sm:$0xff]
  %v989 = vld [vmem:[%s986 + $0x10] sm:$0xff]
  %v990 = vld [vmem:[%s986 + $0x18] sm:$0xff]
  %v991 = vld [vmem:[%s986 + $0x20] sm:$0xff]
  %v992 = vld [vmem:[%s986 + $0x28] sm:$0xff]
  %v993 = vld [vmem:[%s986 + $0x30] sm:$0xff]
  %v994 = vld [vmem:[%s986 + $0x38] sm:$0xff]
  %v995 = vld [vmem:[%s986 + $0x40] sm:$0xff]
  %v996 = vld [vmem:[%s986 + $0x48] sm:$0xff]
  %v997 = vld [vmem:[%s986 + $0x50] sm:$0xff]
  %v998 = vld [vmem:[%s986 + $0x58] sm:$0xff]
  %v999 = vld [vmem:[%s986 + $0x60] sm:$0xff]
  %v1000 = vld [vmem:[%s986 + $0x68] sm:$0xff]
  %v1001 = vld [vmem:[%s986 + $0x70] sm:$0xff]
  %v1002 = vld [vmem:[%s986 + $0x78] sm:$0xff]
  %v1003 = vld [vmem:[%s986 + $0x80] sm:$0xff]
  %v1004 = vld [vmem:[%s986 + $0x88] sm:$0xff]
  %v1005 = vld [vmem:[%s986 + $0x90] sm:$0xff]
  %v1006 = vld [vmem:[%s986 + $0x98] sm:$0xff]
  %v1007 = vld [vmem:[%s986 + $0xa0] sm:$0xff]
  %v1008 = vld [vmem:[%s986 + $0xa8] sm:$0xff]
  %v1009 = vld [vmem:[%s986 + $0xb0] sm:$0xff]
  %v1010 = vld [vmem:[%s986 + $0xb8] sm:$0xff]
  %v1011 = vld [vmem:[%s986 + $0xc0] sm:$0xff]
  %v1012 = vld [vmem:[%s986 + $0xc8] sm:$0xff]
  %v1013 = vld [vmem:[%s986 + $0xd0] sm:$0xff]
  %v1014 = vld [vmem:[%s986 + $0xd8] sm:$0xff]
  %s1015 = scalar_lea.vmem %s1, 768
  %v1016 = vld [vmem:[%s1015] sm:$0xff]
  %v1017 = vld [vmem:[%s1015 + $0x8] sm:$0xff]
  %v1018 = vld [vmem:[%s1015 + $0x10] sm:$0xff]
  %v1019 = vld [vmem:[%s1015 + $0x18] sm:$0xff]
  %v1020 = vld [vmem:[%s1015 + $0x20] sm:$0xff]
  %v1021 = vld [vmem:[%s1015 + $0x28] sm:$0xff]
  %v1022 = vld [vmem:[%s1015 + $0x30] sm:$0xff]
  %v1023 = vld [vmem:[%s1015 + $0x38] sm:$0xff]
  %v1024 = vld [vmem:[%s1015 + $0x40] sm:$0xff]
  %v1025 = vld [vmem:[%s1015 + $0x48] sm:$0xff]
  %v1026 = vld [vmem:[%s1015 + $0x50] sm:$0xff]
  %v1027 = vld [vmem:[%s1015 + $0x58] sm:$0xff]
  %v1028 = vld [vmem:[%s1015 + $0x60] sm:$0xff]
  %v1029 = vld [vmem:[%s1015 + $0x68] sm:$0xff]
  %v1030 = vld [vmem:[%s1015 + $0x70] sm:$0xff]
  %v1031 = vld [vmem:[%s1015 + $0x78] sm:$0xff]
  %v1032 = vld [vmem:[%s1015 + $0x80] sm:$0xff]
  %v1033 = vld [vmem:[%s1015 + $0x88] sm:$0xff]
  %v1034 = vld [vmem:[%s1015 + $0x90] sm:$0xff]
  %v1035 = vld [vmem:[%s1015 + $0x98] sm:$0xff]
  %v1036 = vld [vmem:[%s1015 + $0xa0] sm:$0xff]
  %v1037 = vld [vmem:[%s1015 + $0xa8] sm:$0xff]
  %v1038 = vld [vmem:[%s1015 + $0xb0] sm:$0xff]
  %v1039 = vld [vmem:[%s1015 + $0xb8] sm:$0xff]
  %v1040 = vld [vmem:[%s1015 + $0xc0] sm:$0xff]
  %v1041 = vld [vmem:[%s1015 + $0xc8] sm:$0xff]
  %v1042 = vld [vmem:[%s1015 + $0xd0] sm:$0xff]
  %v1043 = vld [vmem:[%s1015 + $0xd8] sm:$0xff]
  %v1044 = vld [vmem:[%s1015 + $0xe0] sm:$0xff]
  %v1045 = vld [vmem:[%s1015 + $0xe8] sm:$0xff]
  %v1046 = vld [vmem:[%s1015 + $0xf0] sm:$0xff]
  %v1047 = vld [vmem:[%s1015 + $0xf8] sm:$0xff]
  %1048 = vmatprep.subr.mxu0 %v1017
  %1049 = vmatpush1.msra.mxu0 %v1016
  %1050 = vmatprep.subr.mxu0 %v1019
  %1051 = vmatpush1.msra.mxu0 %v1018
  %1052 = vmatprep.subr.mxu0 %v1021
  %1053 = vmatpush1.msra.mxu0 %v1020
  %1054 = vmatprep.subr.mxu0 %v1023
  %1055 = vmatpush1.msra.mxu0 %v1022
  %1056 = vmatprep.subr.mxu0 %v1025
  %1057 = vmatpush1.msra.mxu0 %v1024
  %1058 = vmatprep.subr.mxu0 %v1027
  %1059 = vmatpush1.msra.mxu0 %v1026
  %1060 = vmatprep.subr.mxu0 %v1029
  %1061 = vmatpush1.msra.mxu0 %v1028
  %1062 = vmatprep.subr.mxu0 %v1031
  %1063 = vmatpush1.msra.mxu0 %v1030
  %1064 = vmatprep.subr.mxu0 %v1033
  %1065 = vmatpush1.msra.mxu0 %v1032
  %1066 = vmatprep.subr.mxu0 %v1035
  %1067 = vmatpush1.msra.mxu0 %v1034
  %1068 = vmatprep.subr.mxu0 %v1037
  %1069 = vmatpush1.msra.mxu0 %v1036
  %1070 = vmatprep.subr.mxu0 %v1039
  %1071 = vmatpush1.msra.mxu0 %v1038
  %1072 = vmatprep.subr.mxu0 %v1041
  %1073 = vmatpush1.msra.mxu0 %v1040
  %1074 = vmatprep.subr.mxu0 %v1043
  %1075 = vmatpush1.msra.mxu0 %v1042
  %1076 = vmatprep.subr.mxu0 %v1045
  %1077 = vmatpush1.msra.mxu0 %v1044
  %1078 = vmatprep.subr.mxu0 %v1047
  %1079 = vmatpush1.msra.mxu0 %v1046
  %1080 = vmatprep.subr.mxu0 0.0
  %1081 = vmatpush1.msra.mxu0 0.0
  %1082 = vmatprep.subr.mxu0 0.0
  %1083 = vmatpush1.msra.mxu0 0.0
  %1084 = vmatprep.subr.mxu0 0.0
  %1085 = vmatpush1.msra.mxu0 0.0
  %1086 = vmatprep.subr.mxu0 0.0
  %1087 = vmatpush1.msra.mxu0 0.0
  %1088 = vmatprep.subr.mxu0 0.0
  %1089 = vmatpush1.msra.mxu0 0.0
  %1090 = vmatprep.subr.mxu0 0.0
  %1091 = vmatpush1.msra.mxu0 0.0
  %1092 = vmatprep.subr.mxu0 0.0
  %1093 = vmatpush1.msra.mxu0 0.0
  %1094 = vmatprep.subr.mxu0 0.0
  %1095 = vmatpush1.msra.mxu0 0.0
  %1096 = vmatprep.subr.mxu0 0.0
  %1097 = vmatpush1.msra.mxu0 0.0
  %1098 = vmatprep.subr.mxu0 0.0
  %1099 = vmatpush1.msra.mxu0 0.0
  %1100 = vmatprep.subr.mxu0 0.0
  %1101 = vmatpush1.msra.mxu0 0.0
  %1102 = vmatprep.subr.mxu0 0.0
  %1103 = vmatpush1.msra.mxu0 0.0
  %1104 = vmatprep.subr.mxu0 0.0
  %1105 = vmatpush1.msra.mxu0 0.0
  %1106 = vmatprep.subr.mxu0 0.0
  %1107 = vmatpush1.msra.mxu0 0.0
  %1108 = vmatprep.subr.mxu0 0.0
  %1109 = vmatpush1.msra.mxu0 0.0
  %1110 = vmatprep.subr.mxu0 0.0
  %1111 = vmatpush1.msra.mxu0 0.0
  %1112 = vmatprep.mubr.f32.mxu0 0.0
  %1113 = vmatmul.mubr.f32.gmra.mrb[0].mxu0 %v987
  %v1114 = vpop.f32.mrb[0].mxu0
  %v1115 = vadd.f32 0.0, %v1114
  %v1116 = vpop.f32.mrb[0].mxu0
  %v1117 = vadd.f32 0.0, %v1116
  %1118 = vmatprep.mubr.f32.mxu0 0.0
  %1119 = vmatmul.mubr.f32.gmra.mrb[0].mxu0 %v988
  %v1120 = vpop.f32.mrb[0].mxu0
  %v1121 = vadd.f32 0.0, %v1120
  %v1122 = vpop.f32.mrb[0].mxu0
  %v1123 = vadd.f32 0.0, %v1122
  %1124 = vmatprep.mubr.f32.mxu0 0.0
  %1125 = vmatmul.mubr.f32.gmra.mrb[0].mxu0 %v989
  %v1126 = vpop.f32.mrb[0].mxu0
  %v1127 = vadd.f32 0.0, %v1126
  %v1128 = vpop.f32.mrb[0].mxu0
  %v1129 = vadd.f32 0.0, %v1128
  %1130 = vmatprep.mubr.f32.mxu0 0.0
  %1131 = vmatmul.mubr.f32.gmra.mrb[0].mxu0 %v990
  %v1132 = vpop.f32.mrb[0].mxu0
  %v1133 = vadd.f32 0.0, %v1132
  %v1134 = vpop.f32.mrb[0].mxu0
  %v1135 = vadd.f32 0.0, %v1134
  %1136 = vmatprep.mubr.f32.mxu0 0.0
  %1137 = vmatmul.mubr.f32.gmra.mrb[0].mxu0 %v991
  %v1138 = vpop.f32.mrb[0].mxu0
  %v1139 = vadd.f32 0.0, %v1138
  %v1140 = vpop.f32.mrb[0].mxu0
  %v1141 = vadd.f32 0.0, %v1140
  %1142 = vmatprep.mubr.f32.mxu0 0.0
  %1143 = vmatmul.mubr.f32.gmra.mrb[0].mxu0 %v992
  %v1144 = vpop.f32.mrb[0].mxu0
  %v1145 = vadd.f32 0.0, %v1144
  %v1146 = vpop.f32.mrb[0].mxu0
  %v1147 = vadd.f32 0.0, %v1146
  %1148 = vmatprep.mubr.f32.mxu0 0.0
  %1149 = vmatmul.mubr.f32.gmra.mrb[0].mxu0 %v993
  %v1150 = vpop.f32.mrb[0].mxu0
  %v1151 = vadd.f32 0.0, %v1150
  %v1152 = vpop.f32.mrb[0].mxu0
  %v1153 = vadd.f32 0.0, %v1152
  %1154 = vmatprep.mubr.f32.mxu0 0.0
  %1155 = vmatmul.mubr.f32.gmra.mrb[0].mxu0 %v994
  %v1156 = vpop.f32.mrb[0].mxu0
  %v1157 = vadd.f32 0.0, %v1156
  %v1158 = vpop.f32.mrb[0].mxu0
  %v1159 = vadd.f32 0.0, %v1158
  %1160 = vmatprep.mubr.f32.mxu0 0.0
  %1161 = vmatmul.mubr.f32.gmra.mrb[0].mxu0 %v995
  %v1162 = vpop.f32.mrb[0].mxu0
  %v1163 = vadd.f32 0.0, %v1162
  %v1164 = vpop.f32.mrb[0].mxu0
  %v1165 = vadd.f32 0.0, %v1164
  %1166 = vmatprep.mubr.f32.mxu0 0.0
  %1167 = vmatmul.mubr.f32.gmra.mrb[0].mxu0 %v996
  %v1168 = vpop.f32.mrb[0].mxu0
  %v1169 = vadd.f32 0.0, %v1168
  %v1170 = vpop.f32.mrb[0].mxu0
  %v1171 = vadd.f32 0.0, %v1170
  %1172 = vmatprep.mubr.f32.mxu0 0.0
  %1173 = vmatmul.mubr.f32.gmra.mrb[0].mxu0 %v997
  %v1174 = vpop.f32.mrb[0].mxu0
  %v1175 = vadd.f32 0.0, %v1174
  %v1176 = vpop.f32.mrb[0].mxu0
  %v1177 = vadd.f32 0.0, %v1176
  %1178 = vmatprep.mubr.f32.mxu0 0.0
  %1179 = vmatmul.mubr.f32.gmra.mrb[0].mxu0 %v998
  %v1180 = vpop.f32.mrb[0].mxu0
  %v1181 = vadd.f32 0.0, %v1180
  %v1182 = vpop.f32.mrb[0].mxu0
  %v1183 = vadd.f32 0.0, %v1182
  %1184 = vmatprep.mubr.f32.mxu0 0.0
  %1185 = vmatmul.mubr.f32.gmra.mrb[0].mxu0 %v999
  %v1186 = vpop.f32.mrb[0].mxu0
  %v1187 = vadd.f32 0.0, %v1186
  %v1188 = vpop.f32.mrb[0].mxu0
  %v1189 = vadd.f32 0.0, %v1188
  %1190 = vmatprep.mubr.f32.mxu0 0.0
  %1191 = vmatmul.mubr.f32.gmra.mrb[0].mxu0 %v1000
  %v1192 = vpop.f32.mrb[0].mxu0
  %v1193 = vadd.f32 0.0, %v1192
  %v1194 = vpop.f32.mrb[0].mxu0
  %v1195 = vadd.f32 0.0, %v1194
  %1196 = vmatprep.mubr.f32.mxu0 0.0
  %1197 = vmatmul.mubr.f32.gmra.mrb[0].mxu0 %v1001
  %v1198 = vpop.f32.mrb[0].mxu0
  %v1199 = vadd.f32 0.0, %v1198
  %v1200 = vpop.f32.mrb[0].mxu0
  %v1201 = vadd.f32 0.0, %v1200
  %1202 = vmatprep.mubr.f32.mxu0 0.0
  %1203 = vmatmul.mubr.f32.gmra.mrb[0].mxu0 %v1002
  %v1204 = vpop.f32.mrb[0].mxu0
  %v1205 = vadd.f32 0.0, %v1204
  %v1206 = vpop.f32.mrb[0].mxu0
  %v1207 = vadd.f32 0.0, %v1206
  %1208 = vmatprep.mubr.f32.mxu0 0.0
  %1209 = vmatmul.mubr.f32.gmra.mrb[0].mxu0 %v1003
  %v1210 = vpop.f32.mrb[0].mxu0
  %v1211 = vadd.f32 0.0, %v1210
  %v1212 = vpop.f32.mrb[0].mxu0
  %v1213 = vadd.f32 0.0, %v1212
  %1214 = vmatprep.mubr.f32.mxu0 0.0
  %1215 = vmatmul.mubr.f32.gmra.mrb[0].mxu0 %v1004
  %v1216 = vpop.f32.mrb[0].mxu0
  %v1217 = vadd.f32 0.0, %v1216
  %v1218 = vpop.f32.mrb[0].mxu0
  %v1219 = vadd.f32 0.0, %v1218
  %1220 = vmatprep.mubr.f32.mxu0 0.0
  %1221 = vmatmul.mubr.f32.gmra.mrb[0].mxu0 %v1005
  %v1222 = vpop.f32.mrb[0].mxu0
  %v1223 = vadd.f32 0.0, %v1222
  %v1224 = vpop.f32.mrb[0].mxu0
  %v1225 = vadd.f32 0.0, %v1224
  %1226 = vmatprep.mubr.f32.mxu0 0.0
  %1227 = vmatmul.mubr.f32.gmra.mrb[0].mxu0 %v1006
  %v1228 = vpop.f32.mrb[0].mxu0
  %v1229 = vadd.f32 0.0, %v1228
  %v1230 = vpop.f32.mrb[0].mxu0
  %v1231 = vadd.f32 0.0, %v1230
  %1232 = vmatprep.mubr.f32.mxu0 0.0
  %1233 = vmatmul.mubr.f32.gmra.mrb[0].mxu0 %v1007
  %v1234 = vpop.f32.mrb[0].mxu0
  %v1235 = vadd.f32 0.0, %v1234
  %v1236 = vpop.f32.mrb[0].mxu0
  %v1237 = vadd.f32 0.0, %v1236
  %1238 = vmatprep.mubr.f32.mxu0 0.0
  %1239 = vmatmul.mubr.f32.gmra.mrb[0].mxu0 %v1008
  %v1240 = vpop.f32.mrb[0].mxu0
  %v1241 = vadd.f32 0.0, %v1240
  %v1242 = vpop.f32.mrb[0].mxu0
  %v1243 = vadd.f32 0.0, %v1242
  %1244 = vmatprep.mubr.f32.mxu0 0.0
  %1245 = vmatmul.mubr.f32.gmra.mrb[0].mxu0 %v1009
  %v1246 = vpop.f32.mrb[0].mxu0
  %v1247 = vadd.f32 0.0, %v1246
  %v1248 = vpop.f32.mrb[0].mxu0
  %v1249 = vadd.f32 0.0, %v1248
  %1250 = vmatprep.mubr.f32.mxu0 0.0
  %1251 = vmatmul.mubr.f32.gmra.mrb[0].mxu0 %v1010
  %v1252 = vpop.f32.mrb[0].mxu0
  %v1253 = vadd.f32 0.0, %v1252
  %v1254 = vpop.f32.mrb[0].mxu0
  %v1255 = vadd.f32 0.0, %v1254
  %1256 = vmatprep.mubr.f32.mxu0 0.0
  %1257 = vmatmul.mubr.f32.gmra.mrb[0].mxu0 %v1011
  %v1258 = vpop.f32.mrb[0].mxu0
  %v1259 = vadd.f32 0.0, %v1258
  %v1260 = vpop.f32.mrb[0].mxu0
  %v1261 = vadd.f32 0.0, %v1260
  %1262 = vmatprep.mubr.f32.mxu0 0.0
  %1263 = vmatmul.mubr.f32.gmra.mrb[0].mxu0 %v1012
  %v1264 = vpop.f32.mrb[0].mxu0
  %v1265 = vadd.f32 0.0, %v1264
  %v1266 = vpop.f32.mrb[0].mxu0
  %v1267 = vadd.f32 0.0, %v1266
  %1268 = vmatprep.mubr.f32.mxu0 0.0
  %1269 = vmatmul.mubr.f32.gmra.mrb[0].mxu0 %v1013
  %v1270 = vpop.f32.mrb[0].mxu0
  %v1271 = vadd.f32 0.0, %v1270
  %v1272 = vpop.f32.mrb[0].mxu0
  %v1273 = vadd.f32 0.0, %v1272
  %1274 = vmatprep.mubr.f32.mxu0 0.0
  %1275 = vmatmul.mubr.f32.gmra.mrb[0].mxu0 %v1014
  %v1276 = vpop.f32.mrb[0].mxu0
  %v1277 = vadd.f32 0.0, %v1276
  %v1278 = vpop.f32.mrb[0].mxu0
  %v1279 = vadd.f32 0.0, %v1278
  %1280 = vdwg.mxu0
  %v1281 = vadd.f32 %v930, %v1115
  %v1282 = vadd.f32 %v931, %v1117
  %v1283 = vadd.f32 %v932, %v1121
  %v1284 = vadd.f32 %v933, %v1123
  %v1285 = vadd.f32 %v934, %v1127
  %v1286 = vadd.f32 %v935, %v1129
  %v1287 = vadd.f32 %v936, %v1133
  %v1288 = vadd.f32 %v937, %v1135
  %v1289 = vadd.f32 %v938, %v1139
  %v1290 = vadd.f32 %v939, %v1141
  %v1291 = vadd.f32 %v940, %v1145
  %v1292 = vadd.f32 %v941, %v1147
  %v1293 = vadd.f32 %v942, %v1151
  %v1294 = vadd.f32 %v943, %v1153
  %v1295 = vadd.f32 %v944, %v1157
  %v1296 = vadd.f32 %v945, %v1159
  %v1297 = vadd.f32 %v946, %v1163
  %v1298 = vadd.f32 %v947, %v1165
  %v1299 = vadd.f32 %v948, %v1169
  %v1300 = vadd.f32 %v949, %v1171
  %v1301 = vadd.f32 %v950, %v1175
  %v1302 = vadd.f32 %v951, %v1177
  %v1303 = vadd.f32 %v952, %v1181
  %v1304 = vadd.f32 %v953, %v1183
  %v1305 = vadd.f32 %v954, %v1187
  %v1306 = vadd.f32 %v955, %v1189
  %v1307 = vadd.f32 %v956, %v1193
  %v1308 = vadd.f32 %v957, %v1195
  %v1309 = vadd.f32 %v958, %v1199
  %v1310 = vadd.f32 %v959, %v1201
  %v1311 = vadd.f32 %v960, %v1205
  %v1312 = vadd.f32 %v961, %v1207
  %v1313 = vadd.f32 %v962, %v1211
  %v1314 = vadd.f32 %v963, %v1213
  %v1315 = vadd.f32 %v964, %v1217
  %v1316 = vadd.f32 %v965, %v1219
  %v1317 = vadd.f32 %v966, %v1223
  %v1318 = vadd.f32 %v967, %v1225
  %v1319 = vadd.f32 %v968, %v1229
  %v1320 = vadd.f32 %v969, %v1231
  %v1321 = vadd.f32 %v970, %v1235
  %v1322 = vadd.f32 %v971, %v1237
  %v1323 = vadd.f32 %v972, %v1241
  %v1324 = vadd.f32 %v973, %v1243
  %v1325 = vadd.f32 %v974, %v1247
  %v1326 = vadd.f32 %v975, %v1249
  %v1327 = vadd.f32 %v976, %v1253
  %v1328 = vadd.f32 %v977, %v1255
  %v1329 = vadd.f32 %v978, %v1259
  %v1330 = vadd.f32 %v979, %v1261
  %v1331 = vadd.f32 %v980, %v1265
  %v1332 = vadd.f32 %v981, %v1267
  %v1333 = vadd.f32 %v982, %v1271
  %v1334 = vadd.f32 %v983, %v1273
  %v1335 = vadd.f32 %v984, %v1277
  %v1336 = vadd.f32 %v985, %v1279
  %s1337 = scalar_lea.vmem %s0, 32
  %v1338 = vld [vmem:[%s1337] sm:$0xff]
  %v1339 = vld [vmem:[%s1337 + $0x8] sm:$0xff]
  %v1340 = vld [vmem:[%s1337 + $0x10] sm:$0xff]
  %v1341 = vld [vmem:[%s1337 + $0x18] sm:$0xff]
  %v1342 = vld [vmem:[%s1337 + $0x20] sm:$0xff]
  %v1343 = vld [vmem:[%s1337 + $0x28] sm:$0xff]
  %v1344 = vld [vmem:[%s1337 + $0x30] sm:$0xff]
  %v1345 = vld [vmem:[%s1337 + $0x38] sm:$0xff]
  %v1346 = vld [vmem:[%s1337 + $0x40] sm:$0xff]
  %v1347 = vld [vmem:[%s1337 + $0x48] sm:$0xff]
  %v1348 = vld [vmem:[%s1337 + $0x50] sm:$0xff]
  %v1349 = vld [vmem:[%s1337 + $0x58] sm:$0xff]
  %v1350 = vld [vmem:[%s1337 + $0x60] sm:$0xff]
  %v1351 = vld [vmem:[%s1337 + $0x68] sm:$0xff]
  %v1352 = vld [vmem:[%s1337 + $0x70] sm:$0xff]
  %v1353 = vld [vmem:[%s1337 + $0x78] sm:$0xff]
  %v1354 = vld [vmem:[%s1337 + $0x80] sm:$0xff]
  %v1355 = vld [vmem:[%s1337 + $0x88] sm:$0xff]
  %v1356 = vld [vmem:[%s1337 + $0x90] sm:$0xff]
  %v1357 = vld [vmem:[%s1337 + $0x98] sm:$0xff]
  %v1358 = vld [vmem:[%s1337 + $0xa0] sm:$0xff]
  %v1359 = vld [vmem:[%s1337 + $0xa8] sm:$0xff]
  %v1360 = vld [vmem:[%s1337 + $0xb0] sm:$0xff]
  %v1361 = vld [vmem:[%s1337 + $0xb8] sm:$0xff]
  %v1362 = vld [vmem:[%s1337 + $0xc0] sm:$0xff]
  %v1363 = vld [vmem:[%s1337 + $0xc8] sm:$0xff]
  %v1364 = vld [vmem:[%s1337 + $0xd0] sm:$0xff]
  %v1365 = vld [vmem:[%s1337 + $0xd8] sm:$0xff]
  %s1366 = scalar_lea.vmem %s1, 1024
  %v1367 = vld [vmem:[%s1366] sm:$0xff]
  %v1368 = vld [vmem:[%s1366 + $0x8] sm:$0xff]
  %v1369 = vld [vmem:[%s1366 + $0x10] sm:$0xff]
  %v1370 = vld [vmem:[%s1366 + $0x18] sm:$0xff]
  %v1371 = vld [vmem:[%s1366 + $0x20] sm:$0xff]
  %v1372 = vld [vmem:[%s1366 + $0x28] sm:$0xff]
  %v1373 = vld [vmem:[%s1366 + $0x30] sm:$0xff]
  %v1374 = vld [vmem:[%s1366 + $0x38] sm:$0xff]
  %v1375 = vld [vmem:[%s1366 + $0x40] sm:$0xff]
  %v1376 = vld [vmem:[%s1366 + $0x48] sm:$0xff]
  %v1377 = vld [vmem:[%s1366 + $0x50] sm:$0xff]
  %v1378 = vld [vmem:[%s1366 + $0x58] sm:$0xff]
  %v1379 = vld [vmem:[%s1366 + $0x60] sm:$0xff]
  %v1380 = vld [vmem:[%s1366 + $0x68] sm:$0xff]
  %v1381 = vld [vmem:[%s1366 + $0x70] sm:$0xff]
  %v1382 = vld [vmem:[%s1366 + $0x78] sm:$0xff]
  %v1383 = vld [vmem:[%s1366 + $0x80] sm:$0xff]
  %v1384 = vld [vmem:[%s1366 + $0x88] sm:$0xff]
  %v1385 = vld [vmem:[%s1366 + $0x90] sm:$0xff]
  %v1386 = vld [vmem:[%s1366 + $0x98] sm:$0xff]
  %v1387 = vld [vmem:[%s1366 + $0xa0] sm:$0xff]
  %v1388 = vld [vmem:[%s1366 + $0xa8] sm:$0xff]
  %v1389 = vld [vmem:[%s1366 + $0xb0] sm:$0xff]
  %v1390 = vld [vmem:[%s1366 + $0xb8] sm:$0xff]
  %v1391 = vld [vmem:[%s1366 + $0xc0] sm:$0xff]
  %v1392 = vld [vmem:[%s1366 + $0xc8] sm:$0xff]
  %v1393 = vld [vmem:[%s1366 + $0xd0] sm:$0xff]
  %v1394 = vld [vmem:[%s1366 + $0xd8] sm:$0xff]
  %v1395 = vld [vmem:[%s1366 + $0xe0] sm:$0xff]
  %v1396 = vld [vmem:[%s1366 + $0xe8] sm:$0xff]
  %v1397 = vld [vmem:[%s1366 + $0xf0] sm:$0xff]
  %v1398 = vld [vmem:[%s1366 + $0xf8] sm:$0xff]
  %1399 = vmatprep.subr.mxu0 %v1368
  %1400 = vmatpush1.msra.mxu0 %v1367
  %1401 = vmatprep.subr.mxu0 %v1370
  %1402 = vmatpush1.msra.mxu0 %v1369
  %1403 = vmatprep.subr.mxu0 %v1372
  %1404 = vmatpush1.msra.mxu0 %v1371
  %1405 = vmatprep.subr.mxu0 %v1374
  %1406 = vmatpush1.msra.mxu0 %v1373
  %1407 = vmatprep.subr.mxu0 %v1376
  %1408 = vmatpush1.msra.mxu0 %v1375
  %1409 = vmatprep.subr.mxu0 %v1378
  %1410 = vmatpush1.msra.mxu0 %v1377
  %1411 = vmatprep.subr.mxu0 %v1380
  %1412 = vmatpush1.msra.mxu0 %v1379
  %1413 = vmatprep.subr.mxu0 %v1382
  %1414 = vmatpush1.msra.mxu0 %v1381
  %1415 = vmatprep.subr.mxu0 %v1384
  %1416 = vmatpush1.msra.mxu0 %v1383
  %1417 = vmatprep.subr.mxu0 %v1386
  %1418 = vmatpush1.msra.mxu0 %v1385
  %1419 = vmatprep.subr.mxu0 %v1388
  %1420 = vmatpush1.msra.mxu0 %v1387
  %1421 = vmatprep.subr.mxu0 %v1390
  %1422 = vmatpush1.msra.mxu0 %v1389
  %1423 = vmatprep.subr.mxu0 %v1392
  %1424 = vmatpush1.msra.mxu0 %v1391
  %1425 = vmatprep.subr.mxu0 %v1394
  %1426 = vmatpush1.msra.mxu0 %v1393
  %1427 = vmatprep.subr.mxu0 %v1396
  %1428 = vmatpush1.msra.mxu0 %v1395
  %1429 = vmatprep.subr.mxu0 %v1398
  %1430 = vmatpush1.msra.mxu0 %v1397
  %1431 = vmatprep.subr.mxu0 0.0
  %1432 = vmatpush1.msra.mxu0 0.0
  %1433 = vmatprep.subr.mxu0 0.0
  %1434 = vmatpush1.msra.mxu0 0.0
  %1435 = vmatprep.subr.mxu0 0.0
  %1436 = vmatpush1.msra.mxu0 0.0
  %1437 = vmatprep.subr.mxu0 0.0
  %1438 = vmatpush1.msra.mxu0 0.0
  %1439 = vmatprep.subr.mxu0 0.0
  %1440 = vmatpush1.msra.mxu0 0.0
  %1441 = vmatprep.subr.mxu0 0.0
  %1442 = vmatpush1.msra.mxu0 0.0
  %1443 = vmatprep.subr.mxu0 0.0
  %1444 = vmatpush1.msra.mxu0 0.0
  %1445 = vmatprep.subr.mxu0 0.0
  %1446 = vmatpush1.msra.mxu0 0.0
  %1447 = vmatprep.subr.mxu0 0.0
  %1448 = vmatpush1.msra.mxu0 0.0
  %1449 = vmatprep.subr.mxu0 0.0
  %1450 = vmatpush1.msra.mxu0 0.0
  %1451 = vmatprep.subr.mxu0 0.0
  %1452 = vmatpush1.msra.mxu0 0.0
  %1453 = vmatprep.subr.mxu0 0.0
  %1454 = vmatpush1.msra.mxu0 0.0
  %1455 = vmatprep.subr.mxu0 0.0
  %1456 = vmatpush1.msra.mxu0 0.0
  %1457 = vmatprep.subr.mxu0 0.0
  %1458 = vmatpush1.msra.mxu0 0.0
  %1459 = vmatprep.subr.mxu0 0.0
  %1460 = vmatpush1.msra.mxu0 0.0
  %1461 = vmatprep.subr.mxu0 0.0
  %1462 = vmatpush1.msra.mxu0 0.0
  %1463 = vmatprep.mubr.f32.mxu0 0.0
  %1464 = vmatmul.mubr.f32.gmra.mrb[0].mxu0 %v1338
  %v1465 = vpop.f32.mrb[0].mxu0
  %v1466 = vadd.f32 0.0, %v1465
  %v1467 = vpop.f32.mrb[0].mxu0
  %v1468 = vadd.f32 0.0, %v1467
  %1469 = vmatprep.mubr.f32.mxu0 0.0
  %1470 = vmatmul.mubr.f32.gmra.mrb[0].mxu0 %v1339
  %v1471 = vpop.f32.mrb[0].mxu0
  %v1472 = vadd.f32 0.0, %v1471
  %v1473 = vpop.f32.mrb[0].mxu0
  %v1474 = vadd.f32 0.0, %v1473
  %1475 = vmatprep.mubr.f32.mxu0 0.0
  %1476 = vmatmul.mubr.f32.gmra.mrb[0].mxu0 %v1340
  %v1477 = vpop.f32.mrb[0].mxu0
  %v1478 = vadd.f32 0.0, %v1477
  %v1479 = vpop.f32.mrb[0].mxu0
  %v1480 = vadd.f32 0.0, %v1479
  %1481 = vmatprep.mubr.f32.mxu0 0.0
  %1482 = vmatmul.mubr.f32.gmra.mrb[0].mxu0 %v1341
  %v1483 = vpop.f32.mrb[0].mxu0
  %v1484 = vadd.f32 0.0, %v1483
  %v1485 = vpop.f32.mrb[0].mxu0
  %v1486 = vadd.f32 0.0, %v1485
  %1487 = vmatprep.mubr.f32.mxu0 0.0
  %1488 = vmatmul.mubr.f32.gmra.mrb[0].mxu0 %v1342
  %v1489 = vpop.f32.mrb[0].mxu0
  %v1490 = vadd.f32 0.0, %v1489
  %v1491 = vpop.f32.mrb[0].mxu0
  %v1492 = vadd.f32 0.0, %v1491
  %1493 = vmatprep.mubr.f32.mxu0 0.0
  %1494 = vmatmul.mubr.f32.gmra.mrb[0].mxu0 %v1343
  %v1495 = vpop.f32.mrb[0].mxu0
  %v1496 = vadd.f32 0.0, %v1495
  %v1497 = vpop.f32.mrb[0].mxu0
  %v1498 = vadd.f32 0.0, %v1497
  %1499 = vmatprep.mubr.f32.mxu0 0.0
  %1500 = vmatmul.mubr.f32.gmra.mrb[0].mxu0 %v1344
  %v1501 = vpop.f32.mrb[0].mxu0
  %v1502 = vadd.f32 0.0, %v1501
  %v1503 = vpop.f32.mrb[0].mxu0
  %v1504 = vadd.f32 0.0, %v1503
  %1505 = vmatprep.mubr.f32.mxu0 0.0
  %1506 = vmatmul.mubr.f32.gmra.mrb[0].mxu0 %v1345
  %v1507 = vpop.f32.mrb[0].mxu0
  %v1508 = vadd.f32 0.0, %v1507
  %v1509 = vpop.f32.mrb[0].mxu0
  %v1510 = vadd.f32 0.0, %v1509
  %1511 = vmatprep.mubr.f32.mxu0 0.0
  %1512 = vmatmul.mubr.f32.gmra.mrb[0].mxu0 %v1346
  %v1513 = vpop.f32.mrb[0].mxu0
  %v1514 = vadd.f32 0.0, %v1513
  %v1515 = vpop.f32.mrb[0].mxu0
  %v1516 = vadd.f32 0.0, %v1515
  %1517 = vmatprep.mubr.f32.mxu0 0.0
  %1518 = vmatmul.mubr.f32.gmra.mrb[0].mxu0 %v1347
  %v1519 = vpop.f32.mrb[0].mxu0
  %v1520 = vadd.f32 0.0, %v1519
  %v1521 = vpop.f32.mrb[0].mxu0
  %v1522 = vadd.f32 0.0, %v1521
  %1523 = vmatprep.mubr.f32.mxu0 0.0
  %1524 = vmatmul.mubr.f32.gmra.mrb[0].mxu0 %v1348
  %v1525 = vpop.f32.mrb[0].mxu0
  %v1526 = vadd.f32 0.0, %v1525
  %v1527 = vpop.f32.mrb[0].mxu0
  %v1528 = vadd.f32 0.0, %v1527
  %1529 = vmatprep.mubr.f32.mxu0 0.0
  %1530 = vmatmul.mubr.f32.gmra.mrb[0].mxu0 %v1349
  %v1531 = vpop.f32.mrb[0].mxu0
  %v1532 = vadd.f32 0.0, %v1531
  %v1533 = vpop.f32.mrb[0].mxu0
  %v1534 = vadd.f32 0.0, %v1533
  %1535 = vmatprep.mubr.f32.mxu0 0.0
  %1536 = vmatmul.mubr.f32.gmra.mrb[0].mxu0 %v1350
  %v1537 = vpop.f32.mrb[0].mxu0
  %v1538 = vadd.f32 0.0, %v1537
  %v1539 = vpop.f32.mrb[0].mxu0
  %v1540 = vadd.f32 0.0, %v1539
  %1541 = vmatprep.mubr.f32.mxu0 0.0
  %1542 = vmatmul.mubr.f32.gmra.mrb[0].mxu0 %v1351
  %v1543 = vpop.f32.mrb[0].mxu0
  %v1544 = vadd.f32 0.0, %v1543
  %v1545 = vpop.f32.mrb[0].mxu0
  %v1546 = vadd.f32 0.0, %v1545
  %1547 = vmatprep.mubr.f32.mxu0 0.0
  %1548 = vmatmul.mubr.f32.gmra.mrb[0].mxu0 %v1352
  %v1549 = vpop.f32.mrb[0].mxu0
  %v1550 = vadd.f32 0.0, %v1549
  %v1551 = vpop.f32.mrb[0].mxu0
  %v1552 = vadd.f32 0.0, %v1551
  %1553 = vmatprep.mubr.f32.mxu0 0.0
  %1554 = vmatmul.mubr.f32.gmra.mrb[0].mxu0 %v1353
  %v1555 = vpop.f32.mrb[0].mxu0
  %v1556 = vadd.f32 0.0, %v1555
  %v1557 = vpop.f32.mrb[0].mxu0
  %v1558 = vadd.f32 0.0, %v1557
  %1559 = vmatprep.mubr.f32.mxu0 0.0
  %1560 = vmatmul.mubr.f32.gmra.mrb[0].mxu0 %v1354
  %v1561 = vpop.f32.mrb[0].mxu0
  %v1562 = vadd.f32 0.0, %v1561
  %v1563 = vpop.f32.mrb[0].mxu0
  %v1564 = vadd.f32 0.0, %v1563
  %1565 = vmatprep.mubr.f32.mxu0 0.0
  %1566 = vmatmul.mubr.f32.gmra.mrb[0].mxu0 %v1355
  %v1567 = vpop.f32.mrb[0].mxu0
  %v1568 = vadd.f32 0.0, %v1567
  %v1569 = vpop.f32.mrb[0].mxu0
  %v1570 = vadd.f32 0.0, %v1569
  %1571 = vmatprep.mubr.f32.mxu0 0.0
  %1572 = vmatmul.mubr.f32.gmra.mrb[0].mxu0 %v1356
  %v1573 = vpop.f32.mrb[0].mxu0
  %v1574 = vadd.f32 0.0, %v1573
  %v1575 = vpop.f32.mrb[0].mxu0
  %v1576 = vadd.f32 0.0, %v1575
  %1577 = vmatprep.mubr.f32.mxu0 0.0
  %1578 = vmatmul.mubr.f32.gmra.mrb[0].mxu0 %v1357
  %v1579 = vpop.f32.mrb[0].mxu0
  %v1580 = vadd.f32 0.0, %v1579
  %v1581 = vpop.f32.mrb[0].mxu0
  %v1582 = vadd.f32 0.0, %v1581
  %1583 = vmatprep.mubr.f32.mxu0 0.0
  %1584 = vmatmul.mubr.f32.gmra.mrb[0].mxu0 %v1358
  %v1585 = vpop.f32.mrb[0].mxu0
  %v1586 = vadd.f32 0.0, %v1585
  %v1587 = vpop.f32.mrb[0].mxu0
  %v1588 = vadd.f32 0.0, %v1587
  %1589 = vmatprep.mubr.f32.mxu0 0.0
  %1590 = vmatmul.mubr.f32.gmra.mrb[0].mxu0 %v1359
  %v1591 = vpop.f32.mrb[0].mxu0
  %v1592 = vadd.f32 0.0, %v1591
  %v1593 = vpop.f32.mrb[0].mxu0
  %v1594 = vadd.f32 0.0, %v1593
  %1595 = vmatprep.mubr.f32.mxu0 0.0
  %1596 = vmatmul.mubr.f32.gmra.mrb[0].mxu0 %v1360
  %v1597 = vpop.f32.mrb[0].mxu0
  %v1598 = vadd.f32 0.0, %v1597
  %v1599 = vpop.f32.mrb[0].mxu0
  %v1600 = vadd.f32 0.0, %v1599
  %1601 = vmatprep.mubr.f32.mxu0 0.0
  %1602 = vmatmul.mubr.f32.gmra.mrb[0].mxu0 %v1361
  %v1603 = vpop.f32.mrb[0].mxu0
  %v1604 = vadd.f32 0.0, %v1603
  %v1605 = vpop.f32.mrb[0].mxu0
  %v1606 = vadd.f32 0.0, %v1605
  %1607 = vmatprep.mubr.f32.mxu0 0.0
  %1608 = vmatmul.mubr.f32.gmra.mrb[0].mxu0 %v1362
  %v1609 = vpop.f32.mrb[0].mxu0
  %v1610 = vadd.f32 0.0, %v1609
  %v1611 = vpop.f32.mrb[0].mxu0
  %v1612 = vadd.f32 0.0, %v1611
  %1613 = vmatprep.mubr.f32.mxu0 0.0
  %1614 = vmatmul.mubr.f32.gmra.mrb[0].mxu0 %v1363
  %v1615 = vpop.f32.mrb[0].mxu0
  %v1616 = vadd.f32 0.0, %v1615
  %v1617 = vpop.f32.mrb[0].mxu0
  %v1618 = vadd.f32 0.0, %v1617
  %1619 = vmatprep.mubr.f32.mxu0 0.0
  %1620 = vmatmul.mubr.f32.gmra.mrb[0].mxu0 %v1364
  %v1621 = vpop.f32.mrb[0].mxu0
  %v1622 = vadd.f32 0.0, %v1621
  %v1623 = vpop.f32.mrb[0].mxu0
  %v1624 = vadd.f32 0.0, %v1623
  %1625 = vmatprep.mubr.f32.mxu0 0.0
  %1626 = vmatmul.mubr.f32.gmra.mrb[0].mxu0 %v1365
  %v1627 = vpop.f32.mrb[0].mxu0
  %v1628 = vadd.f32 0.0, %v1627
  %v1629 = vpop.f32.mrb[0].mxu0
  %v1630 = vadd.f32 0.0, %v1629
  %1631 = vdwg.mxu0
  %v1632 = vadd.f32 %v1281, %v1466
  %v1633 = vadd.f32 %v1282, %v1468
  %v1634 = vadd.f32 %v1283, %v1472
  %v1635 = vadd.f32 %v1284, %v1474
  %v1636 = vadd.f32 %v1285, %v1478
  %v1637 = vadd.f32 %v1286, %v1480
  %v1638 = vadd.f32 %v1287, %v1484
  %v1639 = vadd.f32 %v1288, %v1486
  %v1640 = vadd.f32 %v1289, %v1490
  %v1641 = vadd.f32 %v1290, %v1492
  %v1642 = vadd.f32 %v1291, %v1496
  %v1643 = vadd.f32 %v1292, %v1498
  %v1644 = vadd.f32 %v1293, %v1502
  %v1645 = vadd.f32 %v1294, %v1504
  %v1646 = vadd.f32 %v1295, %v1508
  %v1647 = vadd.f32 %v1296, %v1510
  %v1648 = vadd.f32 %v1297, %v1514
  %v1649 = vadd.f32 %v1298, %v1516
  %v1650 = vadd.f32 %v1299, %v1520
  %v1651 = vadd.f32 %v1300, %v1522
  %v1652 = vadd.f32 %v1301, %v1526
  %v1653 = vadd.f32 %v1302, %v1528
  %v1654 = vadd.f32 %v1303, %v1532
  %v1655 = vadd.f32 %v1304, %v1534
  %v1656 = vadd.f32 %v1305, %v1538
  %v1657 = vadd.f32 %v1306, %v1540
  %v1658 = vadd.f32 %v1307, %v1544
  %v1659 = vadd.f32 %v1308, %v1546
  %v1660 = vadd.f32 %v1309, %v1550
  %v1661 = vadd.f32 %v1310, %v1552
  %v1662 = vadd.f32 %v1311, %v1556
  %v1663 = vadd.f32 %v1312, %v1558
  %v1664 = vadd.f32 %v1313, %v1562
  %v1665 = vadd.f32 %v1314, %v1564
  %v1666 = vadd.f32 %v1315, %v1568
  %v1667 = vadd.f32 %v1316, %v1570
  %v1668 = vadd.f32 %v1317, %v1574
  %v1669 = vadd.f32 %v1318, %v1576
  %v1670 = vadd.f32 %v1319, %v1580
  %v1671 = vadd.f32 %v1320, %v1582
  %v1672 = vadd.f32 %v1321, %v1586
  %v1673 = vadd.f32 %v1322, %v1588
  %v1674 = vadd.f32 %v1323, %v1592
  %v1675 = vadd.f32 %v1324, %v1594
  %v1676 = vadd.f32 %v1325, %v1598
  %v1677 = vadd.f32 %v1326, %v1600
  %v1678 = vadd.f32 %v1327, %v1604
  %v1679 = vadd.f32 %v1328, %v1606
  %v1680 = vadd.f32 %v1329, %v1610
  %v1681 = vadd.f32 %v1330, %v1612
  %v1682 = vadd.f32 %v1331, %v1616
  %v1683 = vadd.f32 %v1332, %v1618
  %v1684 = vadd.f32 %v1333, %v1622
  %v1685 = vadd.f32 %v1334, %v1624
  %v1686 = vadd.f32 %v1335, %v1628
  %v1687 = vadd.f32 %v1336, %v1630
  %v1688 = vmax.f32 %v1632, 0.0
  %v1689 = vmax.f32 %v1633, 0.0
  %v1690 = vmax.f32 %v1634, 0.0
  %v1691 = vmax.f32 %v1635, 0.0
  %v1692 = vmax.f32 %v1636, 0.0
  %v1693 = vmax.f32 %v1637, 0.0
  %v1694 = vmax.f32 %v1638, 0.0
  %v1695 = vmax.f32 %v1639, 0.0
  %v1696 = vmax.f32 %v1640, 0.0
  %v1697 = vmax.f32 %v1641, 0.0
  %v1698 = vmax.f32 %v1642, 0.0
  %v1699 = vmax.f32 %v1643, 0.0
  %v1700 = vmax.f32 %v1644, 0.0
  %v1701 = vmax.f32 %v1645, 0.0
  %v1702 = vmax.f32 %v1646, 0.0
  %v1703 = vmax.f32 %v1647, 0.0
  %v1704 = vmax.f32 %v1648, 0.0
  %v1705 = vmax.f32 %v1649, 0.0
  %v1706 = vmax.f32 %v1650, 0.0
  %v1707 = vmax.f32 %v1651, 0.0
  %v1708 = vmax.f32 %v1652, 0.0
  %v1709 = vmax.f32 %v1653, 0.0
  %v1710 = vmax.f32 %v1654, 0.0
  %v1711 = vmax.f32 %v1655, 0.0
  %v1712 = vmax.f32 %v1656, 0.0
  %v1713 = vmax.f32 %v1657, 0.0
  %v1714 = vmax.f32 %v1658, 0.0
  %v1715 = vmax.f32 %v1659, 0.0
  %v1716 = vmax.f32 %v1660, 0.0
  %v1717 = vmax.f32 %v1661, 0.0
  %v1718 = vmax.f32 %v1662, 0.0
  %v1719 = vmax.f32 %v1663, 0.0
  %v1720 = vmax.f32 %v1664, 0.0
  %v1721 = vmax.f32 %v1665, 0.0
  %v1722 = vmax.f32 %v1666, 0.0
  %v1723 = vmax.f32 %v1667, 0.0
  %v1724 = vmax.f32 %v1668, 0.0
  %v1725 = vmax.f32 %v1669, 0.0
  %v1726 = vmax.f32 %v1670, 0.0
  %v1727 = vmax.f32 %v1671, 0.0
  %v1728 = vmax.f32 %v1672, 0.0
  %v1729 = vmax.f32 %v1673, 0.0
  %v1730 = vmax.f32 %v1674, 0.0
  %v1731 = vmax.f32 %v1675, 0.0
  %v1732 = vmax.f32 %v1676, 0.0
  %v1733 = vmax.f32 %v1677, 0.0
  %v1734 = vmax.f32 %v1678, 0.0
  %v1735 = vmax.f32 %v1679, 0.0
  %v1736 = vmax.f32 %v1680, 0.0
  %v1737 = vmax.f32 %v1681, 0.0
  %v1738 = vmax.f32 %v1682, 0.0
  %v1739 = vmax.f32 %v1683, 0.0
  %v1740 = vmax.f32 %v1684, 0.0
  %v1741 = vmax.f32 %v1685, 0.0
  %v1742 = vmax.f32 %v1686, 0.0
  %v1743 = vmax.f32 %v1687, 0.0
  %v1744 = vmax.f32 %v1688, %v1690
  %v1745 = vmax.f32 %v1689, %v1691
  %v1746 = vmax.f32 %v1692, %v1694
  %v1747 = vmax.f32 %v1693, %v1695
  %v1748 = vmax.f32 %v1696, %v1698
  %v1749 = vmax.f32 %v1697, %v1699
  %v1750 = vmax.f32 %v1700, %v1702
  %v1751 = vmax.f32 %v1701, %v1703
  %v1752 = vmax.f32 %v1704, %v1706
  %v1753 = vmax.f32 %v1705, %v1707
  %v1754 = vmax.f32 %v1708, %v1710
  %v1755 = vmax.f32 %v1709, %v1711
  %v1756 = vmax.f32 %v1712, %v1714
  %v1757 = vmax.f32 %v1713, %v1715
  %v1758 = vmax.f32 %v1716, %v1718
  %v1759 = vmax.f32 %v1717, %v1719
  %v1760 = vmax.f32 %v1720, %v1722
  %v1761 = vmax.f32 %v1721, %v1723
  %v1762 = vmax.f32 %v1724, %v1726
  %v1763 = vmax.f32 %v1725, %v1727
  %v1764 = vmax.f32 %v1728, %v1730
  %v1765 = vmax.f32 %v1729, %v1731
  %v1766 = vmax.f32 %v1732, %v1734
  %v1767 = vmax.f32 %v1733, %v1735
  %v1768 = vmax.f32 %v1736, %v1738
  %v1769 = vmax.f32 %v1737, %v1739
  %v1770 = vmax.f32 %v1740, %v1742
  %v1771 = vmax.f32 %v1741, %v1743
  %v1772 = vld [vmem:[%s2] sm:$0xff]
  %v1773 = vld [vmem:[%s2 + $0x8] sm:$0xff]
  %v1774 = vld [vmem:[%s2 + $0x10] sm:$0xff]
  %v1775 = vld [vmem:[%s2 + $0x18] sm:$0xff]
  %v1776 = vld [vmem:[%s2 + $0x20] sm:$0xff]
  %v1777 = vld [vmem:[%s2 + $0x28] sm:$0xff]
  %v1778 = vld [vmem:[%s2 + $0x30] sm:$0xff]
  %v1779 = vld [vmem:[%s2 + $0x38] sm:$0xff]
  %v1780 = vld [vmem:[%s2 + $0x40] sm:$0xff]
  %v1781 = vld [vmem:[%s2 + $0x48] sm:$0xff]
  %v1782 = vld [vmem:[%s2 + $0x50] sm:$0xff]
  %v1783 = vld [vmem:[%s2 + $0x58] sm:$0xff]
  %v1784 = vld [vmem:[%s2 + $0x60] sm:$0xff]
  %v1785 = vld [vmem:[%s2 + $0x68] sm:$0xff]
  %v1786 = vld [vmem:[%s2 + $0x70] sm:$0xff]
  %v1787 = vld [vmem:[%s2 + $0x78] sm:$0xff]
  %v1788 = vld [vmem:[%s2 + $0x80] sm:$0xff]
  %v1789 = vld [vmem:[%s2 + $0x88] sm:$0xff]
  %v1790 = vld [vmem:[%s2 + $0x90] sm:$0xff]
  %v1791 = vld [vmem:[%s2 + $0x98] sm:$0xff]
  %v1792 = vld [vmem:[%s2 + $0xa0] sm:$0xff]
  %vm1793 = vcmask 326656
  %v1795 = vsel %vm1793, %v1745, 0
  %v1798 = vsel %vm1793, %v1747, 0
  %v1801 = vsel %vm1793, %v1749, 0
  %v1804 = vsel %vm1793, %v1751, 0
  %v1807 = vsel %vm1793, %v1753, 0
  %v1810 = vsel %vm1793, %v1755, 0
  %v1813 = vsel %vm1793, %v1757, 0
  %v1816 = vsel %vm1793, %v1759, 0
  %v1819 = vsel %vm1793, %v1761, 0
  %v1822 = vsel %vm1793, %v1763, 0
  %v1825 = vsel %vm1793, %v1765, 0
  %v1828 = vsel %vm1793, %v1767, 0
  %v1831 = vsel %vm1793, %v1769, 0
  %v1834 = vsel %vm1793, %v1771, 0
  %1836 = vmatprep.subr.mxu0 0.0
  %1837 = vmatpush1.msra.mxu0 %v1772
  %1838 = vmatprep.subr.mxu0 0.0
  %1839 = vmatpush1.msra.mxu0 %v1773
  %1840 = vmatprep.subr.mxu0 0.0
  %1841 = vmatpush1.msra.mxu0 %v1774
  %1842 = vmatprep.subr.mxu0 0.0
  %1843 = vmatpush1.msra.mxu0 %v1775
  %1844 = vmatprep.subr.mxu0 0.0
  %1845 = vmatpush1.msra.mxu0 %v1776
  %1846 = vmatprep.subr.mxu0 0.0
  %1847 = vmatpush1.msra.mxu0 %v1777
  %1848 = vmatprep.subr.mxu0 0.0
  %1849 = vmatpush1.msra.mxu0 %v1778
  %1850 = vmatprep.subr.mxu0 0.0
  %1851 = vmatpush1.msra.mxu0 %v1779
  %1852 = vmatprep.subr.mxu0 0.0
  %1853 = vmatpush1.msra.mxu0 %v1780
  %1854 = vmatprep.subr.mxu0 0.0
  %1855 = vmatpush1.msra.mxu0 %v1781
  %1856 = vmatprep.subr.mxu0 0.0
  %1857 = vmatpush1.msra.mxu0 %v1782
  %1858 = vmatprep.subr.mxu0 0.0
  %1859 = vmatpush1.msra.mxu0 %v1783
  %1860 = vmatprep.subr.mxu0 0.0
  %1861 = vmatpush1.msra.mxu0 %v1784
  %1862 = vmatprep.subr.mxu0 0.0
  %1863 = vmatpush1.msra.mxu0 %v1785
  %1864 = vmatprep.subr.mxu0 0.0
  %1865 = vmatpush1.msra.mxu0 %v1786
  %1866 = vmatprep.subr.mxu0 0.0
  %1867 = vmatpush1.msra.mxu0 %v1787
  %1868 = vmatprep.subr.mxu0 0.0
  %1869 = vmatpush1.msra.mxu0 %v1788
  %1870 = vmatprep.subr.mxu0 0.0
  %1871 = vmatpush1.msra.mxu0 %v1789
  %1872 = vmatprep.subr.mxu0 0.0
  %1873 = vmatpush1.msra.mxu0 %v1790
  %1874 = vmatprep.subr.mxu0 0.0
  %1875 = vmatpush1.msra.mxu0 %v1791
  %1876 = vmatprep.subr.mxu0 0.0
  %1877 = vmatpush1.msra.mxu0 %v1792
  %1878 = vmatprep.subr.mxu0 0.0
  %1879 = vmatpush1.msra.mxu0 0.0
  %1880 = vmatprep.subr.mxu0 0.0
  %1881 = vmatpush1.msra.mxu0 0.0
  %1882 = vmatprep.subr.mxu0 0.0
  %1883 = vmatpush1.msra.mxu0 0.0
  %1884 = vmatprep.subr.mxu0 0.0
  %1885 = vmatpush1.msra.mxu0 0.0
  %1886 = vmatprep.subr.mxu0 0.0
  %1887 = vmatpush1.msra.mxu0 0.0
  %1888 = vmatprep.subr.mxu0 0.0
  %1889 = vmatpush1.msra.mxu0 0.0
  %1890 = vmatprep.subr.mxu0 0.0
  %1891 = vmatpush1.msra.mxu0 0.0
  %1892 = vmatprep.subr.mxu0 0.0
  %1893 = vmatpush1.msra.mxu0 0.0
  %1894 = vmatprep.subr.mxu0 0.0
  %1895 = vmatpush1.msra.mxu0 0.0
  %1896 = vmatprep.subr.mxu0 0.0
  %1897 = vmatpush1.msra.mxu0 0.0
  %1898 = vmatprep.subr.mxu0 0.0
  %1899 = vmatpush1.msra.mxu0 0.0
  %1900 = vmatprep.mubr.f32.mxu0 %v1795
  %1901 = vmatmul.mubr.f32.gmra.mrb[0].mxu0 %v1744
  %v1902 = vpop.f32.mrb[0].mxu0
  %v1903 = vadd.f32 0.0, %v1902
  %v1904 = vpop.f32.mrb[0].mxu0
  %1905 = vmatprep.mubr.f32.mxu0 %v1798
  %1906 = vmatmul.mubr.f32.gmra.mrb[0].mxu0 %v1746
  %v1907 = vpop.f32.mrb[0].mxu0
  %v1908 = vadd.f32 0.0, %v1907
  %v1909 = vpop.f32.mrb[0].mxu0
  %1910 = vmatprep.mubr.f32.mxu0 %v1801
  %1911 = vmatmul.mubr.f32.gmra.mrb[0].mxu0 %v1748
  %v1912 = vpop.f32.mrb[0].mxu0
  %v1913 = vadd.f32 0.0, %v1912
  %v1914 = vpop.f32.mrb[0].mxu0
  %1915 = vmatprep.mubr.f32.mxu0 %v1804
  %1916 = vmatmul.mubr.f32.gmra.mrb[0].mxu0 %v1750
  %v1917 = vpop.f32.mrb[0].mxu0
  %v1918 = vadd.f32 0.0, %v1917
  %v1919 = vpop.f32.mrb[0].mxu0
  %1920 = vmatprep.mubr.f32.mxu0 %v1807
  %1921 = vmatmul.mubr.f32.gmra.mrb[0].mxu0 %v1752
  %v1922 = vpop.f32.mrb[0].mxu0
  %v1923 = vadd.f32 0.0, %v1922
  %v1924 = vpop.f32.mrb[0].mxu0
  %1925 = vmatprep.mubr.f32.mxu0 %v1810
  %1926 = vmatmul.mubr.f32.gmra.mrb[0].mxu0 %v1754
  %v1927 = vpop.f32.mrb[0].mxu0
  %v1928 = vadd.f32 0.0, %v1927
  %v1929 = vpop.f32.mrb[0].mxu0
  %1930 = vmatprep.mubr.f32.mxu0 %v1813
  %1931 = vmatmul.mubr.f32.gmra.mrb[0].mxu0 %v1756
  %v1932 = vpop.f32.mrb[0].mxu0
  %v1933 = vadd.f32 0.0, %v1932
  %v1934 = vpop.f32.mrb[0].mxu0
  %1935 = vmatprep.mubr.f32.mxu0 %v1816
  %1936 = vmatmul.mubr.f32.gmra.mrb[0].mxu0 %v1758
  %v1937 = vpop.f32.mrb[0].mxu0
  %v1938 = vadd.f32 0.0, %v1937
  %v1939 = vpop.f32.mrb[0].mxu0
  %1940 = vmatprep.mubr.f32.mxu0 %v1819
  %1941 = vmatmul.mubr.f32.gmra.mrb[0].mxu0 %v1760
  %v1942 = vpop.f32.mrb[0].mxu0
  %v1943 = vadd.f32 0.0, %v1942
  %v1944 = vpop.f32.mrb[0].mxu0
  %1945 = vmatprep.mubr.f32.mxu0 %v1822
  %1946 = vmatmul.mubr.f32.gmra.mrb[0].mxu0 %v1762
  %v1947 = vpop.f32.mrb[0].mxu0
  %v1948 = vadd.f32 0.0, %v1947
  %v1949 = vpop.f32.mrb[0].mxu0
  %1950 = vmatprep.mubr.f32.mxu0 %v1825
  %1951 = vmatmul.mubr.f32.gmra.mrb[0].mxu0 %v1764
  %v1952 = vpop.f32.mrb[0].mxu0
  %v1953 = vadd.f32 0.0, %v1952
  %v1954 = vpop.f32.mrb[0].mxu0
  %1955 = vmatprep.mubr.f32.mxu0 %v1828
  %1956 = vmatmul.mubr.f32.gmra.mrb[0].mxu0 %v1766
  %v1957 = vpop.f32.mrb[0].mxu0
  %v1958 = vadd.f32 0.0, %v1957
  %v1959 = vpop.f32.mrb[0].mxu0
  %1960 = vmatprep.mubr.f32.mxu0 %v1831
  %1961 = vmatmul.mubr.f32.gmra.mrb[0].mxu0 %v1768
  %v1962 = vpop.f32.mrb[0].mxu0
  %v1963 = vadd.f32 0.0, %v1962
  %v1964 = vpop.f32.mrb[0].mxu0
  %1965 = vmatprep.mubr.f32.mxu0 %v1834
  %1966 = vmatmul.mubr.f32.gmra.mrb[0].mxu0 %v1770
  %v1967 = vpop.f32.mrb[0].mxu0
  %v1968 = vadd.f32 0.0, %v1967
  %v1969 = vpop.f32.mrb[0].mxu0
  %1970 = vdwg.mxu0
  %v1971 = vld [vmem:[%s3] sm:$0xff]
  %v1972 = vld [vmem:[%s3 + $0x8] sm:$0xff]
  %v1973 = vld [vmem:[%s3 + $0x10] sm:$0xff]
  %v1974 = vld [vmem:[%s3 + $0x18] sm:$0xff]
  %v1975 = vld [vmem:[%s3 + $0x20] sm:$0xff]
  %v1976 = vld [vmem:[%s3 + $0x28] sm:$0xff]
  %v1977 = vld [vmem:[%s3 + $0x30] sm:$0xff]
  %v1978 = vld [vmem:[%s3 + $0x38] sm:$0xff]
  %v1979 = vld [vmem:[%s3 + $0x40] sm:$0xff]
  %v1980 = vld [vmem:[%s3 + $0x48] sm:$0xff]
  %v1981 = vld [vmem:[%s3 + $0x50] sm:$0xff]
  %v1982 = vld [vmem:[%s3 + $0x58] sm:$0xff]
  %v1983 = vld [vmem:[%s3 + $0x60] sm:$0xff]
  %v1984 = vld [vmem:[%s3 + $0x68] sm:$0xff]
  %v1985 = vld [vmem:[%s3 + $0x70] sm:$0xff]
  %v1986 = vld [vmem:[%s3 + $0x78] sm:$0xff]
  %v1987 = vld [vmem:[%s3 + $0x80] sm:$0xff]
  %v1988 = vld [vmem:[%s3 + $0x88] sm:$0xff]
  %v1989 = vld [vmem:[%s3 + $0x90] sm:$0xff]
  %v1990 = vld [vmem:[%s3 + $0x98] sm:$0xff]
  %v1991 = vld [vmem:[%s3 + $0xa0] sm:$0xff]
  %1992 = vmatprep.subr.mxu0 0.0
  %1993 = vmatpush1.msra.mxu0 %v1971
  %1994 = vmatprep.subr.mxu0 0.0
  %1995 = vmatpush1.msra.mxu0 %v1972
  %1996 = vmatprep.subr.mxu0 0.0
  %1997 = vmatpush1.msra.mxu0 %v1973
  %1998 = vmatprep.subr.mxu0 0.0
  %1999 = vmatpush1.msra.mxu0 %v1974
  %2000 = vmatprep.subr.mxu0 0.0
  %2001 = vmatpush1.msra.mxu0 %v1975
  %2002 = vmatprep.subr.mxu0 0.0
  %2003 = vmatpush1.msra.mxu0 %v1976
  %2004 = vmatprep.subr.mxu0 0.0
  %2005 = vmatpush1.msra.mxu0 %v1977
  %2006 = vmatprep.subr.mxu0 0.0
  %2007 = vmatpush1.msra.mxu0 %v1978
  %2008 = vmatprep.subr.mxu0 0.0
  %2009 = vmatpush1.msra.mxu0 %v1979
  %2010 = vmatprep.subr.mxu0 0.0
  %2011 = vmatpush1.msra.mxu0 %v1980
  %2012 = vmatprep.subr.mxu0 0.0
  %2013 = vmatpush1.msra.mxu0 %v1981
  %2014 = vmatprep.subr.mxu0 0.0
  %2015 = vmatpush1.msra.mxu0 %v1982
  %2016 = vmatprep.subr.mxu0 0.0
  %2017 = vmatpush1.msra.mxu0 %v1983
  %2018 = vmatprep.subr.mxu0 0.0
  %2019 = vmatpush1.msra.mxu0 %v1984
  %2020 = vmatprep.subr.mxu0 0.0
  %2021 = vmatpush1.msra.mxu0 %v1985
  %2022 = vmatprep.subr.mxu0 0.0
  %2023 = vmatpush1.msra.mxu0 %v1986
  %2024 = vmatprep.subr.mxu0 0.0
  %2025 = vmatpush1.msra.mxu0 %v1987
  %2026 = vmatprep.subr.mxu0 0.0
  %2027 = vmatpush1.msra.mxu0 %v1988
  %2028 = vmatprep.subr.mxu0 0.0
  %2029 = vmatpush1.msra.mxu0 %v1989
  %2030 = vmatprep.subr.mxu0 0.0
  %2031 = vmatpush1.msra.mxu0 %v1990
  %2032 = vmatprep.subr.mxu0 0.0
  %2033 = vmatpush1.msra.mxu0 %v1991
  %2034 = vmatprep.subr.mxu0 0.0
  %2035 = vmatpush1.msra.mxu0 0.0
  %2036 = vmatprep.subr.mxu0 0.0
  %2037 = vmatpush1.msra.mxu0 0.0
  %2038 = vmatprep.subr.mxu0 0.0
  %2039 = vmatpush1.msra.mxu0 0.0
  %2040 = vmatprep.subr.mxu0 0.0
  %2041 = vmatpush1.msra.mxu0 0.0
  %2042 = vmatprep.subr.mxu0 0.0
  %2043 = vmatpush1.msra.mxu0 0.0
  %2044 = vmatprep.subr.mxu0 0.0
  %2045 = vmatpush1.msra.mxu0 0.0
  %2046 = vmatprep.subr.mxu0 0.0
  %2047 = vmatpush1.msra.mxu0 0.0
  %2048 = vmatprep.subr.mxu0 0.0
  %2049 = vmatpush1.msra.mxu0 0.0
  %2050 = vmatprep.subr.mxu0 0.0
  %2051 = vmatpush1.msra.mxu0 0.0
  %2052 = vmatprep.subr.mxu0 0.0
  %2053 = vmatpush1.msra.mxu0 0.0
  %2054 = vmatprep.subr.mxu0 0.0
  %2055 = vmatpush1.msra.mxu0 0.0
  %2056 = vmatprep.mubr.f32.mxu0 %v1795
  %2057 = vmatmul.mubr.f32.gmra.mrb[0].mxu0 %v1744
  %v2058 = vpop.f32.mrb[0].mxu0
  %v2059 = vadd.f32 0.0, %v2058
  %v2060 = vpop.f32.mrb[0].mxu0
  %2061 = vmatprep.mubr.f32.mxu0 %v1798
  %2062 = vmatmul.mubr.f32.gmra.mrb[0].mxu0 %v1746
  %v2063 = vpop.f32.mrb[0].mxu0
  %v2064 = vadd.f32 0.0, %v2063
  %v2065 = vpop.f32.mrb[0].mxu0
  %2066 = vmatprep.mubr.f32.mxu0 %v1801
  %2067 = vmatmul.mubr.f32.gmra.mrb[0].mxu0 %v1748
  %v2068 = vpop.f32.mrb[0].mxu0
  %v2069 = vadd.f32 0.0, %v2068
  %v2070 = vpop.f32.mrb[0].mxu0
  %2071 = vmatprep.mubr.f32.mxu0 %v1804
  %2072 = vmatmul.mubr.f32.gmra.mrb[0].mxu0 %v1750
  %v2073 = vpop.f32.mrb[0].mxu0
  %v2074 = vadd.f32 0.0, %v2073
  %v2075 = vpop.f32.mrb[0].mxu0
  %2076 = vmatprep.mubr.f32.mxu0 %v1807
  %2077 = vmatmul.mubr.f32.gmra.mrb[0].mxu0 %v1752
  %v2078 = vpop.f32.mrb[0].mxu0
  %v2079 = vadd.f32 0.0, %v2078
  %v2080 = vpop.f32.mrb[0].mxu0
  %2081 = vmatprep.mubr.f32.mxu0 %v1810
  %2082 = vmatmul.mubr.f32.gmra.mrb[0].mxu0 %v1754
  %v2083 = vpop.f32.mrb[0].mxu0
  %v2084 = vadd.f32 0.0, %v2083
  %v2085 = vpop.f32.mrb[0].mxu0
  %2086 = vmatprep.mubr.f32.mxu0 %v1813
  %2087 = vmatmul.mubr.f32.gmra.mrb[0].mxu0 %v1756
  %v2088 = vpop.f32.mrb[0].mxu0
  %v2089 = vadd.f32 0.0, %v2088
  %v2090 = vpop.f32.mrb[0].mxu0
  %2091 = vmatprep.mubr.f32.mxu0 %v1816
  %2092 = vmatmul.mubr.f32.gmra.mrb[0].mxu0 %v1758
  %v2093 = vpop.f32.mrb[0].mxu0
  %v2094 = vadd.f32 0.0, %v2093
  %v2095 = vpop.f32.mrb[0].mxu0
  %2096 = vmatprep.mubr.f32.mxu0 %v1819
  %2097 = vmatmul.mubr.f32.gmra.mrb[0].mxu0 %v1760
  %v2098 = vpop.f32.mrb[0].mxu0
  %v2099 = vadd.f32 0.0, %v2098
  %v2100 = vpop.f32.mrb[0].mxu0
  %2101 = vmatprep.mubr.f32.mxu0 %v1822
  %2102 = vmatmul.mubr.f32.gmra.mrb[0].mxu0 %v1762
  %v2103 = vpop.f32.mrb[0].mxu0
  %v2104 = vadd.f32 0.0, %v2103
  %v2105 = vpop.f32.mrb[0].mxu0
  %2106 = vmatprep.mubr.f32.mxu0 %v1825
  %2107 = vmatmul.mubr.f32.gmra.mrb[0].mxu0 %v1764
  %v2108 = vpop.f32.mrb[0].mxu0
  %v2109 = vadd.f32 0.0, %v2108
  %v2110 = vpop.f32.mrb[0].mxu0
  %2111 = vmatprep.mubr.f32.mxu0 %v1828
  %2112 = vmatmul.mubr.f32.gmra.mrb[0].mxu0 %v1766
  %v2113 = vpop.f32.mrb[0].mxu0
  %v2114 = vadd.f32 0.0, %v2113
  %v2115 = vpop.f32.mrb[0].mxu0
  %2116 = vmatprep.mubr.f32.mxu0 %v1831
  %2117 = vmatmul.mubr.f32.gmra.mrb[0].mxu0 %v1768
  %v2118 = vpop.f32.mrb[0].mxu0
  %v2119 = vadd.f32 0.0, %v2118
  %v2120 = vpop.f32.mrb[0].mxu0
  %2121 = vmatprep.mubr.f32.mxu0 %v1834
  %2122 = vmatmul.mubr.f32.gmra.mrb[0].mxu0 %v1770
  %v2123 = vpop.f32.mrb[0].mxu0
  %v2124 = vadd.f32 0.0, %v2123
  %v2125 = vpop.f32.mrb[0].mxu0
  %2126 = vdwg.mxu0
  %v2127 = vmax.f32 %v1903, %v2059
  %v2128 = vmax.f32 %v1908, %v2064
  %v2129 = vmax.f32 %v1913, %v2069
  %v2130 = vmax.f32 %v1918, %v2074
  %v2131 = vmax.f32 %v1923, %v2079
  %v2132 = vmax.f32 %v1928, %v2084
  %v2133 = vmax.f32 %v1933, %v2089
  %v2134 = vmax.f32 %v1938, %v2094
  %v2135 = vmax.f32 %v1943, %v2099
  %v2136 = vmax.f32 %v1948, %v2104
  %v2137 = vmax.f32 %v1953, %v2109
  %v2138 = vmax.f32 %v1958, %v2114
  %v2139 = vmax.f32 %v1963, %v2119
  %v2140 = vmax.f32 %v1968, %v2124
  %v2141 = vld [vmem:[%s4] sm:$0xff]
  %v2142 = vld [vmem:[%s4 + $0x8] sm:$0xff]
  %v2143 = vld [vmem:[%s4 + $0x10] sm:$0xff]
  %v2144 = vld [vmem:[%s4 + $0x18] sm:$0xff]
  %v2145 = vld [vmem:[%s4 + $0x20] sm:$0xff]
  %v2146 = vld [vmem:[%s4 + $0x28] sm:$0xff]
  %v2147 = vld [vmem:[%s4 + $0x30] sm:$0xff]
  %v2148 = vld [vmem:[%s4 + $0x38] sm:$0xff]
  %v2149 = vld [vmem:[%s4 + $0x40] sm:$0xff]
  %v2150 = vld [vmem:[%s4 + $0x48] sm:$0xff]
  %v2151 = vld [vmem:[%s4 + $0x50] sm:$0xff]
  %v2152 = vld [vmem:[%s4 + $0x58] sm:$0xff]
  %v2153 = vld [vmem:[%s4 + $0x60] sm:$0xff]
  %v2154 = vld [vmem:[%s4 + $0x68] sm:$0xff]
  %v2155 = vld [vmem:[%s4 + $0x70] sm:$0xff]
  %v2156 = vld [vmem:[%s4 + $0x78] sm:$0xff]
  %v2157 = vld [vmem:[%s4 + $0x80] sm:$0xff]
  %v2158 = vld [vmem:[%s4 + $0x88] sm:$0xff]
  %v2159 = vld [vmem:[%s4 + $0x90] sm:$0xff]
  %v2160 = vld [vmem:[%s4 + $0x98] sm:$0xff]
  %v2161 = vld [vmem:[%s4 + $0xa0] sm:$0xff]
  %v2162 = vld [vmem:[%s4 + $0xa8] sm:$0xff]
  %v2163 = vld [vmem:[%s4 + $0xb0] sm:$0xff]
  %v2164 = vld [vmem:[%s4 + $0xb8] sm:$0xff]
  %v2165 = vld [vmem:[%s4 + $0xc0] sm:$0xff]
  %v2166 = vld [vmem:[%s4 + $0xc8] sm:$0xff]
  %v2167 = vld [vmem:[%s4 + $0xd0] sm:$0xff]
  %v2168 = vld [vmem:[%s4 + $0xd8] sm:$0xff]
  %v2169 = vld [vmem:[%s4 + $0xe0] sm:$0xff]
  %v2170 = vld [vmem:[%s4 + $0xe8] sm:$0xff]
  %v2171 = vld [vmem:[%s4 + $0xf0] sm:$0xff]
  %v2172 = vld [vmem:[%s4 + $0xf8] sm:$0xff]
  %s2173 = scalar_lea.vmem %s4, 256
  %v2174 = vld [vmem:[%s2173] sm:$0xff]
  %v2175 = vld [vmem:[%s2173 + $0x8] sm:$0xff]
  %v2176 = vld [vmem:[%s2173 + $0x10] sm:$0xff]
  %v2177 = vld [vmem:[%s2173 + $0x18] sm:$0xff]
  %v2178 = vld [vmem:[%s2173 + $0x20] sm:$0xff]
  %v2179 = vld [vmem:[%s2173 + $0x28] sm:$0xff]
  %v2180 = vld [vmem:[%s2173 + $0x30] sm:$0xff]
  %v2181 = vld [vmem:[%s2173 + $0x38] sm:$0xff]
  %v2182 = vld [vmem:[%s2173 + $0x40] sm:$0xff]
  %v2183 = vld [vmem:[%s2173 + $0x48] sm:$0xff]
  %v2184 = vld [vmem:[%s2173 + $0x50] sm:$0xff]
  %v2185 = vld [vmem:[%s2173 + $0x58] sm:$0xff]
  %v2186 = vld [vmem:[%s2173 + $0x60] sm:$0xff]
  %v2187 = vld [vmem:[%s2173 + $0x68] sm:$0xff]
  %v2188 = vld [vmem:[%s2173 + $0x70] sm:$0xff]
  %v2189 = vld [vmem:[%s2173 + $0x78] sm:$0xff]
  %v2190 = vld [vmem:[%s2173 + $0x80] sm:$0xff]
  %v2191 = vld [vmem:[%s2173 + $0x88] sm:$0xff]
  %v2192 = vld [vmem:[%s2173 + $0x90] sm:$0xff]
  %v2193 = vld [vmem:[%s2173 + $0x98] sm:$0xff]
  %v2194 = vld [vmem:[%s2173 + $0xa0] sm:$0xff]
  %v2195 = vld [vmem:[%s2173 + $0xa8] sm:$0xff]
  %v2196 = vld [vmem:[%s2173 + $0xb0] sm:$0xff]
  %v2197 = vld [vmem:[%s2173 + $0xb8] sm:$0xff]
  %v2198 = vld [vmem:[%s2173 + $0xc0] sm:$0xff]
  %v2199 = vld [vmem:[%s2173 + $0xc8] sm:$0xff]
  %v2200 = vld [vmem:[%s2173 + $0xd0] sm:$0xff]
  %v2201 = vld [vmem:[%s2173 + $0xd8] sm:$0xff]
  %v2202 = vld [vmem:[%s2173 + $0xe0] sm:$0xff]
  %v2203 = vld [vmem:[%s2173 + $0xe8] sm:$0xff]
  %v2204 = vld [vmem:[%s2173 + $0xf0] sm:$0xff]
  %v2205 = vld [vmem:[%s2173 + $0xf8] sm:$0xff]
  %2206 = vmatprep.subr.mxu0 %v2175
  %2207 = vmatpush1.msra.mxu0 %v2174
  %2208 = vmatprep.subr.mxu0 %v2177
  %2209 = vmatpush1.msra.mxu0 %v2176
  %2210 = vmatprep.subr.mxu0 %v2179
  %2211 = vmatpush1.msra.mxu0 %v2178
  %2212 = vmatprep.subr.mxu0 %v2181
  %2213 = vmatpush1.msra.mxu0 %v2180
  %2214 = vmatprep.subr.mxu0 %v2183
  %2215 = vmatpush1.msra.mxu0 %v2182
  %2216 = vmatprep.subr.mxu0 %v2185
  %2217 = vmatpush1.msra.mxu0 %v2184
  %2218 = vmatprep.subr.mxu0 %v2187
  %2219 = vmatpush1.msra.mxu0 %v2186
  %2220 = vmatprep.subr.mxu0 %v2189
  %2221 = vmatpush1.msra.mxu0 %v2188
  %2222 = vmatprep.subr.mxu0 %v2191
  %2223 = vmatpush1.msra.mxu0 %v2190
  %2224 = vmatprep.subr.mxu0 %v2193
  %2225 = vmatpush1.msra.mxu0 %v2192
  %2226 = vmatprep.subr.mxu0 %v2195
  %2227 = vmatpush1.msra.mxu0 %v2194
  %2228 = vmatprep.subr.mxu0 %v2197
  %2229 = vmatpush1.msra.mxu0 %v2196
  %2230 = vmatprep.subr.mxu0 %v2199
  %2231 = vmatpush1.msra.mxu0 %v2198
  %2232 = vmatprep.subr.mxu0 %v2201
  %2233 = vmatpush1.msra.mxu0 %v2200
  %2234 = vmatprep.subr.mxu0 %v2203
  %2235 = vmatpush1.msra.mxu0 %v2202
  %2236 = vmatprep.subr.mxu0 %v2205
  %2237 = vmatpush1.msra.mxu0 %v2204
  %2238 = vmatprep.subr.mxu0 0.0
  %2239 = vmatpush1.msra.mxu0 0.0
  %2240 = vmatprep.subr.mxu0 0.0
  %2241 = vmatpush1.msra.mxu0 0.0
  %2242 = vmatprep.subr.mxu0 0.0
  %2243 = vmatpush1.msra.mxu0 0.0
  %2244 = vmatprep.subr.mxu0 0.0
  %2245 = vmatpush1.msra.mxu0 0.0
  %2246 = vmatprep.subr.mxu0 0.0
  %2247 = vmatpush1.msra.mxu0 0.0
  %2248 = vmatprep.subr.mxu0 0.0
  %2249 = vmatpush1.msra.mxu0 0.0
  %2250 = vmatprep.subr.mxu0 0.0
  %2251 = vmatpush1.msra.mxu0 0.0
  %2252 = vmatprep.subr.mxu0 0.0
  %2253 = vmatpush1.msra.mxu0 0.0
  %2254 = vmatprep.subr.mxu0 0.0
  %2255 = vmatpush1.msra.mxu0 0.0
  %2256 = vmatprep.subr.mxu0 0.0
  %2257 = vmatpush1.msra.mxu0 0.0
  %2258 = vmatprep.subr.mxu0 0.0
  %2259 = vmatpush1.msra.mxu0 0.0
  %2260 = vmatprep.subr.mxu0 0.0
  %2261 = vmatpush1.msra.mxu0 0.0
  %2262 = vmatprep.subr.mxu0 0.0
  %2263 = vmatpush1.msra.mxu0 0.0
  %2264 = vmatprep.subr.mxu0 0.0
  %2265 = vmatpush1.msra.mxu0 0.0
  %2266 = vmatprep.subr.mxu0 0.0
  %2267 = vmatpush1.msra.mxu0 0.0
  %2268 = vmatprep.subr.mxu0 0.0
  %2269 = vmatpush1.msra.mxu0 0.0
  %2270 = vmatprep.mubr.f32.mxu0 0.0
  %2271 = vmatmul.mubr.f32.gmra.mrb[0].mxu0 %v2128
  %v2272 = vpop.f32.mrb[0].mxu0
  %v2273 = vadd.f32 0.0, %v2272
  %v2274 = vpop.f32.mrb[0].mxu0
  %v2275 = vadd.f32 0.0, %v2274
  %2276 = vmatprep.mubr.f32.mxu0 0.0
  %2277 = vmatmul.mubr.f32.gmra.mrb[0].mxu0 %v2129
  %v2278 = vpop.f32.mrb[0].mxu0
  %v2279 = vadd.f32 0.0, %v2278
  %v2280 = vpop.f32.mrb[0].mxu0
  %v2281 = vadd.f32 0.0, %v2280
  %2282 = vmatprep.mubr.f32.mxu0 0.0
  %2283 = vmatmul.mubr.f32.gmra.mrb[0].mxu0 %v2130
  %v2284 = vpop.f32.mrb[0].mxu0
  %v2285 = vadd.f32 0.0, %v2284
  %v2286 = vpop.f32.mrb[0].mxu0
  %v2287 = vadd.f32 0.0, %v2286
  %2288 = vmatprep.mubr.f32.mxu0 0.0
  %2289 = vmatmul.mubr.f32.gmra.mrb[0].mxu0 %v2131
  %v2290 = vpop.f32.mrb[0].mxu0
  %v2291 = vadd.f32 0.0, %v2290
  %v2292 = vpop.f32.mrb[0].mxu0
  %v2293 = vadd.f32 0.0, %v2292
  %2294 = vmatprep.mubr.f32.mxu0 0.0
  %2295 = vmatmul.mubr.f32.gmra.mrb[0].mxu0 %v2132
  %v2296 = vpop.f32.mrb[0].mxu0
  %v2297 = vadd.f32 0.0, %v2296
  %v2298 = vpop.f32.mrb[0].mxu0
  %v2299 = vadd.f32 0.0, %v2298
  %2300 = vmatprep.mubr.f32.mxu0 0.0
  %2301 = vmatmul.mubr.f32.gmra.mrb[0].mxu0 %v2133
  %v2302 = vpop.f32.mrb[0].mxu0
  %v2303 = vadd.f32 0.0, %v2302
  %v2304 = vpop.f32.mrb[0].mxu0
  %v2305 = vadd.f32 0.0, %v2304
  %2306 = vmatprep.mubr.f32.mxu0 0.0
  %2307 = vmatmul.mubr.f32.gmra.mrb[0].mxu0 %v2134
  %v2308 = vpop.f32.mrb[0].mxu0
  %v2309 = vadd.f32 0.0, %v2308
  %v2310 = vpop.f32.mrb[0].mxu0
  %v2311 = vadd.f32 0.0, %v2310
  %2312 = vmatprep.mubr.f32.mxu0 0.0
  %2313 = vmatmul.mubr.f32.gmra.mrb[0].mxu0 %v2135
  %v2314 = vpop.f32.mrb[0].mxu0
  %v2315 = vadd.f32 0.0, %v2314
  %v2316 = vpop.f32.mrb[0].mxu0
  %v2317 = vadd.f32 0.0, %v2316
  %2318 = vmatprep.mubr.f32.mxu0 0.0
  %2319 = vmatmul.mubr.f32.gmra.mrb[0].mxu0 %v2136
  %v2320 = vpop.f32.mrb[0].mxu0
  %v2321 = vadd.f32 0.0, %v2320
  %v2322 = vpop.f32.mrb[0].mxu0
  %v2323 = vadd.f32 0.0, %v2322
  %2324 = vmatprep.mubr.f32.mxu0 0.0
  %2325 = vmatmul.mubr.f32.gmra.mrb[0].mxu0 %v2137
  %v2326 = vpop.f32.mrb[0].mxu0
  %v2327 = vadd.f32 0.0, %v2326
  %v2328 = vpop.f32.mrb[0].mxu0
  %v2329 = vadd.f32 0.0, %v2328
  %2330 = vdwg.mxu0
  %2331 = vmatprep.subr.mxu0 %v2142
  %2332 = vmatpush1.msra.mxu0 %v2141
  %2333 = vmatprep.subr.mxu0 %v2144
  %2334 = vmatpush1.msra.mxu0 %v2143
  %2335 = vmatprep.subr.mxu0 %v2146
  %2336 = vmatpush1.msra.mxu0 %v2145
  %2337 = vmatprep.subr.mxu0 %v2148
  %2338 = vmatpush1.msra.mxu0 %v2147
  %2339 = vmatprep.subr.mxu0 %v2150
  %2340 = vmatpush1.msra.mxu0 %v2149
  %2341 = vmatprep.subr.mxu0 %v2152
  %2342 = vmatpush1.msra.mxu0 %v2151
  %2343 = vmatprep.subr.mxu0 %v2154
  %2344 = vmatpush1.msra.mxu0 %v2153
  %2345 = vmatprep.subr.mxu0 %v2156
  %2346 = vmatpush1.msra.mxu0 %v2155
  %2347 = vmatprep.subr.mxu0 %v2158
  %2348 = vmatpush1.msra.mxu0 %v2157
  %2349 = vmatprep.subr.mxu0 %v2160
  %2350 = vmatpush1.msra.mxu0 %v2159
  %2351 = vmatprep.subr.mxu0 %v2162
  %2352 = vmatpush1.msra.mxu0 %v2161
  %2353 = vmatprep.subr.mxu0 %v2164
  %2354 = vmatpush1.msra.mxu0 %v2163
  %2355 = vmatprep.subr.mxu0 %v2166
  %2356 = vmatpush1.msra.mxu0 %v2165
  %2357 = vmatprep.subr.mxu0 %v2168
  %2358 = vmatpush1.msra.mxu0 %v2167
  %2359 = vmatprep.subr.mxu0 %v2170
  %2360 = vmatpush1.msra.mxu0 %v2169
  %2361 = vmatprep.subr.mxu0 %v2172
  %2362 = vmatpush1.msra.mxu0 %v2171
  %2363 = vmatprep.subr.mxu0 0.0
  %2364 = vmatpush1.msra.mxu0 0.0
  %2365 = vmatprep.subr.mxu0 0.0
  %2366 = vmatpush1.msra.mxu0 0.0
  %2367 = vmatprep.subr.mxu0 0.0
  %2368 = vmatpush1.msra.mxu0 0.0
  %2369 = vmatprep.subr.mxu0 0.0
  %2370 = vmatpush1.msra.mxu0 0.0
  %2371 = vmatprep.subr.mxu0 0.0
  %2372 = vmatpush1.msra.mxu0 0.0
  %2373 = vmatprep.subr.mxu0 0.0
  %2374 = vmatpush1.msra.mxu0 0.0
  %2375 = vmatprep.subr.mxu0 0.0
  %2376 = vmatpush1.msra.mxu0 0.0
  %2377 = vmatprep.subr.mxu0 0.0
  %2378 = vmatpush1.msra.mxu0 0.0
  %2379 = vmatprep.subr.mxu0 0.0
  %2380 = vmatpush1.msra.mxu0 0.0
  %2381 = vmatprep.subr.mxu0 0.0
  %2382 = vmatpush1.msra.mxu0 0.0
  %2383 = vmatprep.subr.mxu0 0.0
  %2384 = vmatpush1.msra.mxu0 0.0
  %2385 = vmatprep.subr.mxu0 0.0
  %2386 = vmatpush1.msra.mxu0 0.0
  %2387 = vmatprep.subr.mxu0 0.0
  %2388 = vmatpush1.msra.mxu0 0.0
  %2389 = vmatprep.subr.mxu0 0.0
  %2390 = vmatpush1.msra.mxu0 0.0
  %2391 = vmatprep.subr.mxu0 0.0
  %2392 = vmatpush1.msra.mxu0 0.0
  %2393 = vmatprep.subr.mxu0 0.0
  %2394 = vmatpush1.msra.mxu0 0.0
  %2395 = vmatprep.mubr.f32.mxu0 0.0
  %2396 = vmatmul.mubr.f32.gmra.mrb[0].mxu0 %v2127
  %v2397 = vpop.f32.mrb[0].mxu0
  %v2398 = vadd.f32 %v2273, %v2397
  %v2399 = vpop.f32.mrb[0].mxu0
  %v2400 = vadd.f32 %v2275, %v2399
  %2401 = vmatprep.mubr.f32.mxu0 0.0
  %2402 = vmatmul.mubr.f32.gmra.mrb[0].mxu0 %v2128
  %v2403 = vpop.f32.mrb[0].mxu0
  %v2404 = vadd.f32 %v2279, %v2403
  %v2405 = vpop.f32.mrb[0].mxu0
  %v2406 = vadd.f32 %v2281, %v2405
  %2407 = vmatprep.mubr.f32.mxu0 0.0
  %2408 = vmatmul.mubr.f32.gmra.mrb[0].mxu0 %v2129
  %v2409 = vpop.f32.mrb[0].mxu0
  %v2410 = vadd.f32 %v2285, %v2409
  %v2411 = vpop.f32.mrb[0].mxu0
  %v2412 = vadd.f32 %v2287, %v2411
  %2413 = vmatprep.mubr.f32.mxu0 0.0
  %2414 = vmatmul.mubr.f32.gmra.mrb[0].mxu0 %v2130
  %v2415 = vpop.f32.mrb[0].mxu0
  %v2416 = vadd.f32 %v2291, %v2415
  %v2417 = vpop.f32.mrb[0].mxu0
  %v2418 = vadd.f32 %v2293, %v2417
  %2419 = vmatprep.mubr.f32.mxu0 0.0
  %2420 = vmatmul.mubr.f32.gmra.mrb[0].mxu0 %v2131
  %v2421 = vpop.f32.mrb[0].mxu0
  %v2422 = vadd.f32 %v2297, %v2421
  %v2423 = vpop.f32.mrb[0].mxu0
  %v2424 = vadd.f32 %v2299, %v2423
  %2425 = vmatprep.mubr.f32.mxu0 0.0
  %2426 = vmatmul.mubr.f32.gmra.mrb[0].mxu0 %v2132
  %v2427 = vpop.f32.mrb[0].mxu0
  %v2428 = vadd.f32 %v2303, %v2427
  %v2429 = vpop.f32.mrb[0].mxu0
  %v2430 = vadd.f32 %v2305, %v2429
  %2431 = vmatprep.mubr.f32.mxu0 0.0
  %2432 = vmatmul.mubr.f32.gmra.mrb[0].mxu0 %v2133
  %v2433 = vpop.f32.mrb[0].mxu0
  %v2434 = vadd.f32 %v2309, %v2433
  %v2435 = vpop.f32.mrb[0].mxu0
  %v2436 = vadd.f32 %v2311, %v2435
  %2437 = vmatprep.mubr.f32.mxu0 0.0
  %2438 = vmatmul.mubr.f32.gmra.mrb[0].mxu0 %v2134
  %v2439 = vpop.f32.mrb[0].mxu0
  %v2440 = vadd.f32 %v2315, %v2439
  %v2441 = vpop.f32.mrb[0].mxu0
  %v2442 = vadd.f32 %v2317, %v2441
  %2443 = vmatprep.mubr.f32.mxu0 0.0
  %2444 = vmatmul.mubr.f32.gmra.mrb[0].mxu0 %v2135
  %v2445 = vpop.f32.mrb[0].mxu0
  %v2446 = vadd.f32 %v2321, %v2445
  %v2447 = vpop.f32.mrb[0].mxu0
  %v2448 = vadd.f32 %v2323, %v2447
  %2449 = vmatprep.mubr.f32.mxu0 0.0
  %2450 = vmatmul.mubr.f32.gmra.mrb[0].mxu0 %v2136
  %v2451 = vpop.f32.mrb[0].mxu0
  %v2452 = vadd.f32 %v2327, %v2451
  %v2453 = vpop.f32.mrb[0].mxu0
  %v2454 = vadd.f32 %v2329, %v2453
  %2455 = vdwg.mxu0
  %s2456 = scalar_lea.vmem %s4, 512
  %v2457 = vld [vmem:[%s2456] sm:$0xff]
  %v2458 = vld [vmem:[%s2456 + $0x8] sm:$0xff]
  %v2459 = vld [vmem:[%s2456 + $0x10] sm:$0xff]
  %v2460 = vld [vmem:[%s2456 + $0x18] sm:$0xff]
  %v2461 = vld [vmem:[%s2456 + $0x20] sm:$0xff]
  %v2462 = vld [vmem:[%s2456 + $0x28] sm:$0xff]
  %v2463 = vld [vmem:[%s2456 + $0x30] sm:$0xff]
  %v2464 = vld [vmem:[%s2456 + $0x38] sm:$0xff]
  %v2465 = vld [vmem:[%s2456 + $0x40] sm:$0xff]
  %v2466 = vld [vmem:[%s2456 + $0x48] sm:$0xff]
  %v2467 = vld [vmem:[%s2456 + $0x50] sm:$0xff]
  %v2468 = vld [vmem:[%s2456 + $0x58] sm:$0xff]
  %v2469 = vld [vmem:[%s2456 + $0x60] sm:$0xff]
  %v2470 = vld [vmem:[%s2456 + $0x68] sm:$0xff]
  %v2471 = vld [vmem:[%s2456 + $0x70] sm:$0xff]
  %v2472 = vld [vmem:[%s2456 + $0x78] sm:$0xff]
  %v2473 = vld [vmem:[%s2456 + $0x80] sm:$0xff]
  %v2474 = vld [vmem:[%s2456 + $0x88] sm:$0xff]
  %v2475 = vld [vmem:[%s2456 + $0x90] sm:$0xff]
  %v2476 = vld [vmem:[%s2456 + $0x98] sm:$0xff]
  %v2477 = vld [vmem:[%s2456 + $0xa0] sm:$0xff]
  %v2478 = vld [vmem:[%s2456 + $0xa8] sm:$0xff]
  %v2479 = vld [vmem:[%s2456 + $0xb0] sm:$0xff]
  %v2480 = vld [vmem:[%s2456 + $0xb8] sm:$0xff]
  %v2481 = vld [vmem:[%s2456 + $0xc0] sm:$0xff]
  %v2482 = vld [vmem:[%s2456 + $0xc8] sm:$0xff]
  %v2483 = vld [vmem:[%s2456 + $0xd0] sm:$0xff]
  %v2484 = vld [vmem:[%s2456 + $0xd8] sm:$0xff]
  %v2485 = vld [vmem:[%s2456 + $0xe0] sm:$0xff]
  %v2486 = vld [vmem:[%s2456 + $0xe8] sm:$0xff]
  %v2487 = vld [vmem:[%s2456 + $0xf0] sm:$0xff]
  %v2488 = vld [vmem:[%s2456 + $0xf8] sm:$0xff]
  %2489 = vmatprep.subr.mxu0 %v2458
  %2490 = vmatpush1.msra.mxu0 %v2457
  %2491 = vmatprep.subr.mxu0 %v2460
  %2492 = vmatpush1.msra.mxu0 %v2459
  %2493 = vmatprep.subr.mxu0 %v2462
  %2494 = vmatpush1.msra.mxu0 %v2461
  %2495 = vmatprep.subr.mxu0 %v2464
  %2496 = vmatpush1.msra.mxu0 %v2463
  %2497 = vmatprep.subr.mxu0 %v2466
  %2498 = vmatpush1.msra.mxu0 %v2465
  %2499 = vmatprep.subr.mxu0 %v2468
  %2500 = vmatpush1.msra.mxu0 %v2467
  %2501 = vmatprep.subr.mxu0 %v2470
  %2502 = vmatpush1.msra.mxu0 %v2469
  %2503 = vmatprep.subr.mxu0 %v2472
  %2504 = vmatpush1.msra.mxu0 %v2471
  %2505 = vmatprep.subr.mxu0 %v2474
  %2506 = vmatpush1.msra.mxu0 %v2473
  %2507 = vmatprep.subr.mxu0 %v2476
  %2508 = vmatpush1.msra.mxu0 %v2475
  %2509 = vmatprep.subr.mxu0 %v2478
  %2510 = vmatpush1.msra.mxu0 %v2477
  %2511 = vmatprep.subr.mxu0 %v2480
  %2512 = vmatpush1.msra.mxu0 %v2479
  %2513 = vmatprep.subr.mxu0 %v2482
  %2514 = vmatpush1.msra.mxu0 %v2481
  %2515 = vmatprep.subr.mxu0 %v2484
  %2516 = vmatpush1.msra.mxu0 %v2483
  %2517 = vmatprep.subr.mxu0 %v2486
  %2518 = vmatpush1.msra.mxu0 %v2485
  %2519 = vmatprep.subr.mxu0 %v2488
  %2520 = vmatpush1.msra.mxu0 %v2487
  %2521 = vmatprep.subr.mxu0 0.0
  %2522 = vmatpush1.msra.mxu0 0.0
  %2523 = vmatprep.subr.mxu0 0.0
  %2524 = vmatpush1.msra.mxu0 0.0
  %2525 = vmatprep.subr.mxu0 0.0
  %2526 = vmatpush1.msra.mxu0 0.0
  %2527 = vmatprep.subr.mxu0 0.0
  %2528 = vmatpush1.msra.mxu0 0.0
  %2529 = vmatprep.subr.mxu0 0.0
  %2530 = vmatpush1.msra.mxu0 0.0
  %2531 = vmatprep.subr.mxu0 0.0
  %2532 = vmatpush1.msra.mxu0 0.0
  %2533 = vmatprep.subr.mxu0 0.0
  %2534 = vmatpush1.msra.mxu0 0.0
  %2535 = vmatprep.subr.mxu0 0.0
  %2536 = vmatpush1.msra.mxu0 0.0
  %2537 = vmatprep.subr.mxu0 0.0
  %2538 = vmatpush1.msra.mxu0 0.0
  %2539 = vmatprep.subr.mxu0 0.0
  %2540 = vmatpush1.msra.mxu0 0.0
  %2541 = vmatprep.subr.mxu0 0.0
  %2542 = vmatpush1.msra.mxu0 0.0
  %2543 = vmatprep.subr.mxu0 0.0
  %2544 = vmatpush1.msra.mxu0 0.0
  %2545 = vmatprep.subr.mxu0 0.0
  %2546 = vmatpush1.msra.mxu0 0.0
  %2547 = vmatprep.subr.mxu0 0.0
  %2548 = vmatpush1.msra.mxu0 0.0
  %2549 = vmatprep.subr.mxu0 0.0
  %2550 = vmatpush1.msra.mxu0 0.0
  %2551 = vmatprep.subr.mxu0 0.0
  %2552 = vmatpush1.msra.mxu0 0.0
  %2553 = vmatprep.mubr.f32.mxu0 0.0
  %2554 = vmatmul.mubr.f32.gmra.mrb[0].mxu0 %v2129
  %v2555 = vpop.f32.mrb[0].mxu0
  %v2556 = vadd.f32 0.0, %v2555
  %v2557 = vpop.f32.mrb[0].mxu0
  %v2558 = vadd.f32 0.0, %v2557
  %2559 = vmatprep.mubr.f32.mxu0 0.0
  %2560 = vmatmul.mubr.f32.gmra.mrb[0].mxu0 %v2130
  %v2561 = vpop.f32.mrb[0].mxu0
  %v2562 = vadd.f32 0.0, %v2561
  %v2563 = vpop.f32.mrb[0].mxu0
  %v2564 = vadd.f32 0.0, %v2563
  %2565 = vmatprep.mubr.f32.mxu0 0.0
  %2566 = vmatmul.mubr.f32.gmra.mrb[0].mxu0 %v2131
  %v2567 = vpop.f32.mrb[0].mxu0
  %v2568 = vadd.f32 0.0, %v2567
  %v2569 = vpop.f32.mrb[0].mxu0
  %v2570 = vadd.f32 0.0, %v2569
  %2571 = vmatprep.mubr.f32.mxu0 0.0
  %2572 = vmatmul.mubr.f32.gmra.mrb[0].mxu0 %v2132
  %v2573 = vpop.f32.mrb[0].mxu0
  %v2574 = vadd.f32 0.0, %v2573
  %v2575 = vpop.f32.mrb[0].mxu0
  %v2576 = vadd.f32 0.0, %v2575
  %2577 = vmatprep.mubr.f32.mxu0 0.0
  %2578 = vmatmul.mubr.f32.gmra.mrb[0].mxu0 %v2133
  %v2579 = vpop.f32.mrb[0].mxu0
  %v2580 = vadd.f32 0.0, %v2579
  %v2581 = vpop.f32.mrb[0].mxu0
  %v2582 = vadd.f32 0.0, %v2581
  %2583 = vmatprep.mubr.f32.mxu0 0.0
  %2584 = vmatmul.mubr.f32.gmra.mrb[0].mxu0 %v2134
  %v2585 = vpop.f32.mrb[0].mxu0
  %v2586 = vadd.f32 0.0, %v2585
  %v2587 = vpop.f32.mrb[0].mxu0
  %v2588 = vadd.f32 0.0, %v2587
  %2589 = vmatprep.mubr.f32.mxu0 0.0
  %2590 = vmatmul.mubr.f32.gmra.mrb[0].mxu0 %v2135
  %v2591 = vpop.f32.mrb[0].mxu0
  %v2592 = vadd.f32 0.0, %v2591
  %v2593 = vpop.f32.mrb[0].mxu0
  %v2594 = vadd.f32 0.0, %v2593
  %2595 = vmatprep.mubr.f32.mxu0 0.0
  %2596 = vmatmul.mubr.f32.gmra.mrb[0].mxu0 %v2136
  %v2597 = vpop.f32.mrb[0].mxu0
  %v2598 = vadd.f32 0.0, %v2597
  %v2599 = vpop.f32.mrb[0].mxu0
  %v2600 = vadd.f32 0.0, %v2599
  %2601 = vmatprep.mubr.f32.mxu0 0.0
  %2602 = vmatmul.mubr.f32.gmra.mrb[0].mxu0 %v2137
  %v2603 = vpop.f32.mrb[0].mxu0
  %v2604 = vadd.f32 0.0, %v2603
  %v2605 = vpop.f32.mrb[0].mxu0
  %v2606 = vadd.f32 0.0, %v2605
  %2607 = vmatprep.mubr.f32.mxu0 0.0
  %2608 = vmatmul.mubr.f32.gmra.mrb[0].mxu0 %v2138
  %v2609 = vpop.f32.mrb[0].mxu0
  %v2610 = vadd.f32 0.0, %v2609
  %v2611 = vpop.f32.mrb[0].mxu0
  %v2612 = vadd.f32 0.0, %v2611
  %2613 = vdwg.mxu0
  %v2614 = vadd.f32 %v2398, %v2556
  %v2615 = vadd.f32 %v2400, %v2558
  %v2616 = vadd.f32 %v2404, %v2562
  %v2617 = vadd.f32 %v2406, %v2564
  %v2618 = vadd.f32 %v2410, %v2568
  %v2619 = vadd.f32 %v2412, %v2570
  %v2620 = vadd.f32 %v2416, %v2574
  %v2621 = vadd.f32 %v2418, %v2576
  %v2622 = vadd.f32 %v2422, %v2580
  %v2623 = vadd.f32 %v2424, %v2582
  %v2624 = vadd.f32 %v2428, %v2586
  %v2625 = vadd.f32 %v2430, %v2588
  %v2626 = vadd.f32 %v2434, %v2592
  %v2627 = vadd.f32 %v2436, %v2594
  %v2628 = vadd.f32 %v2440, %v2598
  %v2629 = vadd.f32 %v2442, %v2600
  %v2630 = vadd.f32 %v2446, %v2604
  %v2631 = vadd.f32 %v2448, %v2606
  %v2632 = vadd.f32 %v2452, %v2610
  %v2633 = vadd.f32 %v2454, %v2612
  %s2634 = scalar_lea.vmem %s4, 768
  %v2635 = vld [vmem:[%s2634] sm:$0xff]
  %v2636 = vld [vmem:[%s2634 + $0x8] sm:$0xff]
  %v2637 = vld [vmem:[%s2634 + $0x10] sm:$0xff]
  %v2638 = vld [vmem:[%s2634 + $0x18] sm:$0xff]
  %v2639 = vld [vmem:[%s2634 + $0x20] sm:$0xff]
  %v2640 = vld [vmem:[%s2634 + $0x28] sm:$0xff]
  %v2641 = vld [vmem:[%s2634 + $0x30] sm:$0xff]
  %v2642 = vld [vmem:[%s2634 + $0x38] sm:$0xff]
  %v2643 = vld [vmem:[%s2634 + $0x40] sm:$0xff]
  %v2644 = vld [vmem:[%s2634 + $0x48] sm:$0xff]
  %v2645 = vld [vmem:[%s2634 + $0x50] sm:$0xff]
  %v2646 = vld [vmem:[%s2634 + $0x58] sm:$0xff]
  %v2647 = vld [vmem:[%s2634 + $0x60] sm:$0xff]
  %v2648 = vld [vmem:[%s2634 + $0x68] sm:$0xff]
  %v2649 = vld [vmem:[%s2634 + $0x70] sm:$0xff]
  %v2650 = vld [vmem:[%s2634 + $0x78] sm:$0xff]
  %v2651 = vld [vmem:[%s2634 + $0x80] sm:$0xff]
  %v2652 = vld [vmem:[%s2634 + $0x88] sm:$0xff]
  %v2653 = vld [vmem:[%s2634 + $0x90] sm:$0xff]
  %v2654 = vld [vmem:[%s2634 + $0x98] sm:$0xff]
  %v2655 = vld [vmem:[%s2634 + $0xa0] sm:$0xff]
  %v2656 = vld [vmem:[%s2634 + $0xa8] sm:$0xff]
  %v2657 = vld [vmem:[%s2634 + $0xb0] sm:$0xff]
  %v2658 = vld [vmem:[%s2634 + $0xb8] sm:$0xff]
  %v2659 = vld [vmem:[%s2634 + $0xc0] sm:$0xff]
  %v2660 = vld [vmem:[%s2634 + $0xc8] sm:$0xff]
  %v2661 = vld [vmem:[%s2634 + $0xd0] sm:$0xff]
  %v2662 = vld [vmem:[%s2634 + $0xd8] sm:$0xff]
  %v2663 = vld [vmem:[%s2634 + $0xe0] sm:$0xff]
  %v2664 = vld [vmem:[%s2634 + $0xe8] sm:$0xff]
  %v2665 = vld [vmem:[%s2634 + $0xf0] sm:$0xff]
  %v2666 = vld [vmem:[%s2634 + $0xf8] sm:$0xff]
  %2667 = vmatprep.subr.mxu0 %v2636
  %2668 = vmatpush1.msra.mxu0 %v2635
  %2669 = vmatprep.subr.mxu0 %v2638
  %2670 = vmatpush1.msra.mxu0 %v2637
  %2671 = vmatprep.subr.mxu0 %v2640
  %2672 = vmatpush1.msra.mxu0 %v2639
  %2673 = vmatprep.subr.mxu0 %v2642
  %2674 = vmatpush1.msra.mxu0 %v2641
  %2675 = vmatprep.subr.mxu0 %v2644
  %2676 = vmatpush1.msra.mxu0 %v2643
  %2677 = vmatprep.subr.mxu0 %v2646
  %2678 = vmatpush1.msra.mxu0 %v2645
  %2679 = vmatprep.subr.mxu0 %v2648
  %2680 = vmatpush1.msra.mxu0 %v2647
  %2681 = vmatprep.subr.mxu0 %v2650
  %2682 = vmatpush1.msra.mxu0 %v2649
  %2683 = vmatprep.subr.mxu0 %v2652
  %2684 = vmatpush1.msra.mxu0 %v2651
  %2685 = vmatprep.subr.mxu0 %v2654
  %2686 = vmatpush1.msra.mxu0 %v2653
  %2687 = vmatprep.subr.mxu0 %v2656
  %2688 = vmatpush1.msra.mxu0 %v2655
  %2689 = vmatprep.subr.mxu0 %v2658
  %2690 = vmatpush1.msra.mxu0 %v2657
  %2691 = vmatprep.subr.mxu0 %v2660
  %2692 = vmatpush1.msra.mxu0 %v2659
  %2693 = vmatprep.subr.mxu0 %v2662
  %2694 = vmatpush1.msra.mxu0 %v2661
  %2695 = vmatprep.subr.mxu0 %v2664
  %2696 = vmatpush1.msra.mxu0 %v2663
  %2697 = vmatprep.subr.mxu0 %v2666
  %2698 = vmatpush1.msra.mxu0 %v2665
  %2699 = vmatprep.subr.mxu0 0.0
  %2700 = vmatpush1.msra.mxu0 0.0
  %2701 = vmatprep.subr.mxu0 0.0
  %2702 = vmatpush1.msra.mxu0 0.0
  %2703 = vmatprep.subr.mxu0 0.0
  %2704 = vmatpush1.msra.mxu0 0.0
  %2705 = vmatprep.subr.mxu0 0.0
  %2706 = vmatpush1.msra.mxu0 0.0
  %2707 = vmatprep.subr.mxu0 0.0
  %2708 = vmatpush1.msra.mxu0 0.0
  %2709 = vmatprep.subr.mxu0 0.0
  %2710 = vmatpush1.msra.mxu0 0.0
  %2711 = vmatprep.subr.mxu0 0.0
  %2712 = vmatpush1.msra.mxu0 0.0
  %2713 = vmatprep.subr.mxu0 0.0
  %2714 = vmatpush1.msra.mxu0 0.0
  %2715 = vmatprep.subr.mxu0 0.0
  %2716 = vmatpush1.msra.mxu0 0.0
  %2717 = vmatprep.subr.mxu0 0.0
  %2718 = vmatpush1.msra.mxu0 0.0
  %2719 = vmatprep.subr.mxu0 0.0
  %2720 = vmatpush1.msra.mxu0 0.0
  %2721 = vmatprep.subr.mxu0 0.0
  %2722 = vmatpush1.msra.mxu0 0.0
  %2723 = vmatprep.subr.mxu0 0.0
  %2724 = vmatpush1.msra.mxu0 0.0
  %2725 = vmatprep.subr.mxu0 0.0
  %2726 = vmatpush1.msra.mxu0 0.0
  %2727 = vmatprep.subr.mxu0 0.0
  %2728 = vmatpush1.msra.mxu0 0.0
  %2729 = vmatprep.subr.mxu0 0.0
  %2730 = vmatpush1.msra.mxu0 0.0
  %2731 = vmatprep.mubr.f32.mxu0 0.0
  %2732 = vmatmul.mubr.f32.gmra.mrb[0].mxu0 %v2130
  %v2733 = vpop.f32.mrb[0].mxu0
  %v2734 = vadd.f32 0.0, %v2733
  %v2735 = vpop.f32.mrb[0].mxu0
  %v2736 = vadd.f32 0.0, %v2735
  %2737 = vmatprep.mubr.f32.mxu0 0.0
  %2738 = vmatmul.mubr.f32.gmra.mrb[0].mxu0 %v2131
  %v2739 = vpop.f32.mrb[0].mxu0
  %v2740 = vadd.f32 0.0, %v2739
  %v2741 = vpop.f32.mrb[0].mxu0
  %v2742 = vadd.f32 0.0, %v2741
  %2743 = vmatprep.mubr.f32.mxu0 0.0
  %2744 = vmatmul.mubr.f32.gmra.mrb[0].mxu0 %v2132
  %v2745 = vpop.f32.mrb[0].mxu0
  %v2746 = vadd.f32 0.0, %v2745
  %v2747 = vpop.f32.mrb[0].mxu0
  %v2748 = vadd.f32 0.0, %v2747
  %2749 = vmatprep.mubr.f32.mxu0 0.0
  %2750 = vmatmul.mubr.f32.gmra.mrb[0].mxu0 %v2133
  %v2751 = vpop.f32.mrb[0].mxu0
  %v2752 = vadd.f32 0.0, %v2751
  %v2753 = vpop.f32.mrb[0].mxu0
  %v2754 = vadd.f32 0.0, %v2753
  %2755 = vmatprep.mubr.f32.mxu0 0.0
  %2756 = vmatmul.mubr.f32.gmra.mrb[0].mxu0 %v2134
  %v2757 = vpop.f32.mrb[0].mxu0
  %v2758 = vadd.f32 0.0, %v2757
  %v2759 = vpop.f32.mrb[0].mxu0
  %v2760 = vadd.f32 0.0, %v2759
  %2761 = vmatprep.mubr.f32.mxu0 0.0
  %2762 = vmatmul.mubr.f32.gmra.mrb[0].mxu0 %v2135
  %v2763 = vpop.f32.mrb[0].mxu0
  %v2764 = vadd.f32 0.0, %v2763
  %v2765 = vpop.f32.mrb[0].mxu0
  %v2766 = vadd.f32 0.0, %v2765
  %2767 = vmatprep.mubr.f32.mxu0 0.0
  %2768 = vmatmul.mubr.f32.gmra.mrb[0].mxu0 %v2136
  %v2769 = vpop.f32.mrb[0].mxu0
  %v2770 = vadd.f32 0.0, %v2769
  %v2771 = vpop.f32.mrb[0].mxu0
  %v2772 = vadd.f32 0.0, %v2771
  %2773 = vmatprep.mubr.f32.mxu0 0.0
  %2774 = vmatmul.mubr.f32.gmra.mrb[0].mxu0 %v2137
  %v2775 = vpop.f32.mrb[0].mxu0
  %v2776 = vadd.f32 0.0, %v2775
  %v2777 = vpop.f32.mrb[0].mxu0
  %v2778 = vadd.f32 0.0, %v2777
  %2779 = vmatprep.mubr.f32.mxu0 0.0
  %2780 = vmatmul.mubr.f32.gmra.mrb[0].mxu0 %v2138
  %v2781 = vpop.f32.mrb[0].mxu0
  %v2782 = vadd.f32 0.0, %v2781
  %v2783 = vpop.f32.mrb[0].mxu0
  %v2784 = vadd.f32 0.0, %v2783
  %2785 = vmatprep.mubr.f32.mxu0 0.0
  %2786 = vmatmul.mubr.f32.gmra.mrb[0].mxu0 %v2139
  %v2787 = vpop.f32.mrb[0].mxu0
  %v2788 = vadd.f32 0.0, %v2787
  %v2789 = vpop.f32.mrb[0].mxu0
  %v2790 = vadd.f32 0.0, %v2789
  %2791 = vdwg.mxu0
  %v2792 = vadd.f32 %v2614, %v2734
  %v2793 = vadd.f32 %v2615, %v2736
  %v2794 = vadd.f32 %v2616, %v2740
  %v2795 = vadd.f32 %v2617, %v2742
  %v2796 = vadd.f32 %v2618, %v2746
  %v2797 = vadd.f32 %v2619, %v2748
  %v2798 = vadd.f32 %v2620, %v2752
  %v2799 = vadd.f32 %v2621, %v2754
  %v2800 = vadd.f32 %v2622, %v2758
  %v2801 = vadd.f32 %v2623, %v2760
  %v2802 = vadd.f32 %v2624, %v2764
  %v2803 = vadd.f32 %v2625, %v2766
  %v2804 = vadd.f32 %v2626, %v2770
  %v2805 = vadd.f32 %v2627, %v2772
  %v2806 = vadd.f32 %v2628, %v2776
  %v2807 = vadd.f32 %v2629, %v2778
  %v2808 = vadd.f32 %v2630, %v2782
  %v2809 = vadd.f32 %v2631, %v2784
  %v2810 = vadd.f32 %v2632, %v2788
  %v2811 = vadd.f32 %v2633, %v2790
  %s2812 = scalar_lea.vmem %s4, 1024
  %v2813 = vld [vmem:[%s2812] sm:$0xff]
  %v2814 = vld [vmem:[%s2812 + $0x8] sm:$0xff]
  %v2815 = vld [vmem:[%s2812 + $0x10] sm:$0xff]
  %v2816 = vld [vmem:[%s2812 + $0x18] sm:$0xff]
  %v2817 = vld [vmem:[%s2812 + $0x20] sm:$0xff]
  %v2818 = vld [vmem:[%s2812 + $0x28] sm:$0xff]
  %v2819 = vld [vmem:[%s2812 + $0x30] sm:$0xff]
  %v2820 = vld [vmem:[%s2812 + $0x38] sm:$0xff]
  %v2821 = vld [vmem:[%s2812 + $0x40] sm:$0xff]
  %v2822 = vld [vmem:[%s2812 + $0x48] sm:$0xff]
  %v2823 = vld [vmem:[%s2812 + $0x50] sm:$0xff]
  %v2824 = vld [vmem:[%s2812 + $0x58] sm:$0xff]
  %v2825 = vld [vmem:[%s2812 + $0x60] sm:$0xff]
  %v2826 = vld [vmem:[%s2812 + $0x68] sm:$0xff]
  %v2827 = vld [vmem:[%s2812 + $0x70] sm:$0xff]
  %v2828 = vld [vmem:[%s2812 + $0x78] sm:$0xff]
  %v2829 = vld [vmem:[%s2812 + $0x80] sm:$0xff]
  %v2830 = vld [vmem:[%s2812 + $0x88] sm:$0xff]
  %v2831 = vld [vmem:[%s2812 + $0x90] sm:$0xff]
  %v2832 = vld [vmem:[%s2812 + $0x98] sm:$0xff]
  %v2833 = vld [vmem:[%s2812 + $0xa0] sm:$0xff]
  %v2834 = vld [vmem:[%s2812 + $0xa8] sm:$0xff]
  %v2835 = vld [vmem:[%s2812 + $0xb0] sm:$0xff]
  %v2836 = vld [vmem:[%s2812 + $0xb8] sm:$0xff]
  %v2837 = vld [vmem:[%s2812 + $0xc0] sm:$0xff]
  %v2838 = vld [vmem:[%s2812 + $0xc8] sm:$0xff]
  %v2839 = vld [vmem:[%s2812 + $0xd0] sm:$0xff]
  %v2840 = vld [vmem:[%s2812 + $0xd8] sm:$0xff]
  %v2841 = vld [vmem:[%s2812 + $0xe0] sm:$0xff]
  %v2842 = vld [vmem:[%s2812 + $0xe8] sm:$0xff]
  %v2843 = vld [vmem:[%s2812 + $0xf0] sm:$0xff]
  %v2844 = vld [vmem:[%s2812 + $0xf8] sm:$0xff]
  %2845 = vmatprep.subr.mxu0 %v2814
  %2846 = vmatpush1.msra.mxu0 %v2813
  %2847 = vmatprep.subr.mxu0 %v2816
  %2848 = vmatpush1.msra.mxu0 %v2815
  %2849 = vmatprep.subr.mxu0 %v2818
  %2850 = vmatpush1.msra.mxu0 %v2817
  %2851 = vmatprep.subr.mxu0 %v2820
  %2852 = vmatpush1.msra.mxu0 %v2819
  %2853 = vmatprep.subr.mxu0 %v2822
  %2854 = vmatpush1.msra.mxu0 %v2821
  %2855 = vmatprep.subr.mxu0 %v2824
  %2856 = vmatpush1.msra.mxu0 %v2823
  %2857 = vmatprep.subr.mxu0 %v2826
  %2858 = vmatpush1.msra.mxu0 %v2825
  %2859 = vmatprep.subr.mxu0 %v2828
  %2860 = vmatpush1.msra.mxu0 %v2827
  %2861 = vmatprep.subr.mxu0 %v2830
  %2862 = vmatpush1.msra.mxu0 %v2829
  %2863 = vmatprep.subr.mxu0 %v2832
  %2864 = vmatpush1.msra.mxu0 %v2831
  %2865 = vmatprep.subr.mxu0 %v2834
  %2866 = vmatpush1.msra.mxu0 %v2833
  %2867 = vmatprep.subr.mxu0 %v2836
  %2868 = vmatpush1.msra.mxu0 %v2835
  %2869 = vmatprep.subr.mxu0 %v2838
  %2870 = vmatpush1.msra.mxu0 %v2837
  %2871 = vmatprep.subr.mxu0 %v2840
  %2872 = vmatpush1.msra.mxu0 %v2839
  %2873 = vmatprep.subr.mxu0 %v2842
  %2874 = vmatpush1.msra.mxu0 %v2841
  %2875 = vmatprep.subr.mxu0 %v2844
  %2876 = vmatpush1.msra.mxu0 %v2843
  %2877 = vmatprep.subr.mxu0 0.0
  %2878 = vmatpush1.msra.mxu0 0.0
  %2879 = vmatprep.subr.mxu0 0.0
  %2880 = vmatpush1.msra.mxu0 0.0
  %2881 = vmatprep.subr.mxu0 0.0
  %2882 = vmatpush1.msra.mxu0 0.0
  %2883 = vmatprep.subr.mxu0 0.0
  %2884 = vmatpush1.msra.mxu0 0.0
  %2885 = vmatprep.subr.mxu0 0.0
  %2886 = vmatpush1.msra.mxu0 0.0
  %2887 = vmatprep.subr.mxu0 0.0
  %2888 = vmatpush1.msra.mxu0 0.0
  %2889 = vmatprep.subr.mxu0 0.0
  %2890 = vmatpush1.msra.mxu0 0.0
  %2891 = vmatprep.subr.mxu0 0.0
  %2892 = vmatpush1.msra.mxu0 0.0
  %2893 = vmatprep.subr.mxu0 0.0
  %2894 = vmatpush1.msra.mxu0 0.0
  %2895 = vmatprep.subr.mxu0 0.0
  %2896 = vmatpush1.msra.mxu0 0.0
  %2897 = vmatprep.subr.mxu0 0.0
  %2898 = vmatpush1.msra.mxu0 0.0
  %2899 = vmatprep.subr.mxu0 0.0
  %2900 = vmatpush1.msra.mxu0 0.0
  %2901 = vmatprep.subr.mxu0 0.0
  %2902 = vmatpush1.msra.mxu0 0.0
  %2903 = vmatprep.subr.mxu0 0.0
  %2904 = vmatpush1.msra.mxu0 0.0
  %2905 = vmatprep.subr.mxu0 0.0
  %2906 = vmatpush1.msra.mxu0 0.0
  %2907 = vmatprep.subr.mxu0 0.0
  %2908 = vmatpush1.msra.mxu0 0.0
  %2909 = vmatprep.mubr.f32.mxu0 0.0
  %2910 = vmatmul.mubr.f32.gmra.mrb[0].mxu0 %v2131
  %v2911 = vpop.f32.mrb[0].mxu0
  %v2912 = vadd.f32 0.0, %v2911
  %v2913 = vpop.f32.mrb[0].mxu0
  %v2914 = vadd.f32 0.0, %v2913
  %2915 = vmatprep.mubr.f32.mxu0 0.0
  %2916 = vmatmul.mubr.f32.gmra.mrb[0].mxu0 %v2132
  %v2917 = vpop.f32.mrb[0].mxu0
  %v2918 = vadd.f32 0.0, %v2917
  %v2919 = vpop.f32.mrb[0].mxu0
  %v2920 = vadd.f32 0.0, %v2919
  %2921 = vmatprep.mubr.f32.mxu0 0.0
  %2922 = vmatmul.mubr.f32.gmra.mrb[0].mxu0 %v2133
  %v2923 = vpop.f32.mrb[0].mxu0
  %v2924 = vadd.f32 0.0, %v2923
  %v2925 = vpop.f32.mrb[0].mxu0
  %v2926 = vadd.f32 0.0, %v2925
  %2927 = vmatprep.mubr.f32.mxu0 0.0
  %2928 = vmatmul.mubr.f32.gmra.mrb[0].mxu0 %v2134
  %v2929 = vpop.f32.mrb[0].mxu0
  %v2930 = vadd.f32 0.0, %v2929
  %v2931 = vpop.f32.mrb[0].mxu0
  %v2932 = vadd.f32 0.0, %v2931
  %2933 = vmatprep.mubr.f32.mxu0 0.0
  %2934 = vmatmul.mubr.f32.gmra.mrb[0].mxu0 %v2135
  %v2935 = vpop.f32.mrb[0].mxu0
  %v2936 = vadd.f32 0.0, %v2935
  %v2937 = vpop.f32.mrb[0].mxu0
  %v2938 = vadd.f32 0.0, %v2937
  %2939 = vmatprep.mubr.f32.mxu0 0.0
  %2940 = vmatmul.mubr.f32.gmra.mrb[0].mxu0 %v2136
  %v2941 = vpop.f32.mrb[0].mxu0
  %v2942 = vadd.f32 0.0, %v2941
  %v2943 = vpop.f32.mrb[0].mxu0
  %v2944 = vadd.f32 0.0, %v2943
  %2945 = vmatprep.mubr.f32.mxu0 0.0
  %2946 = vmatmul.mubr.f32.gmra.mrb[0].mxu0 %v2137
  %v2947 = vpop.f32.mrb[0].mxu0
  %v2948 = vadd.f32 0.0, %v2947
  %v2949 = vpop.f32.mrb[0].mxu0
  %v2950 = vadd.f32 0.0, %v2949
  %2951 = vmatprep.mubr.f32.mxu0 0.0
  %2952 = vmatmul.mubr.f32.gmra.mrb[0].mxu0 %v2138
  %v2953 = vpop.f32.mrb[0].mxu0
  %v2954 = vadd.f32 0.0, %v2953
  %v2955 = vpop.f32.mrb[0].mxu0
  %v2956 = vadd.f32 0.0, %v2955
  %2957 = vmatprep.mubr.f32.mxu0 0.0
  %2958 = vmatmul.mubr.f32.gmra.mrb[0].mxu0 %v2139
  %v2959 = vpop.f32.mrb[0].mxu0
  %v2960 = vadd.f32 0.0, %v2959
  %v2961 = vpop.f32.mrb[0].mxu0
  %v2962 = vadd.f32 0.0, %v2961
  %2963 = vmatprep.mubr.f32.mxu0 0.0
  %2964 = vmatmul.mubr.f32.gmra.mrb[0].mxu0 %v2140
  %v2965 = vpop.f32.mrb[0].mxu0
  %v2966 = vadd.f32 0.0, %v2965
  %v2967 = vpop.f32.mrb[0].mxu0
  %v2968 = vadd.f32 0.0, %v2967
  %2969 = vdwg.mxu0
  %v2970 = vadd.f32 %v2792, %v2912
  %v2971 = vadd.f32 %v2793, %v2914
  %v2972 = vadd.f32 %v2794, %v2918
  %v2973 = vadd.f32 %v2795, %v2920
  %v2974 = vadd.f32 %v2796, %v2924
  %v2975 = vadd.f32 %v2797, %v2926
  %v2976 = vadd.f32 %v2798, %v2930
  %v2977 = vadd.f32 %v2799, %v2932
  %v2978 = vadd.f32 %v2800, %v2936
  %v2979 = vadd.f32 %v2801, %v2938
  %v2980 = vadd.f32 %v2802, %v2942
  %v2981 = vadd.f32 %v2803, %v2944
  %v2982 = vadd.f32 %v2804, %v2948
  %v2983 = vadd.f32 %v2805, %v2950
  %v2984 = vadd.f32 %v2806, %v2954
  %v2985 = vadd.f32 %v2807, %v2956
  %v2986 = vadd.f32 %v2808, %v2960
  %v2987 = vadd.f32 %v2809, %v2962
  %v2988 = vadd.f32 %v2810, %v2966
  %v2989 = vadd.f32 %v2811, %v2968
  %v2990 = vld [vmem:[%s5] sm:$0x3]
  %v2992 = vlaneseq
  %v2993 = vshrl.u32 %v2992, 7
  %v2994 = vsub.s32 0, %v2993
  %v2995 = vrot.slane %v2990, %v2994
  %v2996 = vlaneseq
  %v2997 = vshrl.u32 %v2996, 7
  %v2998 = vsub.s32 1, %v2997
  %v2999 = vrot.slane %v2990, %v2998
  %v3002 = vadd.f32 %v2970, %v2995
  %v3003 = vadd.f32 %v2971, %v2999
  %v3004 = vadd.f32 %v2972, %v2995
  %v3005 = vadd.f32 %v2973, %v2999
  %v3006 = vadd.f32 %v2974, %v2995
  %v3007 = vadd.f32 %v2975, %v2999
  %v3008 = vadd.f32 %v2976, %v2995
  %v3009 = vadd.f32 %v2977, %v2999
  %v3010 = vadd.f32 %v2978, %v2995
  %v3011 = vadd.f32 %v2979, %v2999
  %v3012 = vadd.f32 %v2980, %v2995
  %v3013 = vadd.f32 %v2981, %v2999
  %v3014 = vadd.f32 %v2982, %v2995
  %v3015 = vadd.f32 %v2983, %v2999
  %v3016 = vadd.f32 %v2984, %v2995
  %v3017 = vadd.f32 %v2985, %v2999
  %v3018 = vadd.f32 %v2986, %v2995
  %v3019 = vadd.f32 %v2987, %v2999
  %v3020 = vadd.f32 %v2988, %v2995
  %v3021 = vadd.f32 %v2989, %v2999
  %v3022 = vmax.f32 %v3002, 0.0
  %v3023 = vmax.f32 %v3003, 0.0
  %v3024 = vmax.f32 %v3004, 0.0
  %v3025 = vmax.f32 %v3005, 0.0
  %v3026 = vmax.f32 %v3006, 0.0
  %v3027 = vmax.f32 %v3007, 0.0
  %v3028 = vmax.f32 %v3008, 0.0
  %v3029 = vmax.f32 %v3009, 0.0
  %v3030 = vmax.f32 %v3010, 0.0
  %v3031 = vmax.f32 %v3011, 0.0
  %v3032 = vmax.f32 %v3012, 0.0
  %v3033 = vmax.f32 %v3013, 0.0
  %v3034 = vmax.f32 %v3014, 0.0
  %v3035 = vmax.f32 %v3015, 0.0
  %v3036 = vmax.f32 %v3016, 0.0
  %v3037 = vmax.f32 %v3017, 0.0
  %v3038 = vmax.f32 %v3018, 0.0
  %v3039 = vmax.f32 %v3019, 0.0
  %v3040 = vmax.f32 %v3020, 0.0
  %v3041 = vmax.f32 %v3021, 0.0
  %v3042 = vmax.f32 %v3022, %v3024
  %v3043 = vmax.f32 %v3023, %v3025
  %v3044 = vmax.f32 %v3026, %v3028
  %v3045 = vmax.f32 %v3027, %v3029
  %v3046 = vmax.f32 %v3030, %v3032
  %v3047 = vmax.f32 %v3031, %v3033
  %v3048 = vmax.f32 %v3034, %v3036
  %v3049 = vmax.f32 %v3035, %v3037
  %v3050 = vmax.f32 %v3038, %v3040
  %v3051 = vmax.f32 %v3039, %v3041
  %v3052 = vld [vmem:[%s6] sm:$0xff]
  %v3053 = vld [vmem:[%s6 + $0x8] sm:$0xff]
  %v3054 = vld [vmem:[%s6 + $0x10] sm:$0xff]
  %v3055 = vld [vmem:[%s6 + $0x18] sm:$0xff]
  %v3056 = vld [vmem:[%s6 + $0x20] sm:$0xff]
  %v3057 = vld [vmem:[%s6 + $0x28] sm:$0xff]
  %v3058 = vld [vmem:[%s6 + $0x30] sm:$0xff]
  %v3059 = vld [vmem:[%s6 + $0x38] sm:$0xff]
  %v3060 = vld [vmem:[%s6 + $0x40] sm:$0xff]
  %v3061 = vld [vmem:[%s6 + $0x48] sm:$0xff]
  %v3062 = vld [vmem:[%s6 + $0x50] sm:$0xff]
  %v3063 = vld [vmem:[%s6 + $0x58] sm:$0xff]
  %v3064 = vld [vmem:[%s6 + $0x60] sm:$0xff]
  %v3065 = vld [vmem:[%s6 + $0x68] sm:$0xff]
  %v3066 = vld [vmem:[%s6 + $0x70] sm:$0xff]
  %v3067 = vld [vmem:[%s6 + $0x78] sm:$0xff]
  %v3068 = vld [vmem:[%s6 + $0x80] sm:$0xff]
  %v3069 = vld [vmem:[%s6 + $0x88] sm:$0xff]
  %v3070 = vld [vmem:[%s6 + $0x90] sm:$0xff]
  %v3071 = vld [vmem:[%s6 + $0x98] sm:$0xff]
  %vm3072 = vcmask 261120
  %v3074 = vsel %vm3072, %v3043, 0
  %v3077 = vsel %vm3072, %v3045, 0
  %v3080 = vsel %vm3072, %v3047, 0
  %v3083 = vsel %vm3072, %v3049, 0
  %v3086 = vsel %vm3072, %v3051, 0
  %3088 = vmatprep.subr.mxu0 0.0
  %3089 = vmatpush1.msra.mxu0 %v3052
  %3090 = vmatprep.subr.mxu0 0.0
  %3091 = vmatpush1.msra.mxu0 %v3053
  %3092 = vmatprep.subr.mxu0 0.0
  %3093 = vmatpush1.msra.mxu0 %v3054
  %3094 = vmatprep.subr.mxu0 0.0
  %3095 = vmatpush1.msra.mxu0 %v3055
  %3096 = vmatprep.subr.mxu0 0.0
  %3097 = vmatpush1.msra.mxu0 %v3056
  %3098 = vmatprep.subr.mxu0 0.0
  %3099 = vmatpush1.msra.mxu0 %v3057
  %3100 = vmatprep.subr.mxu0 0.0
  %3101 = vmatpush1.msra.mxu0 %v3058
  %3102 = vmatprep.subr.mxu0 0.0
  %3103 = vmatpush1.msra.mxu0 %v3059
  %3104 = vmatprep.subr.mxu0 0.0
  %3105 = vmatpush1.msra.mxu0 %v3060
  %3106 = vmatprep.subr.mxu0 0.0
  %3107 = vmatpush1.msra.mxu0 %v3061
  %3108 = vmatprep.subr.mxu0 0.0
  %3109 = vmatpush1.msra.mxu0 %v3062
  %3110 = vmatprep.subr.mxu0 0.0
  %3111 = vmatpush1.msra.mxu0 %v3063
  %3112 = vmatprep.subr.mxu0 0.0
  %3113 = vmatpush1.msra.mxu0 %v3064
  %3114 = vmatprep.subr.mxu0 0.0
  %3115 = vmatpush1.msra.mxu0 %v3065
  %3116 = vmatprep.subr.mxu0 0.0
  %3117 = vmatpush1.msra.mxu0 %v3066
  %3118 = vmatprep.subr.mxu0 0.0
  %3119 = vmatpush1.msra.mxu0 %v3067
  %3120 = vmatprep.subr.mxu0 0.0
  %3121 = vmatpush1.msra.mxu0 %v3068
  %3122 = vmatprep.subr.mxu0 0.0
  %3123 = vmatpush1.msra.mxu0 %v3069
  %3124 = vmatprep.subr.mxu0 0.0
  %3125 = vmatpush1.msra.mxu0 %v3070
  %3126 = vmatprep.subr.mxu0 0.0
  %3127 = vmatpush1.msra.mxu0 %v3071
  %3128 = vmatprep.subr.mxu0 0.0
  %3129 = vmatpush1.msra.mxu0 0.0
  %3130 = vmatprep.subr.mxu0 0.0
  %3131 = vmatpush1.msra.mxu0 0.0
  %3132 = vmatprep.subr.mxu0 0.0
  %3133 = vmatpush1.msra.mxu0 0.0
  %3134 = vmatprep.subr.mxu0 0.0
  %3135 = vmatpush1.msra.mxu0 0.0
  %3136 = vmatprep.subr.mxu0 0.0
  %3137 = vmatpush1.msra.mxu0 0.0
  %3138 = vmatprep.subr.mxu0 0.0
  %3139 = vmatpush1.msra.mxu0 0.0
  %3140 = vmatprep.subr.mxu0 0.0
  %3141 = vmatpush1.msra.mxu0 0.0
  %3142 = vmatprep.subr.mxu0 0.0
  %3143 = vmatpush1.msra.mxu0 0.0
  %3144 = vmatprep.subr.mxu0 0.0
  %3145 = vmatpush1.msra.mxu0 0.0
  %3146 = vmatprep.subr.mxu0 0.0
  %3147 = vmatpush1.msra.mxu0 0.0
  %3148 = vmatprep.subr.mxu0 0.0
  %3149 = vmatpush1.msra.mxu0 0.0
  %3150 = vmatprep.subr.mxu0 0.0
  %3151 = vmatpush1.msra.mxu0 0.0
  %3152 = vmatprep.mubr.f32.mxu0 %v3074
  %3153 = vmatmul.mubr.f32.gmra.mrb[0].mxu0 %v3042
  %v3154 = vpop.f32.mrb[0].mxu0
  %v3155 = vadd.f32 0.0, %v3154
  %v3156 = vpop.f32.mrb[0].mxu0
  %3157 = vmatprep.mubr.f32.mxu0 %v3077
  %3158 = vmatmul.mubr.f32.gmra.mrb[0].mxu0 %v3044
  %v3159 = vpop.f32.mrb[0].mxu0
  %v3160 = vadd.f32 0.0, %v3159
  %v3161 = vpop.f32.mrb[0].mxu0
  %3162 = vmatprep.mubr.f32.mxu0 %v3080
  %3163 = vmatmul.mubr.f32.gmra.mrb[0].mxu0 %v3046
  %v3164 = vpop.f32.mrb[0].mxu0
  %v3165 = vadd.f32 0.0, %v3164
  %v3166 = vpop.f32.mrb[0].mxu0
  %3167 = vmatprep.mubr.f32.mxu0 %v3083
  %3168 = vmatmul.mubr.f32.gmra.mrb[0].mxu0 %v3048
  %v3169 = vpop.f32.mrb[0].mxu0
  %v3170 = vadd.f32 0.0, %v3169
  %v3171 = vpop.f32.mrb[0].mxu0
  %3172 = vmatprep.mubr.f32.mxu0 %v3086
  %3173 = vmatmul.mubr.f32.gmra.mrb[0].mxu0 %v3050
  %v3174 = vpop.f32.mrb[0].mxu0
  %v3175 = vadd.f32 0.0, %v3174
  %v3176 = vpop.f32.mrb[0].mxu0
  %3177 = vdwg.mxu0
  %v3178 = vld [vmem:[%s7] sm:$0xff]
  %v3179 = vld [vmem:[%s7 + $0x8] sm:$0xff]
  %v3180 = vld [vmem:[%s7 + $0x10] sm:$0xff]
  %v3181 = vld [vmem:[%s7 + $0x18] sm:$0xff]
  %v3182 = vld [vmem:[%s7 + $0x20] sm:$0xff]
  %v3183 = vld [vmem:[%s7 + $0x28] sm:$0xff]
  %v3184 = vld [vmem:[%s7 + $0x30] sm:$0xff]
  %v3185 = vld [vmem:[%s7 + $0x38] sm:$0xff]
  %v3186 = vld [vmem:[%s7 + $0x40] sm:$0xff]
  %v3187 = vld [vmem:[%s7 + $0x48] sm:$0xff]
  %v3188 = vld [vmem:[%s7 + $0x50] sm:$0xff]
  %v3189 = vld [vmem:[%s7 + $0x58] sm:$0xff]
  %v3190 = vld [vmem:[%s7 + $0x60] sm:$0xff]
  %v3191 = vld [vmem:[%s7 + $0x68] sm:$0xff]
  %v3192 = vld [vmem:[%s7 + $0x70] sm:$0xff]
  %v3193 = vld [vmem:[%s7 + $0x78] sm:$0xff]
  %v3194 = vld [vmem:[%s7 + $0x80] sm:$0xff]
  %v3195 = vld [vmem:[%s7 + $0x88] sm:$0xff]
  %v3196 = vld [vmem:[%s7 + $0x90] sm:$0xff]
  %v3197 = vld [vmem:[%s7 + $0x98] sm:$0xff]
  %3198 = vmatprep.subr.mxu0 0.0
  %3199 = vmatpush1.msra.mxu0 %v3178
  %3200 = vmatprep.subr.mxu0 0.0
  %3201 = vmatpush1.msra.mxu0 %v3179
  %3202 = vmatprep.subr.mxu0 0.0
  %3203 = vmatpush1.msra.mxu0 %v3180
  %3204 = vmatprep.subr.mxu0 0.0
  %3205 = vmatpush1.msra.mxu0 %v3181
  %3206 = vmatprep.subr.mxu0 0.0
  %3207 = vmatpush1.msra.mxu0 %v3182
  %3208 = vmatprep.subr.mxu0 0.0
  %3209 = vmatpush1.msra.mxu0 %v3183
  %3210 = vmatprep.subr.mxu0 0.0
  %3211 = vmatpush1.msra.mxu0 %v3184
  %3212 = vmatprep.subr.mxu0 0.0
  %3213 = vmatpush1.msra.mxu0 %v3185
  %3214 = vmatprep.subr.mxu0 0.0
  %3215 = vmatpush1.msra.mxu0 %v3186
  %3216 = vmatprep.subr.mxu0 0.0
  %3217 = vmatpush1.msra.mxu0 %v3187
  %3218 = vmatprep.subr.mxu0 0.0
  %3219 = vmatpush1.msra.mxu0 %v3188
  %3220 = vmatprep.subr.mxu0 0.0
  %3221 = vmatpush1.msra.mxu0 %v3189
  %3222 = vmatprep.subr.mxu0 0.0
  %3223 = vmatpush1.msra.mxu0 %v3190
  %3224 = vmatprep.subr.mxu0 0.0
  %3225 = vmatpush1.msra.mxu0 %v3191
  %3226 = vmatprep.subr.mxu0 0.0
  %3227 = vmatpush1.msra.mxu0 %v3192
  %3228 = vmatprep.subr.mxu0 0.0
  %3229 = vmatpush1.msra.mxu0 %v3193
  %3230 = vmatprep.subr.mxu0 0.0
  %3231 = vmatpush1.msra.mxu0 %v3194
  %3232 = vmatprep.subr.mxu0 0.0
  %3233 = vmatpush1.msra.mxu0 %v3195
  %3234 = vmatprep.subr.mxu0 0.0
  %3235 = vmatpush1.msra.mxu0 %v3196
  %3236 = vmatprep.subr.mxu0 0.0
  %3237 = vmatpush1.msra.mxu0 %v3197
  %3238 = vmatprep.subr.mxu0 0.0
  %3239 = vmatpush1.msra.mxu0 0.0
  %3240 = vmatprep.subr.mxu0 0.0
  %3241 = vmatpush1.msra.mxu0 0.0
  %3242 = vmatprep.subr.mxu0 0.0
  %3243 = vmatpush1.msra.mxu0 0.0
  %3244 = vmatprep.subr.mxu0 0.0
  %3245 = vmatpush1.msra.mxu0 0.0
  %3246 = vmatprep.subr.mxu0 0.0
  %3247 = vmatpush1.msra.mxu0 0.0
  %3248 = vmatprep.subr.mxu0 0.0
  %3249 = vmatpush1.msra.mxu0 0.0
  %3250 = vmatprep.subr.mxu0 0.0
  %3251 = vmatpush1.msra.mxu0 0.0
  %3252 = vmatprep.subr.mxu0 0.0
  %3253 = vmatpush1.msra.mxu0 0.0
  %3254 = vmatprep.subr.mxu0 0.0
  %3255 = vmatpush1.msra.mxu0 0.0
  %3256 = vmatprep.subr.mxu0 0.0
  %3257 = vmatpush1.msra.mxu0 0.0
  %3258 = vmatprep.subr.mxu0 0.0
  %3259 = vmatpush1.msra.mxu0 0.0
  %3260 = vmatprep.subr.mxu0 0.0
  %3261 = vmatpush1.msra.mxu0 0.0
  %3262 = vmatprep.mubr.f32.mxu0 %v3074
  %3263 = vmatmul.mubr.f32.gmra.mrb[0].mxu0 %v3042
  %v3264 = vpop.f32.mrb[0].mxu0
  %v3265 = vadd.f32 0.0, %v3264
  %v3266 = vpop.f32.mrb[0].mxu0
  %3267 = vmatprep.mubr.f32.mxu0 %v3077
  %3268 = vmatmul.mubr.f32.gmra.mrb[0].mxu0 %v3044
  %v3269 = vpop.f32.mrb[0].mxu0
  %v3270 = vadd.f32 0.0, %v3269
  %v3271 = vpop.f32.mrb[0].mxu0
  %3272 = vmatprep.mubr.f32.mxu0 %v3080
  %3273 = vmatmul.mubr.f32.gmra.mrb[0].mxu0 %v3046
  %v3274 = vpop.f32.mrb[0].mxu0
  %v3275 = vadd.f32 0.0, %v3274
  %v3276 = vpop.f32.mrb[0].mxu0
  %3277 = vmatprep.mubr.f32.mxu0 %v3083
  %3278 = vmatmul.mubr.f32.gmra.mrb[0].mxu0 %v3048
  %v3279 = vpop.f32.mrb[0].mxu0
  %v3280 = vadd.f32 0.0, %v3279
  %v3281 = vpop.f32.mrb[0].mxu0
  %3282 = vmatprep.mubr.f32.mxu0 %v3086
  %3283 = vmatmul.mubr.f32.gmra.mrb[0].mxu0 %v3050
  %v3284 = vpop.f32.mrb[0].mxu0
  %v3285 = vadd.f32 0.0, %v3284
  %v3286 = vpop.f32.mrb[0].mxu0
  %3287 = vdwg.mxu0
  %v3288 = vmax.f32 %v3155, %v3265
  %v3289 = vmax.f32 %v3160, %v3270
  %v3290 = vmax.f32 %v3165, %v3275
  %v3291 = vmax.f32 %v3170, %v3280
  %v3292 = vmax.f32 %v3175, %v3285
  %v3293 = vld [vmem:[%s8] sm:$0xff]
  %v3294 = vld [vmem:[%s8 + $0x8] sm:$0xff]
  %v3295 = vld [vmem:[%s8 + $0x10] sm:$0xff]
  %v3296 = vld [vmem:[%s8 + $0x18] sm:$0xff]
  %v3297 = vld [vmem:[%s8 + $0x20] sm:$0xff]
  %v3298 = vld [vmem:[%s8 + $0x28] sm:$0xff]
  %v3299 = vld [vmem:[%s8 + $0x30] sm:$0xff]
  %v3300 = vld [vmem:[%s8 + $0x38] sm:$0xff]
  %v3301 = vld [vmem:[%s8 + $0x40] sm:$0xff]
  %v3302 = vld [vmem:[%s8 + $0x48] sm:$0xff]
  %v3303 = vld [vmem:[%s8 + $0x50] sm:$0xff]
  %v3304 = vld [vmem:[%s8 + $0x58] sm:$0xff]
  %v3305 = vld [vmem:[%s8 + $0x60] sm:$0xff]
  %v3306 = vld [vmem:[%s8 + $0x68] sm:$0xff]
  %v3307 = vld [vmem:[%s8 + $0x70] sm:$0xff]
  %v3308 = vld [vmem:[%s8 + $0x78] sm:$0xff]
  %s3309 = scalar_lea.vmem %s8, 128
  %v3310 = vld [vmem:[%s3309] sm:$0xff]
  %v3311 = vld [vmem:[%s3309 + $0x8] sm:$0xff]
  %v3312 = vld [vmem:[%s3309 + $0x10] sm:$0xff]
  %v3313 = vld [vmem:[%s3309 + $0x18] sm:$0xff]
  %v3314 = vld [vmem:[%s3309 + $0x20] sm:$0xff]
  %v3315 = vld [vmem:[%s3309 + $0x28] sm:$0xff]
  %v3316 = vld [vmem:[%s3309 + $0x30] sm:$0xff]
  %v3317 = vld [vmem:[%s3309 + $0x38] sm:$0xff]
  %v3318 = vld [vmem:[%s3309 + $0x40] sm:$0xff]
  %v3319 = vld [vmem:[%s3309 + $0x48] sm:$0xff]
  %v3320 = vld [vmem:[%s3309 + $0x50] sm:$0xff]
  %v3321 = vld [vmem:[%s3309 + $0x58] sm:$0xff]
  %v3322 = vld [vmem:[%s3309 + $0x60] sm:$0xff]
  %v3323 = vld [vmem:[%s3309 + $0x68] sm:$0xff]
  %v3324 = vld [vmem:[%s3309 + $0x70] sm:$0xff]
  %v3325 = vld [vmem:[%s3309 + $0x78] sm:$0xff]
  %3326 = vmatprep.subr.mxu0 0.0
  %3327 = vmatpush1.msra.mxu0 %v3310
  %3328 = vmatprep.subr.mxu0 0.0
  %3329 = vmatpush1.msra.mxu0 %v3311
  %3330 = vmatprep.subr.mxu0 0.0
  %3331 = vmatpush1.msra.mxu0 %v3312
  %3332 = vmatprep.subr.mxu0 0.0
  %3333 = vmatpush1.msra.mxu0 %v3313
  %3334 = vmatprep.subr.mxu0 0.0
  %3335 = vmatpush1.msra.mxu0 %v3314
  %3336 = vmatprep.subr.mxu0 0.0
  %3337 = vmatpush1.msra.mxu0 %v3315
  %3338 = vmatprep.subr.mxu0 0.0
  %3339 = vmatpush1.msra.mxu0 %v3316
  %3340 = vmatprep.subr.mxu0 0.0
  %3341 = vmatpush1.msra.mxu0 %v3317
  %3342 = vmatprep.subr.mxu0 0.0
  %3343 = vmatpush1.msra.mxu0 %v3318
  %3344 = vmatprep.subr.mxu0 0.0
  %3345 = vmatpush1.msra.mxu0 %v3319
  %3346 = vmatprep.subr.mxu0 0.0
  %3347 = vmatpush1.msra.mxu0 %v3320
  %3348 = vmatprep.subr.mxu0 0.0
  %3349 = vmatpush1.msra.mxu0 %v3321
  %3350 = vmatprep.subr.mxu0 0.0
  %3351 = vmatpush1.msra.mxu0 %v3322
  %3352 = vmatprep.subr.mxu0 0.0
  %3353 = vmatpush1.msra.mxu0 %v3323
  %3354 = vmatprep.subr.mxu0 0.0
  %3355 = vmatpush1.msra.mxu0 %v3324
  %3356 = vmatprep.subr.mxu0 0.0
  %3357 = vmatpush1.msra.mxu0 %v3325
  %3358 = vmatprep.subr.mxu0 0.0
  %3359 = vmatpush1.msra.mxu0 0.0
  %3360 = vmatprep.subr.mxu0 0.0
  %3361 = vmatpush1.msra.mxu0 0.0
  %3362 = vmatprep.subr.mxu0 0.0
  %3363 = vmatpush1.msra.mxu0 0.0
  %3364 = vmatprep.subr.mxu0 0.0
  %3365 = vmatpush1.msra.mxu0 0.0
  %3366 = vmatprep.subr.mxu0 0.0
  %3367 = vmatpush1.msra.mxu0 0.0
  %3368 = vmatprep.subr.mxu0 0.0
  %3369 = vmatpush1.msra.mxu0 0.0
  %3370 = vmatprep.subr.mxu0 0.0
  %3371 = vmatpush1.msra.mxu0 0.0
  %3372 = vmatprep.subr.mxu0 0.0
  %3373 = vmatpush1.msra.mxu0 0.0
  %3374 = vmatprep.subr.mxu0 0.0
  %3375 = vmatpush1.msra.mxu0 0.0
  %3376 = vmatprep.subr.mxu0 0.0
  %3377 = vmatpush1.msra.mxu0 0.0
  %3378 = vmatprep.subr.mxu0 0.0
  %3379 = vmatpush1.msra.mxu0 0.0
  %3380 = vmatprep.subr.mxu0 0.0
  %3381 = vmatpush1.msra.mxu0 0.0
  %3382 = vmatprep.subr.mxu0 0.0
  %3383 = vmatpush1.msra.mxu0 0.0
  %3384 = vmatprep.subr.mxu0 0.0
  %3385 = vmatpush1.msra.mxu0 0.0
  %3386 = vmatprep.subr.mxu0 0.0
  %3387 = vmatpush1.msra.mxu0 0.0
  %3388 = vmatprep.subr.mxu0 0.0
  %3389 = vmatpush1.msra.mxu0 0.0
  %3390 = vmatprep.mubr.f32.mxu0 0.0
  %3391 = vmatmul.mubr.f32.gmra.mrb[0].mxu0 %v3289
  %v3392 = vpop.f32.mrb[0].mxu0
  %v3393 = vadd.f32 0.0, %v3392
  %v3394 = vpop.f32.mrb[0].mxu0
  %3395 = vdwg.mxu0
  %3396 = vmatprep.subr.mxu0 0.0
  %3397 = vmatpush1.msra.mxu0 %v3293
  %3398 = vmatprep.subr.mxu0 0.0
  %3399 = vmatpush1.msra.mxu0 %v3294
  %3400 = vmatprep.subr.mxu0 0.0
  %3401 = vmatpush1.msra.mxu0 %v3295
  %3402 = vmatprep.subr.mxu0 0.0
  %3403 = vmatpush1.msra.mxu0 %v3296
  %3404 = vmatprep.subr.mxu0 0.0
  %3405 = vmatpush1.msra.mxu0 %v3297
  %3406 = vmatprep.subr.mxu0 0.0
  %3407 = vmatpush1.msra.mxu0 %v3298
  %3408 = vmatprep.subr.mxu0 0.0
  %3409 = vmatpush1.msra.mxu0 %v3299
  %3410 = vmatprep.subr.mxu0 0.0
  %3411 = vmatpush1.msra.mxu0 %v3300
  %3412 = vmatprep.subr.mxu0 0.0
  %3413 = vmatpush1.msra.mxu0 %v3301
  %3414 = vmatprep.subr.mxu0 0.0
  %3415 = vmatpush1.msra.mxu0 %v3302
  %3416 = vmatprep.subr.mxu0 0.0
  %3417 = vmatpush1.msra.mxu0 %v3303
  %3418 = vmatprep.subr.mxu0 0.0
  %3419 = vmatpush1.msra.mxu0 %v3304
  %3420 = vmatprep.subr.mxu0 0.0
  %3421 = vmatpush1.msra.mxu0 %v3305
  %3422 = vmatprep.subr.mxu0 0.0
  %3423 = vmatpush1.msra.mxu0 %v3306
  %3424 = vmatprep.subr.mxu0 0.0
  %3425 = vmatpush1.msra.mxu0 %v3307
  %3426 = vmatprep.subr.mxu0 0.0
  %3427 = vmatpush1.msra.mxu0 %v3308
  %3428 = vmatprep.subr.mxu0 0.0
  %3429 = vmatpush1.msra.mxu0 0.0
  %3430 = vmatprep.subr.mxu0 0.0
  %3431 = vmatpush1.msra.mxu0 0.0
  %3432 = vmatprep.subr.mxu0 0.0
  %3433 = vmatpush1.msra.mxu0 0.0
  %3434 = vmatprep.subr.mxu0 0.0
  %3435 = vmatpush1.msra.mxu0 0.0
  %3436 = vmatprep.subr.mxu0 0.0
  %3437 = vmatpush1.msra.mxu0 0.0
  %3438 = vmatprep.subr.mxu0 0.0
  %3439 = vmatpush1.msra.mxu0 0.0
  %3440 = vmatprep.subr.mxu0 0.0
  %3441 = vmatpush1.msra.mxu0 0.0
  %3442 = vmatprep.subr.mxu0 0.0
  %3443 = vmatpush1.msra.mxu0 0.0
  %3444 = vmatprep.subr.mxu0 0.0
  %3445 = vmatpush1.msra.mxu0 0.0
  %3446 = vmatprep.subr.mxu0 0.0
  %3447 = vmatpush1.msra.mxu0 0.0
  %3448 = vmatprep.subr.mxu0 0.0
  %3449 = vmatpush1.msra.mxu0 0.0
  %3450 = vmatprep.subr.mxu0 0.0
  %3451 = vmatpush1.msra.mxu0 0.0
  %3452 = vmatprep.subr.mxu0 0.0
  %3453 = vmatpush1.msra.mxu0 0.0
  %3454 = vmatprep.subr.mxu0 0.0
  %3455 = vmatpush1.msra.mxu0 0.0
  %3456 = vmatprep.subr.mxu0 0.0
  %3457 = vmatpush1.msra.mxu0 0.0
  %3458 = vmatprep.subr.mxu0 0.0
  %3459 = vmatpush1.msra.mxu0 0.0
  %3460 = vmatprep.mubr.f32.mxu0 0.0
  %3461 = vmatmul.mubr.f32.gmra.mrb[0].mxu0 %v3288
  %v3462 = vpop.f32.mrb[0].mxu0
  %v3463 = vadd.f32 %v3393, %v3462
  %v3464 = vpop.f32.mrb[0].mxu0
  %3465 = vdwg.mxu0
  %s3466 = scalar_lea.vmem %s8, 256
  %v3467 = vld [vmem:[%s3466] sm:$0xff]
  %v3468 = vld [vmem:[%s3466 + $0x8] sm:$0xff]
  %v3469 = vld [vmem:[%s3466 + $0x10] sm:$0xff]
  %v3470 = vld [vmem:[%s3466 + $0x18] sm:$0xff]
  %v3471 = vld [vmem:[%s3466 + $0x20] sm:$0xff]
  %v3472 = vld [vmem:[%s3466 + $0x28] sm:$0xff]
  %v3473 = vld [vmem:[%s3466 + $0x30] sm:$0xff]
  %v3474 = vld [vmem:[%s3466 + $0x38] sm:$0xff]
  %v3475 = vld [vmem:[%s3466 + $0x40] sm:$0xff]
  %v3476 = vld [vmem:[%s3466 + $0x48] sm:$0xff]
  %v3477 = vld [vmem:[%s3466 + $0x50] sm:$0xff]
  %v3478 = vld [vmem:[%s3466 + $0x58] sm:$0xff]
  %v3479 = vld [vmem:[%s3466 + $0x60] sm:$0xff]
  %v3480 = vld [vmem:[%s3466 + $0x68] sm:$0xff]
  %v3481 = vld [vmem:[%s3466 + $0x70] sm:$0xff]
  %v3482 = vld [vmem:[%s3466 + $0x78] sm:$0xff]
  %3483 = vmatprep.subr.mxu0 0.0
  %3484 = vmatpush1.msra.mxu0 %v3467
  %3485 = vmatprep.subr.mxu0 0.0
  %3486 = vmatpush1.msra.mxu0 %v3468
  %3487 = vmatprep.subr.mxu0 0.0
  %3488 = vmatpush1.msra.mxu0 %v3469
  %3489 = vmatprep.subr.mxu0 0.0
  %3490 = vmatpush1.msra.mxu0 %v3470
  %3491 = vmatprep.subr.mxu0 0.0
  %3492 = vmatpush1.msra.mxu0 %v3471
  %3493 = vmatprep.subr.mxu0 0.0
  %3494 = vmatpush1.msra.mxu0 %v3472
  %3495 = vmatprep.subr.mxu0 0.0
  %3496 = vmatpush1.msra.mxu0 %v3473
  %3497 = vmatprep.subr.mxu0 0.0
  %3498 = vmatpush1.msra.mxu0 %v3474
  %3499 = vmatprep.subr.mxu0 0.0
  %3500 = vmatpush1.msra.mxu0 %v3475
  %3501 = vmatprep.subr.mxu0 0.0
  %3502 = vmatpush1.msra.mxu0 %v3476
  %3503 = vmatprep.subr.mxu0 0.0
  %3504 = vmatpush1.msra.mxu0 %v3477
  %3505 = vmatprep.subr.mxu0 0.0
  %3506 = vmatpush1.msra.mxu0 %v3478
  %3507 = vmatprep.subr.mxu0 0.0
  %3508 = vmatpush1.msra.mxu0 %v3479
  %3509 = vmatprep.subr.mxu0 0.0
  %3510 = vmatpush1.msra.mxu0 %v3480
  %3511 = vmatprep.subr.mxu0 0.0
  %3512 = vmatpush1.msra.mxu0 %v3481
  %3513 = vmatprep.subr.mxu0 0.0
  %3514 = vmatpush1.msra.mxu0 %v3482
  %3515 = vmatprep.subr.mxu0 0.0
  %3516 = vmatpush1.msra.mxu0 0.0
  %3517 = vmatprep.subr.mxu0 0.0
  %3518 = vmatpush1.msra.mxu0 0.0
  %3519 = vmatprep.subr.mxu0 0.0
  %3520 = vmatpush1.msra.mxu0 0.0
  %3521 = vmatprep.subr.mxu0 0.0
  %3522 = vmatpush1.msra.mxu0 0.0
  %3523 = vmatprep.subr.mxu0 0.0
  %3524 = vmatpush1.msra.mxu0 0.0
  %3525 = vmatprep.subr.mxu0 0.0
  %3526 = vmatpush1.msra.mxu0 0.0
  %3527 = vmatprep.subr.mxu0 0.0
  %3528 = vmatpush1.msra.mxu0 0.0
  %3529 = vmatprep.subr.mxu0 0.0
  %3530 = vmatpush1.msra.mxu0 0.0
  %3531 = vmatprep.subr.mxu0 0.0
  %3532 = vmatpush1.msra.mxu0 0.0
  %3533 = vmatprep.subr.mxu0 0.0
  %3534 = vmatpush1.msra.mxu0 0.0
  %3535 = vmatprep.subr.mxu0 0.0
  %3536 = vmatpush1.msra.mxu0 0.0
  %3537 = vmatprep.subr.mxu0 0.0
  %3538 = vmatpush1.msra.mxu0 0.0
  %3539 = vmatprep.subr.mxu0 0.0
  %3540 = vmatpush1.msra.mxu0 0.0
  %3541 = vmatprep.subr.mxu0 0.0
  %3542 = vmatpush1.msra.mxu0 0.0
  %3543 = vmatprep.subr.mxu0 0.0
  %3544 = vmatpush1.msra.mxu0 0.0
  %3545 = vmatprep.subr.mxu0 0.0
  %3546 = vmatpush1.msra.mxu0 0.0
  %3547 = vmatprep.mubr.f32.mxu0 0.0
  %3548 = vmatmul.mubr.f32.gmra.mrb[0].mxu0 %v3290
  %v3549 = vpop.f32.mrb[0].mxu0
  %v3550 = vadd.f32 0.0, %v3549
  %v3551 = vpop.f32.mrb[0].mxu0
  %3552 = vdwg.mxu0
  %v3553 = vadd.f32 %v3463, %v3550
  %s3554 = scalar_lea.vmem %s8, 384
  %v3555 = vld [vmem:[%s3554] sm:$0xff]
  %v3556 = vld [vmem:[%s3554 + $0x8] sm:$0xff]
  %v3557 = vld [vmem:[%s3554 + $0x10] sm:$0xff]
  %v3558 = vld [vmem:[%s3554 + $0x18] sm:$0xff]
  %v3559 = vld [vmem:[%s3554 + $0x20] sm:$0xff]
  %v3560 = vld [vmem:[%s3554 + $0x28] sm:$0xff]
  %v3561 = vld [vmem:[%s3554 + $0x30] sm:$0xff]
  %v3562 = vld [vmem:[%s3554 + $0x38] sm:$0xff]
  %v3563 = vld [vmem:[%s3554 + $0x40] sm:$0xff]
  %v3564 = vld [vmem:[%s3554 + $0x48] sm:$0xff]
  %v3565 = vld [vmem:[%s3554 + $0x50] sm:$0xff]
  %v3566 = vld [vmem:[%s3554 + $0x58] sm:$0xff]
  %v3567 = vld [vmem:[%s3554 + $0x60] sm:$0xff]
  %v3568 = vld [vmem:[%s3554 + $0x68] sm:$0xff]
  %v3569 = vld [vmem:[%s3554 + $0x70] sm:$0xff]
  %v3570 = vld [vmem:[%s3554 + $0x78] sm:$0xff]
  %3571 = vmatprep.subr.mxu0 0.0
  %3572 = vmatpush1.msra.mxu0 %v3555
  %3573 = vmatprep.subr.mxu0 0.0
  %3574 = vmatpush1.msra.mxu0 %v3556
  %3575 = vmatprep.subr.mxu0 0.0
  %3576 = vmatpush1.msra.mxu0 %v3557
  %3577 = vmatprep.subr.mxu0 0.0
  %3578 = vmatpush1.msra.mxu0 %v3558
  %3579 = vmatprep.subr.mxu0 0.0
  %3580 = vmatpush1.msra.mxu0 %v3559
  %3581 = vmatprep.subr.mxu0 0.0
  %3582 = vmatpush1.msra.mxu0 %v3560
  %3583 = vmatprep.subr.mxu0 0.0
  %3584 = vmatpush1.msra.mxu0 %v3561
  %3585 = vmatprep.subr.mxu0 0.0
  %3586 = vmatpush1.msra.mxu0 %v3562
  %3587 = vmatprep.subr.mxu0 0.0
  %3588 = vmatpush1.msra.mxu0 %v3563
  %3589 = vmatprep.subr.mxu0 0.0
  %3590 = vmatpush1.msra.mxu0 %v3564
  %3591 = vmatprep.subr.mxu0 0.0
  %3592 = vmatpush1.msra.mxu0 %v3565
  %3593 = vmatprep.subr.mxu0 0.0
  %3594 = vmatpush1.msra.mxu0 %v3566
  %3595 = vmatprep.subr.mxu0 0.0
  %3596 = vmatpush1.msra.mxu0 %v3567
  %3597 = vmatprep.subr.mxu0 0.0
  %3598 = vmatpush1.msra.mxu0 %v3568
  %3599 = vmatprep.subr.mxu0 0.0
  %3600 = vmatpush1.msra.mxu0 %v3569
  %3601 = vmatprep.subr.mxu0 0.0
  %3602 = vmatpush1.msra.mxu0 %v3570
  %3603 = vmatprep.subr.mxu0 0.0
  %3604 = vmatpush1.msra.mxu0 0.0
  %3605 = vmatprep.subr.mxu0 0.0
  %3606 = vmatpush1.msra.mxu0 0.0
  %3607 = vmatprep.subr.mxu0 0.0
  %3608 = vmatpush1.msra.mxu0 0.0
  %3609 = vmatprep.subr.mxu0 0.0
  %3610 = vmatpush1.msra.mxu0 0.0
  %3611 = vmatprep.subr.mxu0 0.0
  %3612 = vmatpush1.msra.mxu0 0.0
  %3613 = vmatprep.subr.mxu0 0.0
  %3614 = vmatpush1.msra.mxu0 0.0
  %3615 = vmatprep.subr.mxu0 0.0
  %3616 = vmatpush1.msra.mxu0 0.0
  %3617 = vmatprep.subr.mxu0 0.0
  %3618 = vmatpush1.msra.mxu0 0.0
  %3619 = vmatprep.subr.mxu0 0.0
  %3620 = vmatpush1.msra.mxu0 0.0
  %3621 = vmatprep.subr.mxu0 0.0
  %3622 = vmatpush1.msra.mxu0 0.0
  %3623 = vmatprep.subr.mxu0 0.0
  %3624 = vmatpush1.msra.mxu0 0.0
  %3625 = vmatprep.subr.mxu0 0.0
  %3626 = vmatpush1.msra.mxu0 0.0
  %3627 = vmatprep.subr.mxu0 0.0
  %3628 = vmatpush1.msra.mxu0 0.0
  %3629 = vmatprep.subr.mxu0 0.0
  %3630 = vmatpush1.msra.mxu0 0.0
  %3631 = vmatprep.subr.mxu0 0.0
  %3632 = vmatpush1.msra.mxu0 0.0
  %3633 = vmatprep.subr.mxu0 0.0
  %3634 = vmatpush1.msra.mxu0 0.0
  %3635 = vmatprep.mubr.f32.mxu0 0.0
  %3636 = vmatmul.mubr.f32.gmra.mrb[0].mxu0 %v3291
  %v3637 = vpop.f32.mrb[0].mxu0
  %v3638 = vadd.f32 0.0, %v3637
  %v3639 = vpop.f32.mrb[0].mxu0
  %3640 = vdwg.mxu0
  %v3641 = vadd.f32 %v3553, %v3638
  %s3642 = scalar_lea.vmem %s8, 512
  %v3643 = vld [vmem:[%s3642] sm:$0xff]
  %v3644 = vld [vmem:[%s3642 + $0x8] sm:$0xff]
  %v3645 = vld [vmem:[%s3642 + $0x10] sm:$0xff]
  %v3646 = vld [vmem:[%s3642 + $0x18] sm:$0xff]
  %v3647 = vld [vmem:[%s3642 + $0x20] sm:$0xff]
  %v3648 = vld [vmem:[%s3642 + $0x28] sm:$0xff]
  %v3649 = vld [vmem:[%s3642 + $0x30] sm:$0xff]
  %v3650 = vld [vmem:[%s3642 + $0x38] sm:$0xff]
  %v3651 = vld [vmem:[%s3642 + $0x40] sm:$0xff]
  %v3652 = vld [vmem:[%s3642 + $0x48] sm:$0xff]
  %v3653 = vld [vmem:[%s3642 + $0x50] sm:$0xff]
  %v3654 = vld [vmem:[%s3642 + $0x58] sm:$0xff]
  %v3655 = vld [vmem:[%s3642 + $0x60] sm:$0xff]
  %v3656 = vld [vmem:[%s3642 + $0x68] sm:$0xff]
  %v3657 = vld [vmem:[%s3642 + $0x70] sm:$0xff]
  %v3658 = vld [vmem:[%s3642 + $0x78] sm:$0xff]
  %3659 = vmatprep.subr.mxu0 0.0
  %3660 = vmatpush1.msra.mxu0 %v3643
  %3661 = vmatprep.subr.mxu0 0.0
  %3662 = vmatpush1.msra.mxu0 %v3644
  %3663 = vmatprep.subr.mxu0 0.0
  %3664 = vmatpush1.msra.mxu0 %v3645
  %3665 = vmatprep.subr.mxu0 0.0
  %3666 = vmatpush1.msra.mxu0 %v3646
  %3667 = vmatprep.subr.mxu0 0.0
  %3668 = vmatpush1.msra.mxu0 %v3647
  %3669 = vmatprep.subr.mxu0 0.0
  %3670 = vmatpush1.msra.mxu0 %v3648
  %3671 = vmatprep.subr.mxu0 0.0
  %3672 = vmatpush1.msra.mxu0 %v3649
  %3673 = vmatprep.subr.mxu0 0.0
  %3674 = vmatpush1.msra.mxu0 %v3650
  %3675 = vmatprep.subr.mxu0 0.0
  %3676 = vmatpush1.msra.mxu0 %v3651
  %3677 = vmatprep.subr.mxu0 0.0
  %3678 = vmatpush1.msra.mxu0 %v3652
  %3679 = vmatprep.subr.mxu0 0.0
  %3680 = vmatpush1.msra.mxu0 %v3653
  %3681 = vmatprep.subr.mxu0 0.0
  %3682 = vmatpush1.msra.mxu0 %v3654
  %3683 = vmatprep.subr.mxu0 0.0
  %3684 = vmatpush1.msra.mxu0 %v3655
  %3685 = vmatprep.subr.mxu0 0.0
  %3686 = vmatpush1.msra.mxu0 %v3656
  %3687 = vmatprep.subr.mxu0 0.0
  %3688 = vmatpush1.msra.mxu0 %v3657
  %3689 = vmatprep.subr.mxu0 0.0
  %3690 = vmatpush1.msra.mxu0 %v3658
  %3691 = vmatprep.subr.mxu0 0.0
  %3692 = vmatpush1.msra.mxu0 0.0
  %3693 = vmatprep.subr.mxu0 0.0
  %3694 = vmatpush1.msra.mxu0 0.0
  %3695 = vmatprep.subr.mxu0 0.0
  %3696 = vmatpush1.msra.mxu0 0.0
  %3697 = vmatprep.subr.mxu0 0.0
  %3698 = vmatpush1.msra.mxu0 0.0
  %3699 = vmatprep.subr.mxu0 0.0
  %3700 = vmatpush1.msra.mxu0 0.0
  %3701 = vmatprep.subr.mxu0 0.0
  %3702 = vmatpush1.msra.mxu0 0.0
  %3703 = vmatprep.subr.mxu0 0.0
  %3704 = vmatpush1.msra.mxu0 0.0
  %3705 = vmatprep.subr.mxu0 0.0
  %3706 = vmatpush1.msra.mxu0 0.0
  %3707 = vmatprep.subr.mxu0 0.0
  %3708 = vmatpush1.msra.mxu0 0.0
  %3709 = vmatprep.subr.mxu0 0.0
  %3710 = vmatpush1.msra.mxu0 0.0
  %3711 = vmatprep.subr.mxu0 0.0
  %3712 = vmatpush1.msra.mxu0 0.0
  %3713 = vmatprep.subr.mxu0 0.0
  %3714 = vmatpush1.msra.mxu0 0.0
  %3715 = vmatprep.subr.mxu0 0.0
  %3716 = vmatpush1.msra.mxu0 0.0
  %3717 = vmatprep.subr.mxu0 0.0
  %3718 = vmatpush1.msra.mxu0 0.0
  %3719 = vmatprep.subr.mxu0 0.0
  %3720 = vmatpush1.msra.mxu0 0.0
  %3721 = vmatprep.subr.mxu0 0.0
  %3722 = vmatpush1.msra.mxu0 0.0
  %3723 = vmatprep.mubr.f32.mxu0 0.0
  %3724 = vmatmul.mubr.f32.gmra.mrb[0].mxu0 %v3292
  %v3725 = vpop.f32.mrb[0].mxu0
  %v3726 = vadd.f32 0.0, %v3725
  %v3727 = vpop.f32.mrb[0].mxu0
  %3728 = vdwg.mxu0
  %v3729 = vadd.f32 %v3641, %v3726
  %v3730 = vld [vmem:[%s9] sm:$0x1]
  %v3732 = vlaneseq
  %v3733 = vshrl.u32 %v3732, 7
  %v3734 = vsub.s32 0, %v3733
  %v3735 = vrot.slane %v3730, %v3734
  %v3737 = vadd.f32 %v3729, %v3735
  %v3738 = vmax.f32 %v3737, 0.0
  %v3739 = vld [vmem:[%s10] sm:$0xff]
  %v3740 = vld [vmem:[%s10 + $0x8] sm:$0xff]
  %v3741 = vld [vmem:[%s10 + $0x10] sm:$0xff]
  %v3742 = vld [vmem:[%s10 + $0x18] sm:$0xff]
  %v3743 = vld [vmem:[%s10 + $0x20] sm:$0xff]
  %v3744 = vld [vmem:[%s10 + $0x28] sm:$0xff]
  %v3745 = vld [vmem:[%s10 + $0x30] sm:$0xff]
  %v3746 = vld [vmem:[%s10 + $0x38] sm:$0xff]
  %v3747 = vld [vmem:[%s10 + $0x40] sm:$0xff]
  %v3748 = vld [vmem:[%s10 + $0x48] sm:$0xff]
  %v3749 = vld [vmem:[%s10 + $0x50] sm:$0xff]
  %v3750 = vld [vmem:[%s10 + $0x58] sm:$0xff]
  %v3751 = vld [vmem:[%s10 + $0x60] sm:$0xff]
  %v3752 = vld [vmem:[%s10 + $0x68] sm:$0xff]
  %v3753 = vld [vmem:[%s10 + $0x70] sm:$0xff]
  %v3754 = vld [vmem:[%s10 + $0x78] sm:$0xff]
  %v3755 = vld [vmem:[%s11] sm:$0x1]
  %v3757 = vlaneseq
  %v3758 = vshrl.u32 %v3757, 7
  %v3759 = vsub.s32 0, %v3758
  %v3760 = vrot.slane %v3755, %v3759
  %3762 = vmatprep.subr.mxu0 0.0
  %3763 = vmatpush1.msra.mxu0 %v3739
  %3764 = vmatprep.subr.mxu0 0.0
  %3765 = vmatpush1.msra.mxu0 %v3740
  %3766 = vmatprep.subr.mxu0 0.0
  %3767 = vmatpush1.msra.mxu0 %v3741
  %3768 = vmatprep.subr.mxu0 0.0
  %3769 = vmatpush1.msra.mxu0 %v3742
  %3770 = vmatprep.subr.mxu0 0.0
  %3771 = vmatpush1.msra.mxu0 %v3743
  %3772 = vmatprep.subr.mxu0 0.0
  %3773 = vmatpush1.msra.mxu0 %v3744
  %3774 = vmatprep.subr.mxu0 0.0
  %3775 = vmatpush1.msra.mxu0 %v3745
  %3776 = vmatprep.subr.mxu0 0.0
  %3777 = vmatpush1.msra.mxu0 %v3746
  %3778 = vmatprep.subr.mxu0 0.0
  %3779 = vmatpush1.msra.mxu0 %v3747
  %3780 = vmatprep.subr.mxu0 0.0
  %3781 = vmatpush1.msra.mxu0 %v3748
  %3782 = vmatprep.subr.mxu0 0.0
  %3783 = vmatpush1.msra.mxu0 %v3749
  %3784 = vmatprep.subr.mxu0 0.0
  %3785 = vmatpush1.msra.mxu0 %v3750
  %3786 = vmatprep.subr.mxu0 0.0
  %3787 = vmatpush1.msra.mxu0 %v3751
  %3788 = vmatprep.subr.mxu0 0.0
  %3789 = vmatpush1.msra.mxu0 %v3752
  %3790 = vmatprep.subr.mxu0 0.0
  %3791 = vmatpush1.msra.mxu0 %v3753
  %3792 = vmatprep.subr.mxu0 0.0
  %3793 = vmatpush1.msra.mxu0 %v3754
  %3794 = vmatprep.subr.mxu0 0.0
  %3795 = vmatpush1.msra.mxu0 0.0
  %3796 = vmatprep.subr.mxu0 0.0
  %3797 = vmatpush1.msra.mxu0 0.0
  %3798 = vmatprep.subr.mxu0 0.0
  %3799 = vmatpush1.msra.mxu0 0.0
  %3800 = vmatprep.subr.mxu0 0.0
  %3801 = vmatpush1.msra.mxu0 0.0
  %3802 = vmatprep.subr.mxu0 0.0
  %3803 = vmatpush1.msra.mxu0 0.0
  %3804 = vmatprep.subr.mxu0 0.0
  %3805 = vmatpush1.msra.mxu0 0.0
  %3806 = vmatprep.subr.mxu0 0.0
  %3807 = vmatpush1.msra.mxu0 0.0
  %3808 = vmatprep.subr.mxu0 0.0
  %3809 = vmatpush1.msra.mxu0 0.0
  %3810 = vmatprep.subr.mxu0 0.0
  %3811 = vmatpush1.msra.mxu0 0.0
  %3812 = vmatprep.subr.mxu0 0.0
  %3813 = vmatpush1.msra.mxu0 0.0
  %3814 = vmatprep.subr.mxu0 0.0
  %3815 = vmatpush1.msra.mxu0 0.0
  %3816 = vmatprep.subr.mxu0 0.0
  %3817 = vmatpush1.msra.mxu0 0.0
  %3818 = vmatprep.subr.mxu0 0.0
  %3819 = vmatpush1.msra.mxu0 0.0
  %3820 = vmatprep.subr.mxu0 0.0
  %3821 = vmatpush1.msra.mxu0 0.0
  %3822 = vmatprep.subr.mxu0 0.0
  %3823 = vmatpush1.msra.mxu0 0.0
  %3824 = vmatprep.subr.mxu0 0.0
  %3825 = vmatpush1.msra.mxu0 0.0
  %3826 = vmatprep.mubr.f32.mxu0 0.0
  %3827 = vmatmul.mubr.f32.gmra.mrb[0].mxu0 %v3738
  %v3828 = vpop.f32.mrb[0].mxu0
  %v3829 = vadd.f32 %v3760, %v3828
  %v3830 = vpop.f32.mrb[0].mxu0
  %3831 = vdwg.mxu0
  %v3832 = vmax.f32 %v3829, 0.0
  %v3833 = vld [vmem:[%s12] sm:$0xff]
  %v3834 = vld [vmem:[%s12 + $0x8] sm:$0xff]
  %v3835 = vld [vmem:[%s12 + $0x10] sm:$0xff]
  %v3836 = vld [vmem:[%s12 + $0x18] sm:$0xff]
  %v3837 = vld [vmem:[%s12 + $0x20] sm:$0xff]
  %v3838 = vld [vmem:[%s12 + $0x28] sm:$0xff]
  %v3839 = vld [vmem:[%s12 + $0x30] sm:$0xff]
  %v3840 = vld [vmem:[%s12 + $0x38] sm:$0xff]
  %v3841 = vld [vmem:[%s12 + $0x40] sm:$0xff]
  %v3842 = vld [vmem:[%s12 + $0x48] sm:$0xff]
  %v3843 = vld [vmem:[%s12 + $0x50] sm:$0xff]
  %v3844 = vld [vmem:[%s12 + $0x58] sm:$0xff]
  %v3845 = vld [vmem:[%s12 + $0x60] sm:$0xff]
  %v3846 = vld [vmem:[%s12 + $0x68] sm:$0xff]
  %v3847 = vld [vmem:[%s12 + $0x70] sm:$0xff]
  %v3848 = vld [vmem:[%s12 + $0x78] sm:$0xff]
  %v3849 = vld [vmem:[%s13] sm:$0x1]
  %v3851 = vlaneseq
  %v3852 = vshrl.u32 %v3851, 7
  %v3853 = vsub.s32 0, %v3852
  %v3854 = vrot.slane %v3849, %v3853
  %3856 = vmatprep.subr.mxu0 0.0
  %3857 = vmatpush1.msra.mxu0 %v3833
  %3858 = vmatprep.subr.mxu0 0.0
  %3859 = vmatpush1.msra.mxu0 %v3834
  %3860 = vmatprep.subr.mxu0 0.0
  %3861 = vmatpush1.msra.mxu0 %v3835
  %3862 = vmatprep.subr.mxu0 0.0
  %3863 = vmatpush1.msra.mxu0 %v3836
  %3864 = vmatprep.subr.mxu0 0.0
  %3865 = vmatpush1.msra.mxu0 %v3837
  %3866 = vmatprep.subr.mxu0 0.0
  %3867 = vmatpush1.msra.mxu0 %v3838
  %3868 = vmatprep.subr.mxu0 0.0
  %3869 = vmatpush1.msra.mxu0 %v3839
  %3870 = vmatprep.subr.mxu0 0.0
  %3871 = vmatpush1.msra.mxu0 %v3840
  %3872 = vmatprep.subr.mxu0 0.0
  %3873 = vmatpush1.msra.mxu0 %v3841
  %3874 = vmatprep.subr.mxu0 0.0
  %3875 = vmatpush1.msra.mxu0 %v3842
  %3876 = vmatprep.subr.mxu0 0.0
  %3877 = vmatpush1.msra.mxu0 %v3843
  %3878 = vmatprep.subr.mxu0 0.0
  %3879 = vmatpush1.msra.mxu0 %v3844
  %3880 = vmatprep.subr.mxu0 0.0
  %3881 = vmatpush1.msra.mxu0 %v3845
  %3882 = vmatprep.subr.mxu0 0.0
  %3883 = vmatpush1.msra.mxu0 %v3846
  %3884 = vmatprep.subr.mxu0 0.0
  %3885 = vmatpush1.msra.mxu0 %v3847
  %3886 = vmatprep.subr.mxu0 0.0
  %3887 = vmatpush1.msra.mxu0 %v3848
  %3888 = vmatprep.subr.mxu0 0.0
  %3889 = vmatpush1.msra.mxu0 0.0
  %3890 = vmatprep.subr.mxu0 0.0
  %3891 = vmatpush1.msra.mxu0 0.0
  %3892 = vmatprep.subr.mxu0 0.0
  %3893 = vmatpush1.msra.mxu0 0.0
  %3894 = vmatprep.subr.mxu0 0.0
  %3895 = vmatpush1.msra.mxu0 0.0
  %3896 = vmatprep.subr.mxu0 0.0
  %3897 = vmatpush1.msra.mxu0 0.0
  %3898 = vmatprep.subr.mxu0 0.0
  %3899 = vmatpush1.msra.mxu0 0.0
  %3900 = vmatprep.subr.mxu0 0.0
  %3901 = vmatpush1.msra.mxu0 0.0
  %3902 = vmatprep.subr.mxu0 0.0
  %3903 = vmatpush1.msra.mxu0 0.0
  %3904 = vmatprep.subr.mxu0 0.0
  %3905 = vmatpush1.msra.mxu0 0.0
  %3906 = vmatprep.subr.mxu0 0.0
  %3907 = vmatpush1.msra.mxu0 0.0
  %3908 = vmatprep.subr.mxu0 0.0
  %3909 = vmatpush1.msra.mxu0 0.0
  %3910 = vmatprep.subr.mxu0 0.0
  %3911 = vmatpush1.msra.mxu0 0.0
  %3912 = vmatprep.subr.mxu0 0.0
  %3913 = vmatpush1.msra.mxu0 0.0
  %3914 = vmatprep.subr.mxu0 0.0
  %3915 = vmatpush1.msra.mxu0 0.0
  %3916 = vmatprep.subr.mxu0 0.0
  %3917 = vmatpush1.msra.mxu0 0.0
  %3918 = vmatprep.subr.mxu0 0.0
  %3919 = vmatpush1.msra.mxu0 0.0
  %3920 = vmatprep.mubr.f32.mxu0 0.0
  %3921 = vmatmul.mubr.f32.gmra.mrb[0].mxu0 %v3832
  %v3922 = vpop.f32.mrb[0].mxu0
  %v3923 = vadd.f32 %v3854, %v3922
  %v3924 = vpop.f32.mrb[0].mxu0
  %3925 = vdwg.mxu0
  %3926 = vst [vmem:[%s14] sm:$0xff] %v3923
  // Predicated region
  $region58: #{net_forward.1} parent=0 // pred_check
    _
  $region59: #{net_forward.1} parent=0 // pred_check_branch
    %3928 = sbr.rel (0) target = $region61
  $region60: #{net_forward.1} parent=0 // pred_region
    _
  $region61: #{net_forward.1} parent=0 // pred_fallthru
    _
  // Predicated region
  $region62: #{net_forward.1} parent=0 // pred_check
    _
  $region63: #{net_forward.1} parent=0 // pred_check_branch
    %3930 = sbr.rel (0) target = $region65
  $region64: #{net_forward.1} parent=0 // pred_region
    _
  $region65: #{net_forward.1} parent=0 // pred_fallthru
    _

</llo_original>
